<compile_context>
chip_gen: v7x
topology: tpu7x:2x2x1
jax: 0.10.0
libtpu: 0.0.40
codegen_flags: <defaults>
</compile_context>

<pallas_src>
import jax
import jax.numpy as jnp
from jax.experimental import pallas as pl
from jax.experimental.pallas import tpu as pltpu

L_IN = 56            # sequence length implied by fc1: 32 * (56 // 2 // 2) = 448
C1, C2 = 16, 32      # conv channel counts
K = 3                # conv kernel size
L1 = L_IN // 2       # 28 after first pool
L2 = L1 // 2         # 14 after second pool
H1, H_OUT = 64, 9    # fc sizes

# Lane-dense padded sizes (all multiples of 128 -> full vregs, clean MXU passes)
L_PAD = 128          # input lanes   56  -> 128
PAD1 = 512           # conv1 lanes   448 -> 512   (lane = c*28 + m)
PAD2 = 512           # conv2 lanes   448 -> 512   (lane = c*14 + j, torch flatten order)
FC1_PAD = 128        # fc1 lanes      64 -> 128
OUT_PAD = 128        # fc2 lanes       9 -> 128 (sliced back to 9 in the wrapper)


def conv1dnet_kernel(x_ref, w1_ref, b1_ref, w2_ref, b2_ref,
                     wf1_ref, bf1_ref, wf2_ref, bf2_ref, out_ref):
    f32 = jnp.float32
    n1 = w1_ref.shape[1] // 2      # 512 (even/odd halves split on a vreg boundary)
    n2 = w2_ref.shape[1] // 2      # 512

    x = x_ref[...].astype(w1_ref.dtype)                         # (BT, 128)

    # conv1 at even & odd output positions in ONE matmul; ReLU+MaxPool(2,2)
    # is a single VPU maximum of the two halves (relu(max(a,b)) == max(relu)).
    a1 = jnp.dot(x, w1_ref[...], preferred_element_type=f32)    # (BT, 1024)
    h1 = jnp.maximum(jnp.maximum(a1[:, :n1], a1[:, n1:]) + b1_ref[...], 0.0)  # (BT, 512)

    # conv2, same trick.  Resulting lanes o*14 + j == torch channel-major flatten.
    a2 = jnp.dot(h1.astype(w2_ref.dtype), w2_ref[...],
                 preferred_element_type=f32)                    # (BT, 1024)
    h2 = jnp.maximum(jnp.maximum(a2[:, :n2], a2[:, n2:]) + b2_ref[...], 0.0)  # (BT, 512)

    # fc1 + ReLU: one (BT,512)@(512,128) matmul (padded cols/bias are zero).
    y1 = jnp.maximum(jnp.dot(h2.astype(wf1_ref.dtype), wf1_ref[...],
                             preferred_element_type=f32) + bf1_ref[...], 0.0)

    # fc2, padded to 128 output lanes -> unmasked lane-dense stores.
    out_ref[...] = jnp.dot(y1.astype(wf2_ref.dtype), wf2_ref[...],
                           preferred_element_type=f32) + bf2_ref[...]


def _band_matrix(w, lin, parity):
    """Banded matrix M s.t. (h @ M)[b, co*lh + m] = conv1d(h, w, pad=1)[b, co, 2m+parity].

    w: torch-layout conv weight (Cout, Cin, 3).  h is flattened channel-major
    (lane = ci*lin + p).  lh = lin // 2: only the positions MaxPool(2,2) will
    compare are evaluated.  Returns (Cin*lin, Cout*lh) in float32.
    """
    co, ci, k = w.shape
    lh = lin // 2
    p = jnp.arange(lin)[:, None]                     # input position within channel
    m = jnp.arange(lh)[None, :]                      # pooled output position
    kk = p - (2 * m + parity) + 1                    # kernel tap index (pad = 1)
    valid = (kk >= 0) & (kk < k)
    kc = jnp.clip(kk, 0, k - 1)
    w_perm = jnp.transpose(w.astype(jnp.float32), (1, 2, 0))          # (ci, k, co)
    blk = jnp.where(valid[None, :, :, None], w_perm[:, kc, :], 0.0)   # (ci, lin, lh, co)
    return jnp.transpose(blk, (0, 1, 3, 2)).reshape(ci * lin, co * lh)


def _pad2(a, rows, cols):
    return jnp.pad(a, ((0, rows - a.shape[0]), (0, cols - a.shape[1])))


def _round_up(n, m):
    return ((n + m - 1) // m) * m


def conv1dnet_forward(x, params, *, b_tile=512, mm_dtype=jnp.bfloat16):
    """x: (B, 1, 56) float32 (PyTorch NCL).  Returns (B, 9) float32."""
    w1, b1, w2, b2, wf1, bf1, wf2, bf2 = params          # torch layouts
    B = x.shape[0]

    # Batch tile: lane-aligned, big enough to amortize per-step overhead, but
    # keep >= 2 grid steps when the batch allows (v7x megacore) and don't pad
    # tiny batches up to a huge tile.
    bt = max(128, min(b_tile, _round_up(pl.cdiv(B, 2), 128)))
    num_tiles = pl.cdiv(B, bt)
    bp = num_tiles * bt

    # Input: flatten to (B, 56), pad batch + lanes (zeros -> no partial blocks,
    # no masked vld on a 56-wide last dim).
    x2 = x.reshape(B, L_IN).astype(jnp.float32)
    x2 = jnp.pad(x2, ((0, bp - B), (0, L_PAD - L_IN)))

    # One-time parameter re-layout (plain JAX glue outside the kernel).
    # All padded rows/cols are exactly zero -> no leakage through ReLU/max.
    w1e = _band_matrix(w1, L_IN, 0)                                   # (56, 448)
    w1o = _band_matrix(w1, L_IN, 1)
    w1eo = jnp.concatenate([_pad2(w1e, L_PAD, PAD1),
                            _pad2(w1o, L_PAD, PAD1)], axis=1).astype(mm_dtype)   # (128, 1024)
    b1r = jnp.pad(jnp.repeat(b1.astype(jnp.float32), L1),
                  (0, PAD1 - C1 * L1))[None, :]                       # (1, 512)

    w2e = _band_matrix(w2, L1, 0)                                     # (448, 448)
    w2o = _band_matrix(w2, L1, 1)
    w2eo = jnp.concatenate([_pad2(w2e, PAD1, PAD2),
                            _pad2(w2o, PAD1, PAD2)], axis=1).astype(mm_dtype)    # (512, 1024)
    b2r = jnp.pad(jnp.repeat(b2.astype(jnp.float32), L2),
                  (0, PAD2 - C2 * L2))[None, :]                       # (1, 512)

    wf1k = _pad2(wf1.T.astype(jnp.float32), PAD2, FC1_PAD).astype(mm_dtype)      # (512, 128)
    bf1k = jnp.pad(bf1.astype(jnp.float32), (0, FC1_PAD - H1))[None, :]          # (1, 128)
    wf2k = _pad2(wf2.T.astype(jnp.float32), FC1_PAD, OUT_PAD).astype(mm_dtype)   # (128, 128)
    bf2k = jnp.pad(bf2.astype(jnp.float32), (0, OUT_PAD - H_OUT))[None, :]       # (1, 128)

    consts = [w1eo, b1r, w2eo, b2r, wf1k, bf1k, wf2k, bf2k]

    in_specs = [pl.BlockSpec((bt, L_PAD), lambda b: (b, 0))] + [
        pl.BlockSpec(c.shape, lambda b: (0, 0)) for c in consts   # VMEM-resident
    ]

    # Advisory cost estimate (padded matmul shapes).
    flops = 2 * bp * (L_PAD * 2 * PAD1 + PAD1 * 2 * PAD2 + PAD2 * FC1_PAD
                      + FC1_PAD * OUT_PAD)
    bytes_accessed = (x2.size * 4 + bp * OUT_PAD * 4
                      + sum(int(c.size) * c.dtype.itemsize for c in consts))
    cost = pl.CostEstimate(flops=flops, transcendentals=0,
                           bytes_accessed=bytes_accessed)

    out = pl.pallas_call(
        conv1dnet_kernel,
        out_shape=jax.ShapeDtypeStruct((bp, OUT_PAD), jnp.float32),
        grid=(num_tiles,),
        in_specs=in_specs,
        out_specs=pl.BlockSpec((bt, OUT_PAD), lambda b: (b, 0)),
        compiler_params=pltpu.CompilerParams(
            dimension_semantics=("parallel",),
            vmem_limit_bytes=32 * 1024 * 1024),
        cost_estimate=cost,
    )(x2, *consts)
    return out[:B, :H_OUT]


def reference_forward(x, params):
    """Pure-JAX reference with identical semantics to the PyTorch module."""
    w1, b1, w2, b2, wf1, bf1, wf2, bf2 = params
    dn = ("NCH", "OIH", "NCH")
    y = jax.lax.conv_general_dilated(x, w1, window_strides=(1,),
                                     padding=((1, 1),), dimension_numbers=dn)
    y = jax.nn.relu(y + b1[None, :, None])
    y = jnp.max(y.reshape(y.shape[0], y.shape[1], y.shape[2] // 2, 2), axis=-1)
    y = jax.lax.conv_general_dilated(y, w2, window_strides=(1,),
                                     padding=((1, 1),), dimension_numbers=dn)
    y = jax.nn.relu(y + b2[None, :, None])
    y = jnp.max(y.reshape(y.shape[0], y.shape[1], y.shape[2] // 2, 2), axis=-1)
    y = y.reshape(y.shape[0], -1)                       # torch .view: channel-major
    y = jax.nn.relu(y @ wf1.T + bf1)
    y = y @ wf2.T + bf2
    return y


if __name__ == "__main__":
    key = jax.random.PRNGKey(0)
    ks = jax.random.split(key, 9)

    # Deterministic synthetic parameters (torch shapes from __init__).
    w1 = 0.3 * jax.random.normal(ks[1], (C1, 1, K), jnp.float32)
    b1 = 0.1 * jax.random.normal(ks[2], (C1,), jnp.float32)
    w2 = 0.1 * jax.random.normal(ks[3], (C2, C1, K), jnp.float32)
    b2 = 0.1 * jax.random.normal(ks[4], (C2,), jnp.float32)
    wf1 = 0.05 * jax.random.normal(ks[5], (H1, C2 * L2), jnp.float32)
    bf1 = 0.1 * jax.random.normal(ks[6], (H1,), jnp.float32)
    wf2 = 0.1 * jax.random.normal(ks[7], (H2 := H_OUT, H1), jnp.float32)
    bf2 = 0.1 * jax.random.normal(ks[8], (H_OUT,), jnp.float32)
    params = (w1, b1, w2, b2, wf1, bf1, wf2, bf2)

    # Tiny batch (2) and a multi-tile, non-multiple-of-tile batch (300).
    for B in (2, 300):
        x = jax.random.normal(ks[0], (B, 1, L_IN), jnp.float32)
        ref = reference_forward(x, params)
        out_bf16 = conv1dnet_forward(x, params)                         # default: bf16 MXU path
        out_f32 = conv1dnet_forward(x, params, mm_dtype=jnp.float32)    # exact path
        jax.block_until_ready((out_bf16, out_f32, ref))

        assert out_bf16.shape == (B, H_OUT), out_bf16.shape
        assert jnp.allclose(out_f32, ref, atol=5e-4, rtol=5e-4), (
            "f32", B, float(jnp.max(jnp.abs(out_f32 - ref))))
        assert jnp.allclose(out_bf16, ref, atol=3e-2, rtol=3e-2), (
            "bf16", B, float(jnp.max(jnp.abs(out_bf16 - ref))))
    print("KERNEL_OK")
</pallas_src>

<mosaic_0001>
module attributes {stable_mosaic.version = 11 : i64} {
  func.func @conv1dnet_kernel(%arg0: i32, %arg1: memref<128x128xf32, #tpu.memory_space<vmem>>, %arg2: memref<128x1024xbf16, #tpu.memory_space<vmem>>, %arg3: memref<1x512xf32, #tpu.memory_space<vmem>>, %arg4: memref<512x1024xbf16, #tpu.memory_space<vmem>>, %arg5: memref<1x512xf32, #tpu.memory_space<vmem>>, %arg6: memref<512x128xbf16, #tpu.memory_space<vmem>>, %arg7: memref<1x128xf32, #tpu.memory_space<vmem>>, %arg8: memref<128x128xbf16, #tpu.memory_space<vmem>>, %arg9: memref<1x128xf32, #tpu.memory_space<vmem>>, %arg10: memref<128x128xf32, #tpu.memory_space<vmem>>) attributes {dimension_semantics = [#tpu.dimension_semantics<parallel>], iteration_bounds = array<i64: 1>, scalar_prefetch = 0 : i64, scratch_operands = 0 : i64, tpu.core_type = #tpu.core_type<tc>, window_params = [{transform_indices = @transform_0, window_bounds = array<i64: 128, 128>}, {pipeline_mode = #tpu.pipeline_mode<synchronous>, transform_indices = @transform_1, window_bounds = array<i64: 128, 1024>}, {pipeline_mode = #tpu.pipeline_mode<synchronous>, transform_indices = @transform_2, window_bounds = array<i64: 1, 512>}, {pipeline_mode = #tpu.pipeline_mode<synchronous>, transform_indices = @transform_3, window_bounds = array<i64: 512, 1024>}, {pipeline_mode = #tpu.pipeline_mode<synchronous>, transform_indices = @transform_4, window_bounds = array<i64: 1, 512>}, {pipeline_mode = #tpu.pipeline_mode<synchronous>, transform_indices = @transform_5, window_bounds = array<i64: 512, 128>}, {pipeline_mode = #tpu.pipeline_mode<synchronous>, transform_indices = @transform_6, window_bounds = array<i64: 1, 128>}, {pipeline_mode = #tpu.pipeline_mode<synchronous>, transform_indices = @transform_7, window_bounds = array<i64: 128, 128>}, {pipeline_mode = #tpu.pipeline_mode<synchronous>, transform_indices = @transform_8, window_bounds = array<i64: 1, 128>}, {transform_indices = @transform_9, window_bounds = array<i64: 128, 128>}]} {
    %c0 = arith.constant 0 : index
    %c0_0 = arith.constant 0 : index
    %0 = vector.load %arg1[%c0, %c0_0] : memref<128x128xf32, #tpu.memory_space<vmem>>, vector<128x128xf32>
    %1 = arith.truncf %0 : vector<128x128xf32> to vector<128x128xbf16>
    %c0_1 = arith.constant 0 : index
    %c0_2 = arith.constant 0 : index
    %2 = vector.load %arg2[%c0_1, %c0_2] : memref<128x1024xbf16, #tpu.memory_space<vmem>>, vector<128x1024xbf16>
    %cst = arith.constant dense<0.000000e+00> : vector<128x1024xf32>
    %3 = tpu.matmul %1, %2, %cst {dimension_numbers = #tpu.dot_dimension_numbers<[1], [0], [0], [1], [0, 0, 1, 1], [], []>} : vector<128x128xbf16>, vector<128x1024xbf16>, vector<128x1024xf32> -> vector<128x1024xf32>
    %4 = vector.extract_strided_slice %3 {offsets = [0, 0], sizes = [128, 512], strides = [1, 1]} : vector<128x1024xf32> to vector<128x512xf32>
    %5 = vector.extract_strided_slice %3 {offsets = [0, 512], sizes = [128, 512], strides = [1, 1]} : vector<128x1024xf32> to vector<128x512xf32>
    %6 = arith.maximumf %4, %5 : vector<128x512xf32>
    %c0_3 = arith.constant 0 : index
    %c0_4 = arith.constant 0 : index
    %7 = vector.load %arg3[%c0_3, %c0_4] : memref<1x512xf32, #tpu.memory_space<vmem>>, vector<1x512xf32>
    %8 = vector.broadcast %7 : vector<1x512xf32> to vector<128x512xf32>
    %9 = arith.addf %6, %8 : vector<128x512xf32>
    %cst_5 = arith.constant 0.000000e+00 : f32
    %10 = vector.broadcast %cst_5 : f32 to vector<128x512xf32>
    %11 = arith.maximumf %9, %10 : vector<128x512xf32>
    %12 = arith.truncf %11 : vector<128x512xf32> to vector<128x512xbf16>
    %c0_6 = arith.constant 0 : index
    %c0_7 = arith.constant 0 : index
    %13 = vector.load %arg4[%c0_6, %c0_7] : memref<512x1024xbf16, #tpu.memory_space<vmem>>, vector<512x1024xbf16>
    %cst_8 = arith.constant dense<0.000000e+00> : vector<128x1024xf32>
    %14 = tpu.matmul %12, %13, %cst_8 {dimension_numbers = #tpu.dot_dimension_numbers<[1], [0], [0], [1], [0, 0, 1, 1], [], []>} : vector<128x512xbf16>, vector<512x1024xbf16>, vector<128x1024xf32> -> vector<128x1024xf32>
    %15 = vector.extract_strided_slice %14 {offsets = [0, 0], sizes = [128, 512], strides = [1, 1]} : vector<128x1024xf32> to vector<128x512xf32>
    %16 = vector.extract_strided_slice %14 {offsets = [0, 512], sizes = [128, 512], strides = [1, 1]} : vector<128x1024xf32> to vector<128x512xf32>
    %17 = arith.maximumf %15, %16 : vector<128x512xf32>
    %c0_9 = arith.constant 0 : index
    %c0_10 = arith.constant 0 : index
    %18 = vector.load %arg5[%c0_9, %c0_10] : memref<1x512xf32, #tpu.memory_space<vmem>>, vector<1x512xf32>
    %19 = vector.broadcast %18 : vector<1x512xf32> to vector<128x512xf32>
    %20 = arith.addf %17, %19 : vector<128x512xf32>
    %cst_11 = arith.constant 0.000000e+00 : f32
    %21 = vector.broadcast %cst_11 : f32 to vector<128x512xf32>
    %22 = arith.maximumf %20, %21 : vector<128x512xf32>
    %23 = arith.truncf %22 : vector<128x512xf32> to vector<128x512xbf16>
    %c0_12 = arith.constant 0 : index
    %c0_13 = arith.constant 0 : index
    %24 = vector.load %arg6[%c0_12, %c0_13] : memref<512x128xbf16, #tpu.memory_space<vmem>>, vector<512x128xbf16>
    %cst_14 = arith.constant dense<0.000000e+00> : vector<128x128xf32>
    %25 = tpu.matmul %23, %24, %cst_14 {dimension_numbers = #tpu.dot_dimension_numbers<[1], [0], [0], [1], [0, 0, 1, 1], [], []>} : vector<128x512xbf16>, vector<512x128xbf16>, vector<128x128xf32> -> vector<128x128xf32>
    %c0_15 = arith.constant 0 : index
    %c0_16 = arith.constant 0 : index
    %26 = vector.load %arg7[%c0_15, %c0_16] : memref<1x128xf32, #tpu.memory_space<vmem>>, vector<1x128xf32>
    %27 = vector.broadcast %26 : vector<1x128xf32> to vector<128x128xf32>
    %28 = arith.addf %25, %27 : vector<128x128xf32>
    %cst_17 = arith.constant 0.000000e+00 : f32
    %29 = vector.broadcast %cst_17 : f32 to vector<128x128xf32>
    %30 = arith.maximumf %28, %29 : vector<128x128xf32>
    %31 = arith.truncf %30 : vector<128x128xf32> to vector<128x128xbf16>
    %c0_18 = arith.constant 0 : index
    %c0_19 = arith.constant 0 : index
    %32 = vector.load %arg8[%c0_18, %c0_19] : memref<128x128xbf16, #tpu.memory_space<vmem>>, vector<128x128xbf16>
    %cst_20 = arith.constant dense<0.000000e+00> : vector<128x128xf32>
    %33 = tpu.matmul %31, %32, %cst_20 {dimension_numbers = #tpu.dot_dimension_numbers<[1], [0], [0], [1], [0, 0, 1, 1], [], []>} : vector<128x128xbf16>, vector<128x128xbf16>, vector<128x128xf32> -> vector<128x128xf32>
    %c0_21 = arith.constant 0 : index
    %c0_22 = arith.constant 0 : index
    %34 = vector.load %arg9[%c0_21, %c0_22] : memref<1x128xf32, #tpu.memory_space<vmem>>, vector<1x128xf32>
    %35 = vector.broadcast %34 : vector<1x128xf32> to vector<128x128xf32>
    %36 = arith.addf %33, %35 : vector<128x128xf32>
    %c0_23 = arith.constant 0 : index
    %c0_24 = arith.constant 0 : index
    %37 = vector.load %arg10[%c0_23, %c0_24] : memref<128x128xf32, #tpu.memory_space<vmem>>, vector<128x128xf32>
    tpu.vector_store %arg10[%c0_23, %c0_24], %36 {strides = array<i32>} : memref<128x128xf32, #tpu.memory_space<vmem>>, vector<128x128xf32>,
    return
  }
  func.func @transform_0(%arg0: i32) -> (i32, i32) {
    %c0_i32 = arith.constant 0 : i32
    %c0_i32_0 = arith.constant 0 : i32
    return %arg0, %c0_i32 : i32, i32
  }
  func.func @transform_1(%arg0: i32) -> (i32, i32) {
    %c0_i32 = arith.constant 0 : i32
    %c0_i32_0 = arith.constant 0 : i32
    %c0_i32_1 = arith.constant 0 : i32
    return %c0_i32, %c0_i32_0 : i32, i32
  }
  func.func @transform_2(%arg0: i32) -> (i32, i32) {
    %c0_i32 = arith.constant 0 : i32
    %c0_i32_0 = arith.constant 0 : i32
    %c0_i32_1 = arith.constant 0 : i32
    return %c0_i32, %c0_i32_0 : i32, i32
  }
  func.func @transform_3(%arg0: i32) -> (i32, i32) {
    %c0_i32 = arith.constant 0 : i32
    %c0_i32_0 = arith.constant 0 : i32
    %c0_i32_1 = arith.constant 0 : i32
    return %c0_i32, %c0_i32_0 : i32, i32
  }
  func.func @transform_4(%arg0: i32) -> (i32, i32) {
    %c0_i32 = arith.constant 0 : i32
    %c0_i32_0 = arith.constant 0 : i32
    %c0_i32_1 = arith.constant 0 : i32
    return %c0_i32, %c0_i32_0 : i32, i32
  }
  func.func @transform_5(%arg0: i32) -> (i32, i32) {
    %c0_i32 = arith.constant 0 : i32
    %c0_i32_0 = arith.constant 0 : i32
    %c0_i32_1 = arith.constant 0 : i32
    return %c0_i32, %c0_i32_0 : i32, i32
  }
  func.func @transform_6(%arg0: i32) -> (i32, i32) {
    %c0_i32 = arith.constant 0 : i32
    %c0_i32_0 = arith.constant 0 : i32
    %c0_i32_1 = arith.constant 0 : i32
    return %c0_i32, %c0_i32_0 : i32, i32
  }
  func.func @transform_7(%arg0: i32) -> (i32, i32) {
    %c0_i32 = arith.constant 0 : i32
    %c0_i32_0 = arith.constant 0 : i32
    %c0_i32_1 = arith.constant 0 : i32
    return %c0_i32, %c0_i32_0 : i32, i32
  }
  func.func @transform_8(%arg0: i32) -> (i32, i32) {
    %c0_i32 = arith.constant 0 : i32
    %c0_i32_0 = arith.constant 0 : i32
    %c0_i32_1 = arith.constant 0 : i32
    return %c0_i32, %c0_i32_0 : i32, i32
  }
  func.func @transform_9(%arg0: i32) -> (i32, i32) {
    %c0_i32 = arith.constant 0 : i32
    %c0_i32_0 = arith.constant 0 : i32
    return %arg0, %c0_i32 : i32, i32
  }
}

</mosaic_0001>

<llo_original>
// kernel: tpu_custom_call.1
$region0: #{tpu_custom_call.1}
  #allocation0 [shape = 'u32[]', space=smem, size = 0x4, offset = 0x4, fixed_abs, tag = 'smem constant byte address 0x4 - core index']
  #allocation1 [shape = 'u32[144,128]{1,0:T(1,128)}', space=vmem, size = 0x12000, scoped, tag = 'internal scratch']
  %s0 = inlined_call_operand.hbm [shape: f32[128,128], index: 0, kind: input, shape index: {}]
  %s1 = inlined_call_operand.hbm [shape: bf16[128,1024], index: 1, kind: input, shape index: {}]
  %s2 = inlined_call_operand.vmem [shape: f32[1,512], index: 2, kind: input, shape index: {}]
  %s3 = inlined_call_operand.hbm [shape: bf16[512,1024], index: 3, kind: input, shape index: {}]
  %s4 = inlined_call_operand.vmem [shape: f32[1,512], index: 4, kind: input, shape index: {}]
  %s5 = inlined_call_operand.hbm [shape: bf16[512,128], index: 5, kind: input, shape index: {}]
  %s6 = inlined_call_operand.vmem [shape: f32[1,128], index: 6, kind: input, shape index: {}]
  %s7 = inlined_call_operand.hbm [shape: bf16[128,128], index: 7, kind: input, shape index: {}]
  %s8 = inlined_call_operand.vmem [shape: f32[1,128], index: 8, kind: input, shape index: {}]
  %s9 = inlined_call_operand.hbm [shape: f32[128,128], index: 9, kind: output, shape index: {}]
  %s10 = sld [smem:[#allocation0]]
  $region66: #{tpu_custom_call.1} parent=0
    _
  %s12 = ssub.s32 1, %s10
  %s13 = scalar_select 0, %s12, %s10
  $region1: #{tpu_custom_call.1} parent=0
    #allocation2 [shape = 'u8[65536]{0}', space=vmem, size = 0x10000, scoped, tag = 'input window, operand 0, single buffered']
    #allocation3 [shape = 's32[1]{0}', space=sflag, size = 0x4, scoped, tag = 'scoped memory for tpu_custom_call.1']
    #allocation4 [shape = 's32[1]{0}', space=sflag, size = 0x4, scoped, tag = 'scoped memory for tpu_custom_call.1']
    #allocation5 [shape = 'u8[262144]{0}', space=vmem, size = 0x40000, scoped, tag = 'input window, operand 1, single buffered']
    #allocation6 [shape = 's32[1]{0}', space=sflag, size = 0x4, scoped, tag = 'scoped memory for tpu_custom_call.1']
    #allocation7 [shape = 'u8[1048576]{0}', space=vmem, size = 0x100000, scoped, tag = 'input window, operand 3, single buffered']
    #allocation8 [shape = 'u8[131072]{0}', space=vmem, size = 0x20000, scoped, tag = 'input window, operand 5, single buffered']
    #allocation9 [shape = 's32[1]{0}', space=sflag, size = 0x4, scoped, tag = 'scoped memory for tpu_custom_call.1']
    #allocation10 [shape = 'u8[32768]{0}', space=vmem, size = 0x8000, scoped, tag = 'input window, operand 7, single buffered']
    #allocation11 [shape = 'u8[65536]{0}', space=vmem, size = 0x10000, scoped, tag = 'output window, operand 0, single buffered']
    %14 = vsyncpa [#allocation3], 0
    %15 = vsyncpa [#allocation6], 0
    %16 = vsyncpa [#allocation9], 0
    %17 = vsyncpa [#allocation4], 0
    // Predicated region
    $region2: #{tpu_custom_call.1} parent=1 // pred_check
      _
    $region3: #{tpu_custom_call.1} parent=1 // pred_check_branch
      %19 = sbr.rel (0) target = $region5
    $region4: #{tpu_custom_call.1} parent=1 // pred_region
      %s21 = ssub.s32 2048, 2048
      %22 = vsyncadd [#allocation3], %s21
      %s23 = sshll.u32 [#allocation2], 4
      %s24 = int_to_ptr.vmem [resolvable:$true] %s23
      %29 = dma.hbm_to_vmem [thread:$0]  %s0, 2048, %s24, [#allocation3], 128, 128, 8
    $region5: #{tpu_custom_call.1} parent=1 // pred_fallthru
      _
    // Predicated region
    $region6: #{tpu_custom_call.1} parent=1 // pred_check
      _
    $region7: #{tpu_custom_call.1} parent=1 // pred_check_branch
      %31 = sbr.rel (0) target = $region9
    $region8: #{tpu_custom_call.1} parent=1 // pred_region
      %s33 = ssub.s32 8192, 8192
      %34 = vsyncadd [#allocation6], %s33
      %s35 = sshll.u32 [#allocation5], 4
      %s36 = int_to_ptr.vmem [resolvable:$true] %s35
      %41 = dma.hbm_to_vmem [thread:$0]  %s1, 8192, %s36, [#allocation6], 512, 512, 32
    $region9: #{tpu_custom_call.1} parent=1 // pred_fallthru
      _
    // Predicated region
    $region10: #{tpu_custom_call.1} parent=1 // pred_check
      _
    $region11: #{tpu_custom_call.1} parent=1 // pred_check_branch
      %43 = sbr.rel (0) target = $region13
    $region12: #{tpu_custom_call.1} parent=1 // pred_region
      _
    $region13: #{tpu_custom_call.1} parent=1 // pred_fallthru
      _
    // Predicated region
    $region14: #{tpu_custom_call.1} parent=1 // pred_check
      _
    $region15: #{tpu_custom_call.1} parent=1 // pred_check_branch
      %45 = sbr.rel (0) target = $region17
    $region16: #{tpu_custom_call.1} parent=1 // pred_region
      %s47 = ssub.s32 32768, 32768
      %48 = vsyncadd [#allocation6], %s47
      %s49 = sshll.u32 [#allocation7], 4
      %s50 = int_to_ptr.vmem [resolvable:$true] %s49
      %55 = dma.hbm_to_vmem [thread:$0]  %s3, 32768, %s50, [#allocation6], 512, 512, 32
    $region17: #{tpu_custom_call.1} parent=1 // pred_fallthru
      _
    // Predicated region
    $region18: #{tpu_custom_call.1} parent=1 // pred_check
      _
    $region19: #{tpu_custom_call.1} parent=1 // pred_check_branch
      %57 = sbr.rel (0) target = $region21
    $region20: #{tpu_custom_call.1} parent=1 // pred_region
      _
    $region21: #{tpu_custom_call.1} parent=1 // pred_fallthru
      _
    // Predicated region
    $region22: #{tpu_custom_call.1} parent=1 // pred_check
      _
    $region23: #{tpu_custom_call.1} parent=1 // pred_check_branch
      %59 = sbr.rel (0) target = $region25
    $region24: #{tpu_custom_call.1} parent=1 // pred_region
      %s61 = ssub.s32 4096, 4096
      %62 = vsyncadd [#allocation9], %s61
      %s63 = sshll.u32 [#allocation8], 4
      %s64 = int_to_ptr.vmem [resolvable:$true] %s63
      %69 = dma.hbm_to_vmem [thread:$0]  %s5, 4096, %s64, [#allocation9], 64, 64, 4
    $region25: #{tpu_custom_call.1} parent=1 // pred_fallthru
      _
    // Predicated region
    $region26: #{tpu_custom_call.1} parent=1 // pred_check
      _
    $region27: #{tpu_custom_call.1} parent=1 // pred_check_branch
      %71 = sbr.rel (0) target = $region29
    $region28: #{tpu_custom_call.1} parent=1 // pred_region
      _
    $region29: #{tpu_custom_call.1} parent=1 // pred_fallthru
      _
    // Predicated region
    $region30: #{tpu_custom_call.1} parent=1 // pred_check
      _
    $region31: #{tpu_custom_call.1} parent=1 // pred_check_branch
      %73 = sbr.rel (0) target = $region33
    $region32: #{tpu_custom_call.1} parent=1 // pred_region
      %s75 = ssub.s32 1024, 1024
      %76 = vsyncadd [#allocation9], %s75
      %s77 = sshll.u32 [#allocation10], 4
      %s78 = int_to_ptr.vmem [resolvable:$true] %s77
      %83 = dma.hbm_to_vmem [thread:$0]  %s7, 1024, %s78, [#allocation9], 64, 64, 4
    $region33: #{tpu_custom_call.1} parent=1 // pred_fallthru
      _
    // Predicated region
    $region34: #{tpu_custom_call.1} parent=1 // pred_check
      _
    $region35: #{tpu_custom_call.1} parent=1 // pred_check_branch
      %85 = sbr.rel (0) target = $region37
    $region36: #{tpu_custom_call.1} parent=1 // pred_region
      _
    $region37: #{tpu_custom_call.1} parent=1 // pred_fallthru
      _
    // Predicated region
    $region38: #{tpu_custom_call.1} parent=1 // pred_check
      _
    $region39: #{tpu_custom_call.1} parent=1 // pred_check_branch
      %87 = sbr.rel (0) target = $region41
    $region40: #{tpu_custom_call.1} parent=1 // pred_region
      %88 = dma.done [#allocation3], 2048
    $region41: #{tpu_custom_call.1} parent=1 // pred_fallthru
      _
    // Predicated region
    $region42: #{tpu_custom_call.1} parent=1 // pred_check
      _
    $region43: #{tpu_custom_call.1} parent=1 // pred_check_branch
      %90 = sbr.rel (0) target = $region45
    $region44: #{tpu_custom_call.1} parent=1 // pred_region
      %91 = dma.done [#allocation6], 8192
    $region45: #{tpu_custom_call.1} parent=1 // pred_fallthru
      _
    // Predicated region
    $region46: #{tpu_custom_call.1} parent=1 // pred_check
      _
    $region47: #{tpu_custom_call.1} parent=1 // pred_check_branch
      %93 = sbr.rel (0) target = $region49
    $region48: #{tpu_custom_call.1} parent=1 // pred_region
      %94 = dma.done [#allocation6], 32768
    $region49: #{tpu_custom_call.1} parent=1 // pred_fallthru
      _
    // Predicated region
    $region50: #{tpu_custom_call.1} parent=1 // pred_check
      _
    $region51: #{tpu_custom_call.1} parent=1 // pred_check_branch
      %96 = sbr.rel (0) target = $region53
    $region52: #{tpu_custom_call.1} parent=1 // pred_region
      %97 = dma.done [#allocation9], 4096
    $region53: #{tpu_custom_call.1} parent=1 // pred_fallthru
      _
    // Predicated region
    $region54: #{tpu_custom_call.1} parent=1 // pred_check
      _
    $region55: #{tpu_custom_call.1} parent=1 // pred_check_branch
      %99 = sbr.rel (0) target = $region57
    $region56: #{tpu_custom_call.1} parent=1 // pred_region
      %100 = dma.done [#allocation9], 1024
    $region57: #{tpu_custom_call.1} parent=1 // pred_fallthru
      _
    %v102 = vld [vmem:[#allocation2] sm:$0xff]
    %v103 = vld [vmem:[#allocation2 + $0x8] sm:$0xff]
    %v104 = vld [vmem:[#allocation2 + $0x10] sm:$0xff]
    %v105 = vld [vmem:[#allocation2 + $0x18] sm:$0xff]
    %v106 = vld [vmem:[#allocation2 + $0x20] sm:$0xff]
    %v107 = vld [vmem:[#allocation2 + $0x28] sm:$0xff]
    %v108 = vld [vmem:[#allocation2 + $0x30] sm:$0xff]
    %v109 = vld [vmem:[#allocation2 + $0x38] sm:$0xff]
    %v110 = vld [vmem:[#allocation2 + $0x40] sm:$0xff]
    %v111 = vld [vmem:[#allocation2 + $0x48] sm:$0xff]
    %v112 = vld [vmem:[#allocation2 + $0x50] sm:$0xff]
    %v113 = vld [vmem:[#allocation2 + $0x58] sm:$0xff]
    %v114 = vld [vmem:[#allocation2 + $0x60] sm:$0xff]
    %v115 = vld [vmem:[#allocation2 + $0x68] sm:$0xff]
    %v116 = vld [vmem:[#allocation2 + $0x70] sm:$0xff]
    %v117 = vld [vmem:[#allocation2 + $0x78] sm:$0xff]
    %v118 = vpack.c.bf16 %v103, %v102
    %v119 = vpack.c.bf16 %v105, %v104
    %v120 = vpack.c.bf16 %v107, %v106
    %v121 = vpack.c.bf16 %v109, %v108
    %v122 = vpack.c.bf16 %v111, %v110
    %v123 = vpack.c.bf16 %v113, %v112
    %v124 = vpack.c.bf16 %v115, %v114
    %v125 = vpack.c.bf16 %v117, %v116
    %v126 = vld [vmem:[#allocation5] sm:$0xff]
    %v127 = vld [vmem:[#allocation5 + $0x8] sm:$0xff]
    %v128 = vld [vmem:[#allocation5 + $0x10] sm:$0xff]
    %v129 = vld [vmem:[#allocation5 + $0x18] sm:$0xff]
    %v130 = vld [vmem:[#allocation5 + $0x20] sm:$0xff]
    %v131 = vld [vmem:[#allocation5 + $0x28] sm:$0xff]
    %v132 = vld [vmem:[#allocation5 + $0x30] sm:$0xff]
    %v133 = vld [vmem:[#allocation5 + $0x38] sm:$0xff]
    %v134 = vld [vmem:[#allocation5 + $0x40] sm:$0xff]
    %v135 = vld [vmem:[#allocation5 + $0x48] sm:$0xff]
    %v136 = vld [vmem:[#allocation5 + $0x50] sm:$0xff]
    %v137 = vld [vmem:[#allocation5 + $0x58] sm:$0xff]
    %v138 = vld [vmem:[#allocation5 + $0x60] sm:$0xff]
    %v139 = vld [vmem:[#allocation5 + $0x68] sm:$0xff]
    %v140 = vld [vmem:[#allocation5 + $0x70] sm:$0xff]
    %v141 = vld [vmem:[#allocation5 + $0x78] sm:$0xff]
    %v142 = vld [vmem:[#allocation5 + $0x80] sm:$0xff]
    %v143 = vld [vmem:[#allocation5 + $0x88] sm:$0xff]
    %v144 = vld [vmem:[#allocation5 + $0x90] sm:$0xff]
    %v145 = vld [vmem:[#allocation5 + $0x98] sm:$0xff]
    %v146 = vld [vmem:[#allocation5 + $0xa0] sm:$0xff]
    %v147 = vld [vmem:[#allocation5 + $0xa8] sm:$0xff]
    %v148 = vld [vmem:[#allocation5 + $0xb0] sm:$0xff]
    %v149 = vld [vmem:[#allocation5 + $0xb8] sm:$0xff]
    %v150 = vld [vmem:[#allocation5 + $0xc0] sm:$0xff]
    %v151 = vld [vmem:[#allocation5 + $0xc8] sm:$0xff]
    %v152 = vld [vmem:[#allocation5 + $0xd0] sm:$0xff]
    %v153 = vld [vmem:[#allocation5 + $0xd8] sm:$0xff]
    %v154 = vld [vmem:[#allocation5 + $0xe0] sm:$0xff]
    %v155 = vld [vmem:[#allocation5 + $0xe8] sm:$0xff]
    %v156 = vld [vmem:[#allocation5 + $0xf0] sm:$0xff]
    %v157 = vld [vmem:[#allocation5 + $0xf8] sm:$0xff]
    %v158 = vld [vmem:[#allocation5 + $0x100] sm:$0xff]
    %v159 = vld [vmem:[#allocation5 + $0x108] sm:$0xff]
    %v160 = vld [vmem:[#allocation5 + $0x110] sm:$0xff]
    %v161 = vld [vmem:[#allocation5 + $0x118] sm:$0xff]
    %v162 = vld [vmem:[#allocation5 + $0x120] sm:$0xff]
    %v163 = vld [vmem:[#allocation5 + $0x128] sm:$0xff]
    %v164 = vld [vmem:[#allocation5 + $0x130] sm:$0xff]
    %v165 = vld [vmem:[#allocation5 + $0x138] sm:$0xff]
    %v166 = vld [vmem:[#allocation5 + $0x140] sm:$0xff]
    %v167 = vld [vmem:[#allocation5 + $0x148] sm:$0xff]
    %v168 = vld [vmem:[#allocation5 + $0x150] sm:$0xff]
    %v169 = vld [vmem:[#allocation5 + $0x158] sm:$0xff]
    %v170 = vld [vmem:[#allocation5 + $0x160] sm:$0xff]
    %v171 = vld [vmem:[#allocation5 + $0x168] sm:$0xff]
    %v172 = vld [vmem:[#allocation5 + $0x170] sm:$0xff]
    %v173 = vld [vmem:[#allocation5 + $0x178] sm:$0xff]
    %v174 = vld [vmem:[#allocation5 + $0x180] sm:$0xff]
    %v175 = vld [vmem:[#allocation5 + $0x188] sm:$0xff]
    %v176 = vld [vmem:[#allocation5 + $0x190] sm:$0xff]
    %v177 = vld [vmem:[#allocation5 + $0x198] sm:$0xff]
    %v178 = vld [vmem:[#allocation5 + $0x1a0] sm:$0xff]
    %v179 = vld [vmem:[#allocation5 + $0x1a8] sm:$0xff]
    %v180 = vld [vmem:[#allocation5 + $0x1b0] sm:$0xff]
    %v181 = vld [vmem:[#allocation5 + $0x1b8] sm:$0xff]
    %v182 = vld [vmem:[#allocation5 + $0x1c0] sm:$0xff]
    %v183 = vld [vmem:[#allocation5 + $0x1c8] sm:$0xff]
    %v184 = vld [vmem:[#allocation5 + $0x1d0] sm:$0xff]
    %v185 = vld [vmem:[#allocation5 + $0x1d8] sm:$0xff]
    %v186 = vld [vmem:[#allocation5 + $0x1e0] sm:$0xff]
    %v187 = vld [vmem:[#allocation5 + $0x1e8] sm:$0xff]
    %v188 = vld [vmem:[#allocation5 + $0x1f0] sm:$0xff]
    %v189 = vld [vmem:[#allocation5 + $0x1f8] sm:$0xff]
    %v254 = vunpack.c.l.b16 %v126
    %v255 = vunpack.c.h.b16 %v126
    %v256 = vunpack.c.l.b16 %v127
    %v257 = vunpack.c.h.b16 %v127
    %v258 = vunpack.c.l.b16 %v128
    %v259 = vunpack.c.h.b16 %v128
    %v260 = vunpack.c.l.b16 %v129
    %v261 = vunpack.c.h.b16 %v129
    %v262 = vunpack.c.l.b16 %v130
    %v263 = vunpack.c.h.b16 %v130
    %v264 = vunpack.c.l.b16 %v131
    %v265 = vunpack.c.h.b16 %v131
    %v266 = vunpack.c.l.b16 %v132
    %v267 = vunpack.c.h.b16 %v132
    %v268 = vunpack.c.l.b16 %v133
    %v269 = vunpack.c.h.b16 %v133
    %v270 = vunpack.c.l.b16 %v134
    %v271 = vunpack.c.h.b16 %v134
    %v272 = vunpack.c.l.b16 %v135
    %v273 = vunpack.c.h.b16 %v135
    %v274 = vunpack.c.l.b16 %v136
    %v275 = vunpack.c.h.b16 %v136
    %v276 = vunpack.c.l.b16 %v137
    %v277 = vunpack.c.h.b16 %v137
    %v278 = vunpack.c.l.b16 %v138
    %v279 = vunpack.c.h.b16 %v138
    %v280 = vunpack.c.l.b16 %v139
    %v281 = vunpack.c.h.b16 %v139
    %v282 = vunpack.c.l.b16 %v140
    %v283 = vunpack.c.h.b16 %v140
    %v284 = vunpack.c.l.b16 %v141
    %v285 = vunpack.c.h.b16 %v141
    %v286 = vunpack.c.l.b16 %v142
    %v287 = vunpack.c.h.b16 %v142
    %v288 = vunpack.c.l.b16 %v143
    %v289 = vunpack.c.h.b16 %v143
    %v290 = vunpack.c.l.b16 %v144
    %v291 = vunpack.c.h.b16 %v144
    %v292 = vunpack.c.l.b16 %v145
    %v293 = vunpack.c.h.b16 %v145
    %v294 = vunpack.c.l.b16 %v146
    %v295 = vunpack.c.h.b16 %v146
    %v296 = vunpack.c.l.b16 %v147
    %v297 = vunpack.c.h.b16 %v147
    %v298 = vunpack.c.l.b16 %v148
    %v299 = vunpack.c.h.b16 %v148
    %v300 = vunpack.c.l.b16 %v149
    %v301 = vunpack.c.h.b16 %v149
    %v302 = vunpack.c.l.b16 %v150
    %v303 = vunpack.c.h.b16 %v150
    %v304 = vunpack.c.l.b16 %v151
    %v305 = vunpack.c.h.b16 %v151
    %v306 = vunpack.c.l.b16 %v152
    %v307 = vunpack.c.h.b16 %v152
    %v308 = vunpack.c.l.b16 %v153
    %v309 = vunpack.c.h.b16 %v153
    %v310 = vunpack.c.l.b16 %v154
    %v311 = vunpack.c.h.b16 %v154
    %v312 = vunpack.c.l.b16 %v155
    %v313 = vunpack.c.h.b16 %v155
    %v314 = vunpack.c.l.b16 %v156
    %v315 = vunpack.c.h.b16 %v156
    %v316 = vunpack.c.l.b16 %v157
    %v317 = vunpack.c.h.b16 %v157
    %v318 = vunpack.c.l.b16 %v158
    %v319 = vunpack.c.h.b16 %v158
    %v320 = vunpack.c.l.b16 %v159
    %v321 = vunpack.c.h.b16 %v159
    %v322 = vunpack.c.l.b16 %v160
    %v323 = vunpack.c.h.b16 %v160
    %v324 = vunpack.c.l.b16 %v161
    %v325 = vunpack.c.h.b16 %v161
    %v326 = vunpack.c.l.b16 %v162
    %v327 = vunpack.c.h.b16 %v162
    %v328 = vunpack.c.l.b16 %v163
    %v329 = vunpack.c.h.b16 %v163
    %v330 = vunpack.c.l.b16 %v164
    %v331 = vunpack.c.h.b16 %v164
    %v332 = vunpack.c.l.b16 %v165
    %v333 = vunpack.c.h.b16 %v165
    %v334 = vunpack.c.l.b16 %v166
    %v335 = vunpack.c.h.b16 %v166
    %v336 = vunpack.c.l.b16 %v167
    %v337 = vunpack.c.h.b16 %v167
    %v338 = vunpack.c.l.b16 %v168
    %v339 = vunpack.c.h.b16 %v168
    %v340 = vunpack.c.l.b16 %v169
    %v341 = vunpack.c.h.b16 %v169
    %v342 = vunpack.c.l.b16 %v170
    %v343 = vunpack.c.h.b16 %v170
    %v344 = vunpack.c.l.b16 %v171
    %v345 = vunpack.c.h.b16 %v171
    %v346 = vunpack.c.l.b16 %v172
    %v347 = vunpack.c.h.b16 %v172
    %v348 = vunpack.c.l.b16 %v173
    %v349 = vunpack.c.h.b16 %v173
    %v350 = vunpack.c.l.b16 %v174
    %v351 = vunpack.c.h.b16 %v174
    %v352 = vunpack.c.l.b16 %v175
    %v353 = vunpack.c.h.b16 %v175
    %v354 = vunpack.c.l.b16 %v176
    %v355 = vunpack.c.h.b16 %v176
    %v356 = vunpack.c.l.b16 %v177
    %v357 = vunpack.c.h.b16 %v177
    %v358 = vunpack.c.l.b16 %v178
    %v359 = vunpack.c.h.b16 %v178
    %v360 = vunpack.c.l.b16 %v179
    %v361 = vunpack.c.h.b16 %v179
    %v362 = vunpack.c.l.b16 %v180
    %v363 = vunpack.c.h.b16 %v180
    %v364 = vunpack.c.l.b16 %v181
    %v365 = vunpack.c.h.b16 %v181
    %v366 = vunpack.c.l.b16 %v182
    %v367 = vunpack.c.h.b16 %v182
    %v368 = vunpack.c.l.b16 %v183
    %v369 = vunpack.c.h.b16 %v183
    %v370 = vunpack.c.l.b16 %v184
    %v371 = vunpack.c.h.b16 %v184
    %v372 = vunpack.c.l.b16 %v185
    %v373 = vunpack.c.h.b16 %v185
    %v374 = vunpack.c.l.b16 %v186
    %v375 = vunpack.c.h.b16 %v186
    %v376 = vunpack.c.l.b16 %v187
    %v377 = vunpack.c.h.b16 %v187
    %v378 = vunpack.c.l.b16 %v188
    %v379 = vunpack.c.h.b16 %v188
    %v380 = vunpack.c.l.b16 %v189
    %v381 = vunpack.c.h.b16 %v189
    %v382 = vpack.c.b16 %v262, %v254
    %v383 = vpack.c.b16 %v263, %v255
    %v384 = vpack.c.b16 %v264, %v256
    %v385 = vpack.c.b16 %v265, %v257
    %v386 = vpack.c.b16 %v266, %v258
    %v387 = vpack.c.b16 %v267, %v259
    %v388 = vpack.c.b16 %v268, %v260
    %v389 = vpack.c.b16 %v269, %v261
    %v390 = vpack.c.b16 %v278, %v270
    %v391 = vpack.c.b16 %v279, %v271
    %v392 = vpack.c.b16 %v280, %v272
    %v393 = vpack.c.b16 %v281, %v273
    %v394 = vpack.c.b16 %v282, %v274
    %v395 = vpack.c.b16 %v283, %v275
    %v396 = vpack.c.b16 %v284, %v276
    %v397 = vpack.c.b16 %v285, %v277
    %v398 = vpack.c.b16 %v294, %v286
    %v399 = vpack.c.b16 %v295, %v287
    %v400 = vpack.c.b16 %v296, %v288
    %v401 = vpack.c.b16 %v297, %v289
    %v402 = vpack.c.b16 %v298, %v290
    %v403 = vpack.c.b16 %v299, %v291
    %v404 = vpack.c.b16 %v300, %v292
    %v405 = vpack.c.b16 %v301, %v293
    %v406 = vpack.c.b16 %v310, %v302
    %v407 = vpack.c.b16 %v311, %v303
    %v408 = vpack.c.b16 %v312, %v304
    %v409 = vpack.c.b16 %v313, %v305
    %v410 = vpack.c.b16 %v314, %v306
    %v411 = vpack.c.b16 %v315, %v307
    %v412 = vpack.c.b16 %v316, %v308
    %v413 = vpack.c.b16 %v317, %v309
    %v414 = vpack.c.b16 %v326, %v318
    %v415 = vpack.c.b16 %v327, %v319
    %v416 = vpack.c.b16 %v328, %v320
    %v417 = vpack.c.b16 %v329, %v321
    %v418 = vpack.c.b16 %v330, %v322
    %v419 = vpack.c.b16 %v331, %v323
    %v420 = vpack.c.b16 %v332, %v324
    %v421 = vpack.c.b16 %v333, %v325
    %v422 = vpack.c.b16 %v342, %v334
    %v423 = vpack.c.b16 %v343, %v335
    %v424 = vpack.c.b16 %v344, %v336
    %v425 = vpack.c.b16 %v345, %v337
    %v426 = vpack.c.b16 %v346, %v338
    %v427 = vpack.c.b16 %v347, %v339
    %v428 = vpack.c.b16 %v348, %v340
    %v429 = vpack.c.b16 %v349, %v341
    %v430 = vpack.c.b16 %v358, %v350
    %v431 = vpack.c.b16 %v359, %v351
    %v432 = vpack.c.b16 %v360, %v352
    %v433 = vpack.c.b16 %v361, %v353
    %v434 = vpack.c.b16 %v362, %v354
    %v435 = vpack.c.b16 %v363, %v355
    %v436 = vpack.c.b16 %v364, %v356
    %v437 = vpack.c.b16 %v365, %v357
    %v438 = vpack.c.b16 %v374, %v366
    %v439 = vpack.c.b16 %v375, %v367
    %v440 = vpack.c.b16 %v376, %v368
    %v441 = vpack.c.b16 %v377, %v369
    %v442 = vpack.c.b16 %v378, %v370
    %v443 = vpack.c.b16 %v379, %v371
    %v444 = vpack.c.b16 %v380, %v372
    %v445 = vpack.c.b16 %v381, %v373
    %510 = vmatprep.subr.bf16.mxu0 %v383
    %511 = vmatpush1.bf16.msra.mxu0 %v382
    %512 = vmatprep.subr.bf16.mxu0 %v391
    %513 = vmatpush1.bf16.msra.mxu0 %v390
    %514 = vmatprep.subr.bf16.mxu0 %v399
    %515 = vmatpush1.bf16.msra.mxu0 %v398
    %516 = vmatprep.subr.bf16.mxu0 %v407
    %517 = vmatpush1.bf16.msra.mxu0 %v406
    %518 = vmatprep.subr.bf16.mxu0 %v415
    %519 = vmatpush1.bf16.msra.mxu0 %v414
    %520 = vmatprep.subr.bf16.mxu0 %v423
    %521 = vmatpush1.bf16.msra.mxu0 %v422
    %522 = vmatprep.subr.bf16.mxu0 %v431
    %523 = vmatpush1.bf16.msra.mxu0 %v430
    %524 = vmatprep.subr.bf16.mxu0 %v439
    %525 = vmatpush1.bf16.msra.mxu0 %v438
    %526 = vmatprep.subr.bf16.mxu0 0
    %527 = vmatpush1.bf16.msra.mxu0 0
    %528 = vmatprep.subr.bf16.mxu0 0
    %529 = vmatpush1.bf16.msra.mxu0 0
    %530 = vmatprep.subr.bf16.mxu0 0
    %531 = vmatpush1.bf16.msra.mxu0 0
    %532 = vmatprep.subr.bf16.mxu0 0
    %533 = vmatpush1.bf16.msra.mxu0 0
    %534 = vmatprep.subr.bf16.mxu0 0
    %535 = vmatpush1.bf16.msra.mxu0 0
    %536 = vmatprep.subr.bf16.mxu0 0
    %537 = vmatpush1.bf16.msra.mxu0 0
    %538 = vmatprep.subr.bf16.mxu0 0
    %539 = vmatpush1.bf16.msra.mxu0 0
    %540 = vmatprep.subr.bf16.mxu0 0
    %541 = vmatpush1.bf16.msra.mxu0 0
    %542 = vmatprep.mubr.bf16.mxu0 0
    %543 = vmatmul.mubr.bf16.gmra.mrb[0].mxu0 %v118
    %v544 = vpop.f32.mrb[0].mxu0
    %v545 = vadd.f32 0.0, %v544
    %v546 = vpop.f32.mrb[0].mxu0
    %v547 = vadd.f32 0.0, %v546
    %v548 = vpop.f32.mrb[0].mxu0
    %v549 = vadd.f32 0.0, %v548
    %v550 = vpop.f32.mrb[0].mxu0
    %v551 = vadd.f32 0.0, %v550
    %552 = vmatprep.mubr.bf16.mxu0 0
    %553 = vmatmul.mubr.bf16.gmra.mrb[0].mxu0 %v119
    %v554 = vpop.f32.mrb[0].mxu0
    %v555 = vadd.f32 0.0, %v554
    %v556 = vpop.f32.mrb[0].mxu0
    %v557 = vadd.f32 0.0, %v556
    %v558 = vpop.f32.mrb[0].mxu0
    %v559 = vadd.f32 0.0, %v558
    %v560 = vpop.f32.mrb[0].mxu0
    %v561 = vadd.f32 0.0, %v560
    %562 = vmatprep.mubr.bf16.mxu0 0
    %563 = vmatmul.mubr.bf16.gmra.mrb[0].mxu0 %v120
    %v564 = vpop.f32.mrb[0].mxu0
    %v565 = vadd.f32 0.0, %v564
    %v566 = vpop.f32.mrb[0].mxu0
    %v567 = vadd.f32 0.0, %v566
    %v568 = vpop.f32.mrb[0].mxu0
    %v569 = vadd.f32 0.0, %v568
    %v570 = vpop.f32.mrb[0].mxu0
    %v571 = vadd.f32 0.0, %v570
    %572 = vmatprep.mubr.bf16.mxu0 0
    %573 = vmatmul.mubr.bf16.gmra.mrb[0].mxu0 %v121
    %v574 = vpop.f32.mrb[0].mxu0
    %v575 = vadd.f32 0.0, %v574
    %v576 = vpop.f32.mrb[0].mxu0
    %v577 = vadd.f32 0.0, %v576
    %v578 = vpop.f32.mrb[0].mxu0
    %v579 = vadd.f32 0.0, %v578
    %v580 = vpop.f32.mrb[0].mxu0
    %v581 = vadd.f32 0.0, %v580
    %582 = vmatprep.mubr.bf16.mxu0 0
    %583 = vmatmul.mubr.bf16.gmra.mrb[0].mxu0 %v122
    %v584 = vpop.f32.mrb[0].mxu0
    %v585 = vadd.f32 0.0, %v584
    %v586 = vpop.f32.mrb[0].mxu0
    %v587 = vadd.f32 0.0, %v586
    %v588 = vpop.f32.mrb[0].mxu0
    %v589 = vadd.f32 0.0, %v588
    %v590 = vpop.f32.mrb[0].mxu0
    %v591 = vadd.f32 0.0, %v590
    %592 = vmatprep.mubr.bf16.mxu0 0
    %593 = vmatmul.mubr.bf16.gmra.mrb[0].mxu0 %v123
    %v594 = vpop.f32.mrb[0].mxu0
    %v595 = vadd.f32 0.0, %v594
    %v596 = vpop.f32.mrb[0].mxu0
    %v597 = vadd.f32 0.0, %v596
    %v598 = vpop.f32.mrb[0].mxu0
    %v599 = vadd.f32 0.0, %v598
    %v600 = vpop.f32.mrb[0].mxu0
    %v601 = vadd.f32 0.0, %v600
    %602 = vmatprep.mubr.bf16.mxu0 0
    %603 = vmatmul.mubr.bf16.gmra.mrb[0].mxu0 %v124
    %v604 = vpop.f32.mrb[0].mxu0
    %v605 = vadd.f32 0.0, %v604
    %v606 = vpop.f32.mrb[0].mxu0
    %v607 = vadd.f32 0.0, %v606
    %v608 = vpop.f32.mrb[0].mxu0
    %v609 = vadd.f32 0.0, %v608
    %v610 = vpop.f32.mrb[0].mxu0
    %v611 = vadd.f32 0.0, %v610
    %612 = vmatprep.mubr.bf16.mxu0 0
    %613 = vmatmul.mubr.bf16.gmra.mrb[0].mxu0 %v125
    %v614 = vpop.f32.mrb[0].mxu0
    %v615 = vadd.f32 0.0, %v614
    %v616 = vpop.f32.mrb[0].mxu0
    %v617 = vadd.f32 0.0, %v616
    %v618 = vpop.f32.mrb[0].mxu0
    %v619 = vadd.f32 0.0, %v618
    %v620 = vpop.f32.mrb[0].mxu0
    %v621 = vadd.f32 0.0, %v620
    %622 = vdwg.mxu0
    %623 = vmatprep.subr.bf16.mxu0 %v385
    %624 = vmatpush1.bf16.msra.mxu0 %v384
    %625 = vmatprep.subr.bf16.mxu0 %v393
    %626 = vmatpush1.bf16.msra.mxu0 %v392
    %627 = vmatprep.subr.bf16.mxu0 %v401
    %628 = vmatpush1.bf16.msra.mxu0 %v400
    %629 = vmatprep.subr.bf16.mxu0 %v409
    %630 = vmatpush1.bf16.msra.mxu0 %v408
    %631 = vmatprep.subr.bf16.mxu0 %v417
    %632 = vmatpush1.bf16.msra.mxu0 %v416
    %633 = vmatprep.subr.bf16.mxu0 %v425
    %634 = vmatpush1.bf16.msra.mxu0 %v424
    %635 = vmatprep.subr.bf16.mxu0 %v433
    %636 = vmatpush1.bf16.msra.mxu0 %v432
    %637 = vmatprep.subr.bf16.mxu0 %v441
    %638 = vmatpush1.bf16.msra.mxu0 %v440
    %639 = vmatprep.subr.bf16.mxu0 0
    %640 = vmatpush1.bf16.msra.mxu0 0
    %641 = vmatprep.subr.bf16.mxu0 0
    %642 = vmatpush1.bf16.msra.mxu0 0
    %643 = vmatprep.subr.bf16.mxu0 0
    %644 = vmatpush1.bf16.msra.mxu0 0
    %645 = vmatprep.subr.bf16.mxu0 0
    %646 = vmatpush1.bf16.msra.mxu0 0
    %647 = vmatprep.subr.bf16.mxu0 0
    %648 = vmatpush1.bf16.msra.mxu0 0
    %649 = vmatprep.subr.bf16.mxu0 0
    %650 = vmatpush1.bf16.msra.mxu0 0
    %651 = vmatprep.subr.bf16.mxu0 0
    %652 = vmatpush1.bf16.msra.mxu0 0
    %653 = vmatprep.subr.bf16.mxu0 0
    %654 = vmatpush1.bf16.msra.mxu0 0
    %655 = vmatprep.mubr.bf16.mxu0 0
    %656 = vmatmul.mubr.bf16.gmra.mrb[0].mxu0 %v118
    %v657 = vpop.f32.mrb[0].mxu0
    %v658 = vadd.f32 0.0, %v657
    %v659 = vpop.f32.mrb[0].mxu0
    %v660 = vadd.f32 0.0, %v659
    %v661 = vpop.f32.mrb[0].mxu0
    %v662 = vadd.f32 0.0, %v661
    %v663 = vpop.f32.mrb[0].mxu0
    %v664 = vadd.f32 0.0, %v663
    %665 = vmatprep.mubr.bf16.mxu0 0
    %666 = vmatmul.mubr.bf16.gmra.mrb[0].mxu0 %v119
    %v667 = vpop.f32.mrb[0].mxu0
    %v668 = vadd.f32 0.0, %v667
    %v669 = vpop.f32.mrb[0].mxu0
    %v670 = vadd.f32 0.0, %v669
    %v671 = vpop.f32.mrb[0].mxu0
    %v672 = vadd.f32 0.0, %v671
    %v673 = vpop.f32.mrb[0].mxu0
    %v674 = vadd.f32 0.0, %v673
    %675 = vmatprep.mubr.bf16.mxu0 0
    %676 = vmatmul.mubr.bf16.gmra.mrb[0].mxu0 %v120
    %v677 = vpop.f32.mrb[0].mxu0
    %v678 = vadd.f32 0.0, %v677
    %v679 = vpop.f32.mrb[0].mxu0
    %v680 = vadd.f32 0.0, %v679
    %v681 = vpop.f32.mrb[0].mxu0
    %v682 = vadd.f32 0.0, %v681
    %v683 = vpop.f32.mrb[0].mxu0
    %v684 = vadd.f32 0.0, %v683
    %685 = vmatprep.mubr.bf16.mxu0 0
    %686 = vmatmul.mubr.bf16.gmra.mrb[0].mxu0 %v121
    %v687 = vpop.f32.mrb[0].mxu0
    %v688 = vadd.f32 0.0, %v687
    %v689 = vpop.f32.mrb[0].mxu0
    %v690 = vadd.f32 0.0, %v689
    %v691 = vpop.f32.mrb[0].mxu0
    %v692 = vadd.f32 0.0, %v691
    %v693 = vpop.f32.mrb[0].mxu0
    %v694 = vadd.f32 0.0, %v693
    %695 = vmatprep.mubr.bf16.mxu0 0
    %696 = vmatmul.mubr.bf16.gmra.mrb[0].mxu0 %v122
    %v697 = vpop.f32.mrb[0].mxu0
    %v698 = vadd.f32 0.0, %v697
    %v699 = vpop.f32.mrb[0].mxu0
    %v700 = vadd.f32 0.0, %v699
    %v701 = vpop.f32.mrb[0].mxu0
    %v702 = vadd.f32 0.0, %v701
    %v703 = vpop.f32.mrb[0].mxu0
    %v704 = vadd.f32 0.0, %v703
    %705 = vmatprep.mubr.bf16.mxu0 0
    %706 = vmatmul.mubr.bf16.gmra.mrb[0].mxu0 %v123
    %v707 = vpop.f32.mrb[0].mxu0
    %v708 = vadd.f32 0.0, %v707
    %v709 = vpop.f32.mrb[0].mxu0
    %v710 = vadd.f32 0.0, %v709
    %v711 = vpop.f32.mrb[0].mxu0
    %v712 = vadd.f32 0.0, %v711
    %v713 = vpop.f32.mrb[0].mxu0
    %v714 = vadd.f32 0.0, %v713
    %715 = vmatprep.mubr.bf16.mxu0 0
    %716 = vmatmul.mubr.bf16.gmra.mrb[0].mxu0 %v124
    %v717 = vpop.f32.mrb[0].mxu0
    %v718 = vadd.f32 0.0, %v717
    %v719 = vpop.f32.mrb[0].mxu0
    %v720 = vadd.f32 0.0, %v719
    %v721 = vpop.f32.mrb[0].mxu0
    %v722 = vadd.f32 0.0, %v721
    %v723 = vpop.f32.mrb[0].mxu0
    %v724 = vadd.f32 0.0, %v723
    %725 = vmatprep.mubr.bf16.mxu0 0
    %726 = vmatmul.mubr.bf16.gmra.mrb[0].mxu0 %v125
    %v727 = vpop.f32.mrb[0].mxu0
    %v728 = vadd.f32 0.0, %v727
    %v729 = vpop.f32.mrb[0].mxu0
    %v730 = vadd.f32 0.0, %v729
    %v731 = vpop.f32.mrb[0].mxu0
    %v732 = vadd.f32 0.0, %v731
    %v733 = vpop.f32.mrb[0].mxu0
    %v734 = vadd.f32 0.0, %v733
    %735 = vdwg.mxu0
    %736 = vmatprep.subr.bf16.mxu0 %v387
    %737 = vmatpush1.bf16.msra.mxu0 %v386
    %738 = vmatprep.subr.bf16.mxu0 %v395
    %739 = vmatpush1.bf16.msra.mxu0 %v394
    %740 = vmatprep.subr.bf16.mxu0 %v403
    %741 = vmatpush1.bf16.msra.mxu0 %v402
    %742 = vmatprep.subr.bf16.mxu0 %v411
    %743 = vmatpush1.bf16.msra.mxu0 %v410
    %744 = vmatprep.subr.bf16.mxu0 %v419
    %745 = vmatpush1.bf16.msra.mxu0 %v418
    %746 = vmatprep.subr.bf16.mxu0 %v427
    %747 = vmatpush1.bf16.msra.mxu0 %v426
    %748 = vmatprep.subr.bf16.mxu0 %v435
    %749 = vmatpush1.bf16.msra.mxu0 %v434
    %750 = vmatprep.subr.bf16.mxu0 %v443
    %751 = vmatpush1.bf16.msra.mxu0 %v442
    %752 = vmatprep.subr.bf16.mxu0 0
    %753 = vmatpush1.bf16.msra.mxu0 0
    %754 = vmatprep.subr.bf16.mxu0 0
    %755 = vmatpush1.bf16.msra.mxu0 0
    %756 = vmatprep.subr.bf16.mxu0 0
    %757 = vmatpush1.bf16.msra.mxu0 0
    %758 = vmatprep.subr.bf16.mxu0 0
    %759 = vmatpush1.bf16.msra.mxu0 0
    %760 = vmatprep.subr.bf16.mxu0 0
    %761 = vmatpush1.bf16.msra.mxu0 0
    %762 = vmatprep.subr.bf16.mxu0 0
    %763 = vmatpush1.bf16.msra.mxu0 0
    %764 = vmatprep.subr.bf16.mxu0 0
    %765 = vmatpush1.bf16.msra.mxu0 0
    %766 = vmatprep.subr.bf16.mxu0 0
    %767 = vmatpush1.bf16.msra.mxu0 0
    %768 = vmatprep.mubr.bf16.mxu0 0
    %769 = vmatmul.mubr.bf16.gmra.mrb[0].mxu0 %v118
    %v770 = vpop.f32.mrb[0].mxu0
    %v771 = vadd.f32 0.0, %v770
    %v772 = vpop.f32.mrb[0].mxu0
    %v773 = vadd.f32 0.0, %v772
    %v774 = vpop.f32.mrb[0].mxu0
    %v775 = vadd.f32 0.0, %v774
    %v776 = vpop.f32.mrb[0].mxu0
    %v777 = vadd.f32 0.0, %v776
    %778 = vmatprep.mubr.bf16.mxu0 0
    %779 = vmatmul.mubr.bf16.gmra.mrb[0].mxu0 %v119
    %v780 = vpop.f32.mrb[0].mxu0
    %v781 = vadd.f32 0.0, %v780
    %v782 = vpop.f32.mrb[0].mxu0
    %v783 = vadd.f32 0.0, %v782
    %v784 = vpop.f32.mrb[0].mxu0
    %v785 = vadd.f32 0.0, %v784
    %v786 = vpop.f32.mrb[0].mxu0
    %v787 = vadd.f32 0.0, %v786
    %788 = vmatprep.mubr.bf16.mxu0 0
    %789 = vmatmul.mubr.bf16.gmra.mrb[0].mxu0 %v120
    %v790 = vpop.f32.mrb[0].mxu0
    %v791 = vadd.f32 0.0, %v790
    %v792 = vpop.f32.mrb[0].mxu0
    %v793 = vadd.f32 0.0, %v792
    %v794 = vpop.f32.mrb[0].mxu0
    %v795 = vadd.f32 0.0, %v794
    %v796 = vpop.f32.mrb[0].mxu0
    %v797 = vadd.f32 0.0, %v796
    %798 = vmatprep.mubr.bf16.mxu0 0
    %799 = vmatmul.mubr.bf16.gmra.mrb[0].mxu0 %v121
    %v800 = vpop.f32.mrb[0].mxu0
    %v801 = vadd.f32 0.0, %v800
    %v802 = vpop.f32.mrb[0].mxu0
    %v803 = vadd.f32 0.0, %v802
    %v804 = vpop.f32.mrb[0].mxu0
    %v805 = vadd.f32 0.0, %v804
    %v806 = vpop.f32.mrb[0].mxu0
    %v807 = vadd.f32 0.0, %v806
    %808 = vmatprep.mubr.bf16.mxu0 0
    %809 = vmatmul.mubr.bf16.gmra.mrb[0].mxu0 %v122
    %v810 = vpop.f32.mrb[0].mxu0
    %v811 = vadd.f32 0.0, %v810
    %v812 = vpop.f32.mrb[0].mxu0
    %v813 = vadd.f32 0.0, %v812
    %v814 = vpop.f32.mrb[0].mxu0
    %v815 = vadd.f32 0.0, %v814
    %v816 = vpop.f32.mrb[0].mxu0
    %v817 = vadd.f32 0.0, %v816
    %818 = vmatprep.mubr.bf16.mxu0 0
    %819 = vmatmul.mubr.bf16.gmra.mrb[0].mxu0 %v123
    %v820 = vpop.f32.mrb[0].mxu0
    %v821 = vadd.f32 0.0, %v820
    %v822 = vpop.f32.mrb[0].mxu0
    %v823 = vadd.f32 0.0, %v822
    %v824 = vpop.f32.mrb[0].mxu0
    %v825 = vadd.f32 0.0, %v824
    %v826 = vpop.f32.mrb[0].mxu0
    %v827 = vadd.f32 0.0, %v826
    %828 = vmatprep.mubr.bf16.mxu0 0
    %829 = vmatmul.mubr.bf16.gmra.mrb[0].mxu0 %v124
    %v830 = vpop.f32.mrb[0].mxu0
    %v831 = vadd.f32 0.0, %v830
    %v832 = vpop.f32.mrb[0].mxu0
    %v833 = vadd.f32 0.0, %v832
    %v834 = vpop.f32.mrb[0].mxu0
    %v835 = vadd.f32 0.0, %v834
    %v836 = vpop.f32.mrb[0].mxu0
    %v837 = vadd.f32 0.0, %v836
    %838 = vmatprep.mubr.bf16.mxu0 0
    %839 = vmatmul.mubr.bf16.gmra.mrb[0].mxu0 %v125
    %v840 = vpop.f32.mrb[0].mxu0
    %v841 = vadd.f32 0.0, %v840
    %v842 = vpop.f32.mrb[0].mxu0
    %v843 = vadd.f32 0.0, %v842
    %v844 = vpop.f32.mrb[0].mxu0
    %v845 = vadd.f32 0.0, %v844
    %v846 = vpop.f32.mrb[0].mxu0
    %v847 = vadd.f32 0.0, %v846
    %848 = vdwg.mxu0
    %849 = vmatprep.subr.bf16.mxu0 %v389
    %850 = vmatpush1.bf16.msra.mxu0 %v388
    %851 = vmatprep.subr.bf16.mxu0 %v397
    %852 = vmatpush1.bf16.msra.mxu0 %v396
    %853 = vmatprep.subr.bf16.mxu0 %v405
    %854 = vmatpush1.bf16.msra.mxu0 %v404
    %855 = vmatprep.subr.bf16.mxu0 %v413
    %856 = vmatpush1.bf16.msra.mxu0 %v412
    %857 = vmatprep.subr.bf16.mxu0 %v421
    %858 = vmatpush1.bf16.msra.mxu0 %v420
    %859 = vmatprep.subr.bf16.mxu0 %v429
    %860 = vmatpush1.bf16.msra.mxu0 %v428
    %861 = vmatprep.subr.bf16.mxu0 %v437
    %862 = vmatpush1.bf16.msra.mxu0 %v436
    %863 = vmatprep.subr.bf16.mxu0 %v445
    %864 = vmatpush1.bf16.msra.mxu0 %v444
    %865 = vmatprep.subr.bf16.mxu0 0
    %866 = vmatpush1.bf16.msra.mxu0 0
    %867 = vmatprep.subr.bf16.mxu0 0
    %868 = vmatpush1.bf16.msra.mxu0 0
    %869 = vmatprep.subr.bf16.mxu0 0
    %870 = vmatpush1.bf16.msra.mxu0 0
    %871 = vmatprep.subr.bf16.mxu0 0
    %872 = vmatpush1.bf16.msra.mxu0 0
    %873 = vmatprep.subr.bf16.mxu0 0
    %874 = vmatpush1.bf16.msra.mxu0 0
    %875 = vmatprep.subr.bf16.mxu0 0
    %876 = vmatpush1.bf16.msra.mxu0 0
    %877 = vmatprep.subr.bf16.mxu0 0
    %878 = vmatpush1.bf16.msra.mxu0 0
    %879 = vmatprep.subr.bf16.mxu0 0
    %880 = vmatpush1.bf16.msra.mxu0 0
    %881 = vmatprep.mubr.bf16.mxu0 0
    %882 = vmatmul.mubr.bf16.gmra.mrb[0].mxu0 %v118
    %v883 = vpop.f32.mrb[0].mxu0
    %v884 = vadd.f32 0.0, %v883
    %v885 = vpop.f32.mrb[0].mxu0
    %v886 = vadd.f32 0.0, %v885
    %v887 = vpop.f32.mrb[0].mxu0
    %v888 = vadd.f32 0.0, %v887
    %v889 = vpop.f32.mrb[0].mxu0
    %v890 = vadd.f32 0.0, %v889
    %891 = vmatprep.mubr.bf16.mxu0 0
    %892 = vmatmul.mubr.bf16.gmra.mrb[0].mxu0 %v119
    %v893 = vpop.f32.mrb[0].mxu0
    %v894 = vadd.f32 0.0, %v893
    %v895 = vpop.f32.mrb[0].mxu0
    %v896 = vadd.f32 0.0, %v895
    %v897 = vpop.f32.mrb[0].mxu0
    %v898 = vadd.f32 0.0, %v897
    %v899 = vpop.f32.mrb[0].mxu0
    %v900 = vadd.f32 0.0, %v899
    %901 = vmatprep.mubr.bf16.mxu0 0
    %902 = vmatmul.mubr.bf16.gmra.mrb[0].mxu0 %v120
    %v903 = vpop.f32.mrb[0].mxu0
    %v904 = vadd.f32 0.0, %v903
    %v905 = vpop.f32.mrb[0].mxu0
    %v906 = vadd.f32 0.0, %v905
    %v907 = vpop.f32.mrb[0].mxu0
    %v908 = vadd.f32 0.0, %v907
    %v909 = vpop.f32.mrb[0].mxu0
    %v910 = vadd.f32 0.0, %v909
    %911 = vmatprep.mubr.bf16.mxu0 0
    %912 = vmatmul.mubr.bf16.gmra.mrb[0].mxu0 %v121
    %v913 = vpop.f32.mrb[0].mxu0
    %v914 = vadd.f32 0.0, %v913
    %v915 = vpop.f32.mrb[0].mxu0
    %v916 = vadd.f32 0.0, %v915
    %v917 = vpop.f32.mrb[0].mxu0
    %v918 = vadd.f32 0.0, %v917
    %v919 = vpop.f32.mrb[0].mxu0
    %v920 = vadd.f32 0.0, %v919
    %921 = vmatprep.mubr.bf16.mxu0 0
    %922 = vmatmul.mubr.bf16.gmra.mrb[0].mxu0 %v122
    %v923 = vpop.f32.mrb[0].mxu0
    %v924 = vadd.f32 0.0, %v923
    %v925 = vpop.f32.mrb[0].mxu0
    %v926 = vadd.f32 0.0, %v925
    %v927 = vpop.f32.mrb[0].mxu0
    %v928 = vadd.f32 0.0, %v927
    %v929 = vpop.f32.mrb[0].mxu0
    %v930 = vadd.f32 0.0, %v929
    %931 = vmatprep.mubr.bf16.mxu0 0
    %932 = vmatmul.mubr.bf16.gmra.mrb[0].mxu0 %v123
    %v933 = vpop.f32.mrb[0].mxu0
    %v934 = vadd.f32 0.0, %v933
    %v935 = vpop.f32.mrb[0].mxu0
    %v936 = vadd.f32 0.0, %v935
    %v937 = vpop.f32.mrb[0].mxu0
    %v938 = vadd.f32 0.0, %v937
    %v939 = vpop.f32.mrb[0].mxu0
    %v940 = vadd.f32 0.0, %v939
    %941 = vmatprep.mubr.bf16.mxu0 0
    %942 = vmatmul.mubr.bf16.gmra.mrb[0].mxu0 %v124
    %v943 = vpop.f32.mrb[0].mxu0
    %v944 = vadd.f32 0.0, %v943
    %v945 = vpop.f32.mrb[0].mxu0
    %v946 = vadd.f32 0.0, %v945
    %v947 = vpop.f32.mrb[0].mxu0
    %v948 = vadd.f32 0.0, %v947
    %v949 = vpop.f32.mrb[0].mxu0
    %v950 = vadd.f32 0.0, %v949
    %951 = vmatprep.mubr.bf16.mxu0 0
    %952 = vmatmul.mubr.bf16.gmra.mrb[0].mxu0 %v125
    %v953 = vpop.f32.mrb[0].mxu0
    %v954 = vadd.f32 0.0, %v953
    %v955 = vpop.f32.mrb[0].mxu0
    %v956 = vadd.f32 0.0, %v955
    %v957 = vpop.f32.mrb[0].mxu0
    %v958 = vadd.f32 0.0, %v957
    %v959 = vpop.f32.mrb[0].mxu0
    %v960 = vadd.f32 0.0, %v959
    %961 = vdwg.mxu0
    %v962 = vmax.f32 %v545, %v771
    %v963 = vmax.f32 %v547, %v773
    %v964 = vmax.f32 %v658, %v884
    %v965 = vmax.f32 %v660, %v886
    %v966 = vmax.f32 %v549, %v775
    %v967 = vmax.f32 %v551, %v777
    %v968 = vmax.f32 %v662, %v888
    %v969 = vmax.f32 %v664, %v890
    %v970 = vmax.f32 %v555, %v781
    %v971 = vmax.f32 %v557, %v783
    %v972 = vmax.f32 %v668, %v894
    %v973 = vmax.f32 %v670, %v896
    %v974 = vmax.f32 %v559, %v785
    %v975 = vmax.f32 %v561, %v787
    %v976 = vmax.f32 %v672, %v898
    %v977 = vmax.f32 %v674, %v900
    %v978 = vmax.f32 %v565, %v791
    %v979 = vmax.f32 %v567, %v793
    %v980 = vmax.f32 %v678, %v904
    %v981 = vmax.f32 %v680, %v906
    %v982 = vmax.f32 %v569, %v795
    %v983 = vmax.f32 %v571, %v797
    %v984 = vmax.f32 %v682, %v908
    %v985 = vmax.f32 %v684, %v910
    %v986 = vmax.f32 %v575, %v801
    %v987 = vmax.f32 %v577, %v803
    %v988 = vmax.f32 %v688, %v914
    %v989 = vmax.f32 %v690, %v916
    %v990 = vmax.f32 %v579, %v805
    %v991 = vmax.f32 %v581, %v807
    %v992 = vmax.f32 %v692, %v918
    %v993 = vmax.f32 %v694, %v920
    %v994 = vmax.f32 %v585, %v811
    %v995 = vmax.f32 %v587, %v813
    %v996 = vmax.f32 %v698, %v924
    %v997 = vmax.f32 %v700, %v926
    %v998 = vmax.f32 %v589, %v815
    %v999 = vmax.f32 %v591, %v817
    %v1000 = vmax.f32 %v702, %v928
    %v1001 = vmax.f32 %v704, %v930
    %v1002 = vmax.f32 %v595, %v821
    %v1003 = vmax.f32 %v597, %v823
    %v1004 = vmax.f32 %v708, %v934
    %v1005 = vmax.f32 %v710, %v936
    %v1006 = vmax.f32 %v599, %v825
    %v1007 = vmax.f32 %v601, %v827
    %v1008 = vmax.f32 %v712, %v938
    %v1009 = vmax.f32 %v714, %v940
    %v1010 = vmax.f32 %v605, %v831
    %v1011 = vmax.f32 %v607, %v833
    %v1012 = vmax.f32 %v718, %v944
    %v1013 = vmax.f32 %v720, %v946
    %v1014 = vmax.f32 %v609, %v835
    %v1015 = vmax.f32 %v611, %v837
    %v1016 = vmax.f32 %v722, %v948
    %v1017 = vmax.f32 %v724, %v950
    %v1018 = vmax.f32 %v615, %v841
    %v1019 = vmax.f32 %v617, %v843
    %v1020 = vmax.f32 %v728, %v954
    %v1021 = vmax.f32 %v730, %v956
    %v1022 = vmax.f32 %v619, %v845
    %v1023 = vmax.f32 %v621, %v847
    %v1024 = vmax.f32 %v732, %v958
    %v1025 = vmax.f32 %v734, %v960
    %v1026 = vld [vmem:[%s2] sm:$0xf]
    %v1028 = vlaneseq
    %v1029 = vshrl.u32 %v1028, 7
    %v1030 = vsub.s32 0, %v1029
    %v1031 = vrot.slane %v1026, %v1030
    %v1032 = vlaneseq
    %v1033 = vshrl.u32 %v1032, 7
    %v1034 = vsub.s32 1, %v1033
    %v1035 = vrot.slane %v1026, %v1034
    %v1036 = vlaneseq
    %v1037 = vshrl.u32 %v1036, 7
    %v1038 = vsub.s32 2, %v1037
    %v1039 = vrot.slane %v1026, %v1038
    %v1040 = vlaneseq
    %v1041 = vshrl.u32 %v1040, 7
    %v1042 = vsub.s32 3, %v1041
    %v1043 = vrot.slane %v1026, %v1042
    %v1048 = vadd.f32 %v962, %v1031
    %v1049 = vadd.f32 %v963, %v1035
    %v1050 = vadd.f32 %v964, %v1039
    %v1051 = vadd.f32 %v965, %v1043
    %v1052 = vadd.f32 %v966, %v1031
    %v1053 = vadd.f32 %v967, %v1035
    %v1054 = vadd.f32 %v968, %v1039
    %v1055 = vadd.f32 %v969, %v1043
    %v1056 = vadd.f32 %v970, %v1031
    %v1057 = vadd.f32 %v971, %v1035
    %v1058 = vadd.f32 %v972, %v1039
    %v1059 = vadd.f32 %v973, %v1043
    %v1060 = vadd.f32 %v974, %v1031
    %v1061 = vadd.f32 %v975, %v1035
    %v1062 = vadd.f32 %v976, %v1039
    %v1063 = vadd.f32 %v977, %v1043
    %v1064 = vadd.f32 %v978, %v1031
    %v1065 = vadd.f32 %v979, %v1035
    %v1066 = vadd.f32 %v980, %v1039
    %v1067 = vadd.f32 %v981, %v1043
    %v1068 = vadd.f32 %v982, %v1031
    %v1069 = vadd.f32 %v983, %v1035
    %v1070 = vadd.f32 %v984, %v1039
    %v1071 = vadd.f32 %v985, %v1043
    %v1072 = vadd.f32 %v986, %v1031
    %v1073 = vadd.f32 %v987, %v1035
    %v1074 = vadd.f32 %v988, %v1039
    %v1075 = vadd.f32 %v989, %v1043
    %v1076 = vadd.f32 %v990, %v1031
    %v1077 = vadd.f32 %v991, %v1035
    %v1078 = vadd.f32 %v992, %v1039
    %v1079 = vadd.f32 %v993, %v1043
    %v1080 = vadd.f32 %v994, %v1031
    %v1081 = vadd.f32 %v995, %v1035
    %v1082 = vadd.f32 %v996, %v1039
    %v1083 = vadd.f32 %v997, %v1043
    %v1084 = vadd.f32 %v998, %v1031
    %v1085 = vadd.f32 %v999, %v1035
    %v1086 = vadd.f32 %v1000, %v1039
    %v1087 = vadd.f32 %v1001, %v1043
    %v1088 = vadd.f32 %v1002, %v1031
    %v1089 = vadd.f32 %v1003, %v1035
    %v1090 = vadd.f32 %v1004, %v1039
    %v1091 = vadd.f32 %v1005, %v1043
    %v1092 = vadd.f32 %v1006, %v1031
    %v1093 = vadd.f32 %v1007, %v1035
    %v1094 = vadd.f32 %v1008, %v1039
    %v1095 = vadd.f32 %v1009, %v1043
    %v1096 = vadd.f32 %v1010, %v1031
    %v1097 = vadd.f32 %v1011, %v1035
    %v1098 = vadd.f32 %v1012, %v1039
    %v1099 = vadd.f32 %v1013, %v1043
    %v1100 = vadd.f32 %v1014, %v1031
    %v1101 = vadd.f32 %v1015, %v1035
    %v1102 = vadd.f32 %v1016, %v1039
    %v1103 = vadd.f32 %v1017, %v1043
    %v1104 = vadd.f32 %v1018, %v1031
    %v1105 = vadd.f32 %v1019, %v1035
    %v1106 = vadd.f32 %v1020, %v1039
    %v1107 = vadd.f32 %v1021, %v1043
    %v1108 = vadd.f32 %v1022, %v1031
    %v1109 = vadd.f32 %v1023, %v1035
    %v1110 = vadd.f32 %v1024, %v1039
    %v1111 = vadd.f32 %v1025, %v1043
    %v1112 = vmax.f32 %v1048, 0.0
    %v1113 = vmax.f32 %v1049, 0.0
    %v1114 = vmax.f32 %v1050, 0.0
    %v1115 = vmax.f32 %v1051, 0.0
    %v1116 = vmax.f32 %v1052, 0.0
    %v1117 = vmax.f32 %v1053, 0.0
    %v1118 = vmax.f32 %v1054, 0.0
    %v1119 = vmax.f32 %v1055, 0.0
    %v1120 = vmax.f32 %v1056, 0.0
    %v1121 = vmax.f32 %v1057, 0.0
    %v1122 = vmax.f32 %v1058, 0.0
    %v1123 = vmax.f32 %v1059, 0.0
    %v1124 = vmax.f32 %v1060, 0.0
    %v1125 = vmax.f32 %v1061, 0.0
    %v1126 = vmax.f32 %v1062, 0.0
    %v1127 = vmax.f32 %v1063, 0.0
    %v1128 = vmax.f32 %v1064, 0.0
    %v1129 = vmax.f32 %v1065, 0.0
    %v1130 = vmax.f32 %v1066, 0.0
    %v1131 = vmax.f32 %v1067, 0.0
    %v1132 = vmax.f32 %v1068, 0.0
    %v1133 = vmax.f32 %v1069, 0.0
    %v1134 = vmax.f32 %v1070, 0.0
    %v1135 = vmax.f32 %v1071, 0.0
    %v1136 = vmax.f32 %v1072, 0.0
    %v1137 = vmax.f32 %v1073, 0.0
    %v1138 = vmax.f32 %v1074, 0.0
    %v1139 = vmax.f32 %v1075, 0.0
    %v1140 = vmax.f32 %v1076, 0.0
    %v1141 = vmax.f32 %v1077, 0.0
    %v1142 = vmax.f32 %v1078, 0.0
    %v1143 = vmax.f32 %v1079, 0.0
    %v1144 = vmax.f32 %v1080, 0.0
    %v1145 = vmax.f32 %v1081, 0.0
    %v1146 = vmax.f32 %v1082, 0.0
    %v1147 = vmax.f32 %v1083, 0.0
    %v1148 = vmax.f32 %v1084, 0.0
    %v1149 = vmax.f32 %v1085, 0.0
    %v1150 = vmax.f32 %v1086, 0.0
    %v1151 = vmax.f32 %v1087, 0.0
    %v1152 = vmax.f32 %v1088, 0.0
    %v1153 = vmax.f32 %v1089, 0.0
    %v1154 = vmax.f32 %v1090, 0.0
    %v1155 = vmax.f32 %v1091, 0.0
    %v1156 = vmax.f32 %v1092, 0.0
    %v1157 = vmax.f32 %v1093, 0.0
    %v1158 = vmax.f32 %v1094, 0.0
    %v1159 = vmax.f32 %v1095, 0.0
    %v1160 = vmax.f32 %v1096, 0.0
    %v1161 = vmax.f32 %v1097, 0.0
    %v1162 = vmax.f32 %v1098, 0.0
    %v1163 = vmax.f32 %v1099, 0.0
    %v1164 = vmax.f32 %v1100, 0.0
    %v1165 = vmax.f32 %v1101, 0.0
    %v1166 = vmax.f32 %v1102, 0.0
    %v1167 = vmax.f32 %v1103, 0.0
    %v1168 = vmax.f32 %v1104, 0.0
    %v1169 = vmax.f32 %v1105, 0.0
    %v1170 = vmax.f32 %v1106, 0.0
    %v1171 = vmax.f32 %v1107, 0.0
    %v1172 = vmax.f32 %v1108, 0.0
    %v1173 = vmax.f32 %v1109, 0.0
    %v1174 = vmax.f32 %v1110, 0.0
    %v1175 = vmax.f32 %v1111, 0.0
    %v1176 = vpack.c.bf16 %v1116, %v1112
    %v1177 = vpack.c.bf16 %v1117, %v1113
    %v1178 = vpack.c.bf16 %v1118, %v1114
    %v1179 = vpack.c.bf16 %v1119, %v1115
    %v1180 = vpack.c.bf16 %v1124, %v1120
    %v1181 = vpack.c.bf16 %v1125, %v1121
    %v1182 = vpack.c.bf16 %v1126, %v1122
    %v1183 = vpack.c.bf16 %v1127, %v1123
    %v1184 = vpack.c.bf16 %v1132, %v1128
    %v1185 = vpack.c.bf16 %v1133, %v1129
    %v1186 = vpack.c.bf16 %v1134, %v1130
    %v1187 = vpack.c.bf16 %v1135, %v1131
    %v1188 = vpack.c.bf16 %v1140, %v1136
    %v1189 = vpack.c.bf16 %v1141, %v1137
    %v1190 = vpack.c.bf16 %v1142, %v1138
    %v1191 = vpack.c.bf16 %v1143, %v1139
    %v1192 = vpack.c.bf16 %v1148, %v1144
    %v1193 = vpack.c.bf16 %v1149, %v1145
    %v1194 = vpack.c.bf16 %v1150, %v1146
    %v1195 = vpack.c.bf16 %v1151, %v1147
    %v1196 = vpack.c.bf16 %v1156, %v1152
    %v1197 = vpack.c.bf16 %v1157, %v1153
    %v1198 = vpack.c.bf16 %v1158, %v1154
    %v1199 = vpack.c.bf16 %v1159, %v1155
    %v1200 = vpack.c.bf16 %v1164, %v1160
    %v1201 = vpack.c.bf16 %v1165, %v1161
    %v1202 = vpack.c.bf16 %v1166, %v1162
    %v1203 = vpack.c.bf16 %v1167, %v1163
    %v1204 = vpack.c.bf16 %v1172, %v1168
    %v1205 = vpack.c.bf16 %v1173, %v1169
    %v1206 = vpack.c.bf16 %v1174, %v1170
    %v1207 = vpack.c.bf16 %v1175, %v1171
    %v1208 = vld [vmem:[#allocation7] sm:$0xff]
    %v1209 = vld [vmem:[#allocation7 + $0x8] sm:$0xff]
    %v1210 = vld [vmem:[#allocation7 + $0x10] sm:$0xff]
    %v1211 = vld [vmem:[#allocation7 + $0x18] sm:$0xff]
    %v1212 = vld [vmem:[#allocation7 + $0x20] sm:$0xff]
    %v1213 = vld [vmem:[#allocation7 + $0x28] sm:$0xff]
    %v1214 = vld [vmem:[#allocation7 + $0x30] sm:$0xff]
    %v1215 = vld [vmem:[#allocation7 + $0x38] sm:$0xff]
    %v1216 = vld [vmem:[#allocation7 + $0x40] sm:$0xff]
    %v1217 = vld [vmem:[#allocation7 + $0x48] sm:$0xff]
    %v1218 = vld [vmem:[#allocation7 + $0x50] sm:$0xff]
    %v1219 = vld [vmem:[#allocation7 + $0x58] sm:$0xff]
    %v1220 = vld [vmem:[#allocation7 + $0x60] sm:$0xff]
    %v1221 = vld [vmem:[#allocation7 + $0x68] sm:$0xff]
    %v1222 = vld [vmem:[#allocation7 + $0x70] sm:$0xff]
    %v1223 = vld [vmem:[#allocation7 + $0x78] sm:$0xff]
    %v1224 = vld [vmem:[#allocation7 + $0x80] sm:$0xff]
    %v1225 = vld [vmem:[#allocation7 + $0x88] sm:$0xff]
    %v1226 = vld [vmem:[#allocation7 + $0x90] sm:$0xff]
    %v1227 = vld [vmem:[#allocation7 + $0x98] sm:$0xff]
    %v1228 = vld [vmem:[#allocation7 + $0xa0] sm:$0xff]
    %v1229 = vld [vmem:[#allocation7 + $0xa8] sm:$0xff]
    %v1230 = vld [vmem:[#allocation7 + $0xb0] sm:$0xff]
    %v1231 = vld [vmem:[#allocation7 + $0xb8] sm:$0xff]
    %v1232 = vld [vmem:[#allocation7 + $0xc0] sm:$0xff]
    %v1233 = vld [vmem:[#allocation7 + $0xc8] sm:$0xff]
    %v1234 = vld [vmem:[#allocation7 + $0xd0] sm:$0xff]
    %v1235 = vld [vmem:[#allocation7 + $0xd8] sm:$0xff]
    %v1236 = vld [vmem:[#allocation7 + $0xe0] sm:$0xff]
    %v1237 = vld [vmem:[#allocation7 + $0xe8] sm:$0xff]
    %v1238 = vld [vmem:[#allocation7 + $0xf0] sm:$0xff]
    %v1239 = vld [vmem:[#allocation7 + $0xf8] sm:$0xff]
    %v1240 = vld [vmem:[#allocation7 + $0x100] sm:$0xff]
    %v1241 = vld [vmem:[#allocation7 + $0x108] sm:$0xff]
    %v1242 = vld [vmem:[#allocation7 + $0x110] sm:$0xff]
    %v1243 = vld [vmem:[#allocation7 + $0x118] sm:$0xff]
    %v1244 = vld [vmem:[#allocation7 + $0x120] sm:$0xff]
    %v1245 = vld [vmem:[#allocation7 + $0x128] sm:$0xff]
    %v1246 = vld [vmem:[#allocation7 + $0x130] sm:$0xff]
    %v1247 = vld [vmem:[#allocation7 + $0x138] sm:$0xff]
    %v1248 = vld [vmem:[#allocation7 + $0x140] sm:$0xff]
    %v1249 = vld [vmem:[#allocation7 + $0x148] sm:$0xff]
    %v1250 = vld [vmem:[#allocation7 + $0x150] sm:$0xff]
    %v1251 = vld [vmem:[#allocation7 + $0x158] sm:$0xff]
    %v1252 = vld [vmem:[#allocation7 + $0x160] sm:$0xff]
    %v1253 = vld [vmem:[#allocation7 + $0x168] sm:$0xff]
    %v1254 = vld [vmem:[#allocation7 + $0x170] sm:$0xff]
    %v1255 = vld [vmem:[#allocation7 + $0x178] sm:$0xff]
    %v1256 = vld [vmem:[#allocation7 + $0x180] sm:$0xff]
    %v1257 = vld [vmem:[#allocation7 + $0x188] sm:$0xff]
    %v1258 = vld [vmem:[#allocation7 + $0x190] sm:$0xff]
    %v1259 = vld [vmem:[#allocation7 + $0x198] sm:$0xff]
    %v1260 = vld [vmem:[#allocation7 + $0x1a0] sm:$0xff]
    %v1261 = vld [vmem:[#allocation7 + $0x1a8] sm:$0xff]
    %v1262 = vld [vmem:[#allocation7 + $0x1b0] sm:$0xff]
    %v1263 = vld [vmem:[#allocation7 + $0x1b8] sm:$0xff]
    %v1264 = vld [vmem:[#allocation7 + $0x1c0] sm:$0xff]
    %v1265 = vld [vmem:[#allocation7 + $0x1c8] sm:$0xff]
    %v1266 = vld [vmem:[#allocation7 + $0x1d0] sm:$0xff]
    %v1267 = vld [vmem:[#allocation7 + $0x1d8] sm:$0xff]
    %v1268 = vld [vmem:[#allocation7 + $0x1e0] sm:$0xff]
    %v1269 = vld [vmem:[#allocation7 + $0x1e8] sm:$0xff]
    %v1270 = vld [vmem:[#allocation7 + $0x1f0] sm:$0xff]
    %v1271 = vld [vmem:[#allocation7 + $0x1f8] sm:$0xff]
    %v1272 = vld [vmem:[#allocation7 + $0x200] sm:$0xff]
    %v1273 = vld [vmem:[#allocation7 + $0x208] sm:$0xff]
    %v1274 = vld [vmem:[#allocation7 + $0x210] sm:$0xff]
    %v1275 = vld [vmem:[#allocation7 + $0x218] sm:$0xff]
    %v1276 = vld [vmem:[#allocation7 + $0x220] sm:$0xff]
    %v1277 = vld [vmem:[#allocation7 + $0x228] sm:$0xff]
    %v1278 = vld [vmem:[#allocation7 + $0x230] sm:$0xff]
    %v1279 = vld [vmem:[#allocation7 + $0x238] sm:$0xff]
    %v1280 = vld [vmem:[#allocation7 + $0x240] sm:$0xff]
    %v1281 = vld [vmem:[#allocation7 + $0x248] sm:$0xff]
    %v1282 = vld [vmem:[#allocation7 + $0x250] sm:$0xff]
    %v1283 = vld [vmem:[#allocation7 + $0x258] sm:$0xff]
    %v1284 = vld [vmem:[#allocation7 + $0x260] sm:$0xff]
    %v1285 = vld [vmem:[#allocation7 + $0x268] sm:$0xff]
    %v1286 = vld [vmem:[#allocation7 + $0x270] sm:$0xff]
    %v1287 = vld [vmem:[#allocation7 + $0x278] sm:$0xff]
    %v1288 = vld [vmem:[#allocation7 + $0x280] sm:$0xff]
    %v1289 = vld [vmem:[#allocation7 + $0x288] sm:$0xff]
    %v1290 = vld [vmem:[#allocation7 + $0x290] sm:$0xff]
    %v1291 = vld [vmem:[#allocation7 + $0x298] sm:$0xff]
    %v1292 = vld [vmem:[#allocation7 + $0x2a0] sm:$0xff]
    %v1293 = vld [vmem:[#allocation7 + $0x2a8] sm:$0xff]
    %v1294 = vld [vmem:[#allocation7 + $0x2b0] sm:$0xff]
    %v1295 = vld [vmem:[#allocation7 + $0x2b8] sm:$0xff]
    %v1296 = vld [vmem:[#allocation7 + $0x2c0] sm:$0xff]
    %v1297 = vld [vmem:[#allocation7 + $0x2c8] sm:$0xff]
    %v1298 = vld [vmem:[#allocation7 + $0x2d0] sm:$0xff]
    %v1299 = vld [vmem:[#allocation7 + $0x2d8] sm:$0xff]
    %v1300 = vld [vmem:[#allocation7 + $0x2e0] sm:$0xff]
    %v1301 = vld [vmem:[#allocation7 + $0x2e8] sm:$0xff]
    %v1302 = vld [vmem:[#allocation7 + $0x2f0] sm:$0xff]
    %v1303 = vld [vmem:[#allocation7 + $0x2f8] sm:$0xff]
    %v1304 = vld [vmem:[#allocation7 + $0x300] sm:$0xff]
    %v1305 = vld [vmem:[#allocation7 + $0x308] sm:$0xff]
    %v1306 = vld [vmem:[#allocation7 + $0x310] sm:$0xff]
    %v1307 = vld [vmem:[#allocation7 + $0x318] sm:$0xff]
    %v1308 = vld [vmem:[#allocation7 + $0x320] sm:$0xff]
    %v1309 = vld [vmem:[#allocation7 + $0x328] sm:$0xff]
    %v1310 = vld [vmem:[#allocation7 + $0x330] sm:$0xff]
    %v1311 = vld [vmem:[#allocation7 + $0x338] sm:$0xff]
    %v1312 = vld [vmem:[#allocation7 + $0x340] sm:$0xff]
    %v1313 = vld [vmem:[#allocation7 + $0x348] sm:$0xff]
    %v1314 = vld [vmem:[#allocation7 + $0x350] sm:$0xff]
    %v1315 = vld [vmem:[#allocation7 + $0x358] sm:$0xff]
    %v1316 = vld [vmem:[#allocation7 + $0x360] sm:$0xff]
    %v1317 = vld [vmem:[#allocation7 + $0x368] sm:$0xff]
    %v1318 = vld [vmem:[#allocation7 + $0x370] sm:$0xff]
    %v1319 = vld [vmem:[#allocation7 + $0x378] sm:$0xff]
    %v1320 = vld [vmem:[#allocation7 + $0x380] sm:$0xff]
    %v1321 = vld [vmem:[#allocation7 + $0x388] sm:$0xff]
    %v1322 = vld [vmem:[#allocation7 + $0x390] sm:$0xff]
    %v1323 = vld [vmem:[#allocation7 + $0x398] sm:$0xff]
    %v1324 = vld [vmem:[#allocation7 + $0x3a0] sm:$0xff]
    %v1325 = vld [vmem:[#allocation7 + $0x3a8] sm:$0xff]
    %v1326 = vld [vmem:[#allocation7 + $0x3b0] sm:$0xff]
    %v1327 = vld [vmem:[#allocation7 + $0x3b8] sm:$0xff]
    %v1328 = vld [vmem:[#allocation7 + $0x3c0] sm:$0xff]
    %v1329 = vld [vmem:[#allocation7 + $0x3c8] sm:$0xff]
    %v1330 = vld [vmem:[#allocation7 + $0x3d0] sm:$0xff]
    %v1331 = vld [vmem:[#allocation7 + $0x3d8] sm:$0xff]
    %v1332 = vld [vmem:[#allocation7 + $0x3e0] sm:$0xff]
    %v1333 = vld [vmem:[#allocation7 + $0x3e8] sm:$0xff]
    %v1334 = vld [vmem:[#allocation7 + $0x3f0] sm:$0xff]
    %v1335 = vld [vmem:[#allocation7 + $0x3f8] sm:$0xff]
    %v1336 = vld [vmem:[#allocation7 + $0x400] sm:$0xff]
    %v1337 = vld [vmem:[#allocation7 + $0x408] sm:$0xff]
    %v1338 = vld [vmem:[#allocation7 + $0x410] sm:$0xff]
    %v1339 = vld [vmem:[#allocation7 + $0x418] sm:$0xff]
    %v1340 = vld [vmem:[#allocation7 + $0x420] sm:$0xff]
    %v1341 = vld [vmem:[#allocation7 + $0x428] sm:$0xff]
    %v1342 = vld [vmem:[#allocation7 + $0x430] sm:$0xff]
    %v1343 = vld [vmem:[#allocation7 + $0x438] sm:$0xff]
    %v1344 = vld [vmem:[#allocation7 + $0x440] sm:$0xff]
    %v1345 = vld [vmem:[#allocation7 + $0x448] sm:$0xff]
    %v1346 = vld [vmem:[#allocation7 + $0x450] sm:$0xff]
    %v1347 = vld [vmem:[#allocation7 + $0x458] sm:$0xff]
    %v1348 = vld [vmem:[#allocation7 + $0x460] sm:$0xff]
    %v1349 = vld [vmem:[#allocation7 + $0x468] sm:$0xff]
    %v1350 = vld [vmem:[#allocation7 + $0x470] sm:$0xff]
    %v1351 = vld [vmem:[#allocation7 + $0x478] sm:$0xff]
    %v1352 = vld [vmem:[#allocation7 + $0x480] sm:$0xff]
    %v1353 = vld [vmem:[#allocation7 + $0x488] sm:$0xff]
    %v1354 = vld [vmem:[#allocation7 + $0x490] sm:$0xff]
    %v1355 = vld [vmem:[#allocation7 + $0x498] sm:$0xff]
    %v1356 = vld [vmem:[#allocation7 + $0x4a0] sm:$0xff]
    %v1357 = vld [vmem:[#allocation7 + $0x4a8] sm:$0xff]
    %v1358 = vld [vmem:[#allocation7 + $0x4b0] sm:$0xff]
    %v1359 = vld [vmem:[#allocation7 + $0x4b8] sm:$0xff]
    %v1360 = vld [vmem:[#allocation7 + $0x4c0] sm:$0xff]
    %v1361 = vld [vmem:[#allocation7 + $0x4c8] sm:$0xff]
    %v1362 = vld [vmem:[#allocation7 + $0x4d0] sm:$0xff]
    %v1363 = vld [vmem:[#allocation7 + $0x4d8] sm:$0xff]
    %v1364 = vld [vmem:[#allocation7 + $0x4e0] sm:$0xff]
    %v1365 = vld [vmem:[#allocation7 + $0x4e8] sm:$0xff]
    %v1366 = vld [vmem:[#allocation7 + $0x4f0] sm:$0xff]
    %v1367 = vld [vmem:[#allocation7 + $0x4f8] sm:$0xff]
    %v1368 = vld [vmem:[#allocation7 + $0x500] sm:$0xff]
    %v1369 = vld [vmem:[#allocation7 + $0x508] sm:$0xff]
    %v1370 = vld [vmem:[#allocation7 + $0x510] sm:$0xff]
    %v1371 = vld [vmem:[#allocation7 + $0x518] sm:$0xff]
    %v1372 = vld [vmem:[#allocation7 + $0x520] sm:$0xff]
    %v1373 = vld [vmem:[#allocation7 + $0x528] sm:$0xff]
    %v1374 = vld [vmem:[#allocation7 + $0x530] sm:$0xff]
    %v1375 = vld [vmem:[#allocation7 + $0x538] sm:$0xff]
    %v1376 = vld [vmem:[#allocation7 + $0x540] sm:$0xff]
    %v1377 = vld [vmem:[#allocation7 + $0x548] sm:$0xff]
    %v1378 = vld [vmem:[#allocation7 + $0x550] sm:$0xff]
    %v1379 = vld [vmem:[#allocation7 + $0x558] sm:$0xff]
    %v1380 = vld [vmem:[#allocation7 + $0x560] sm:$0xff]
    %v1381 = vld [vmem:[#allocation7 + $0x568] sm:$0xff]
    %v1382 = vld [vmem:[#allocation7 + $0x570] sm:$0xff]
    %v1383 = vld [vmem:[#allocation7 + $0x578] sm:$0xff]
    %v1384 = vld [vmem:[#allocation7 + $0x580] sm:$0xff]
    %v1385 = vld [vmem:[#allocation7 + $0x588] sm:$0xff]
    %v1386 = vld [vmem:[#allocation7 + $0x590] sm:$0xff]
    %v1387 = vld [vmem:[#allocation7 + $0x598] sm:$0xff]
    %v1388 = vld [vmem:[#allocation7 + $0x5a0] sm:$0xff]
    %v1389 = vld [vmem:[#allocation7 + $0x5a8] sm:$0xff]
    %v1390 = vld [vmem:[#allocation7 + $0x5b0] sm:$0xff]
    %v1391 = vld [vmem:[#allocation7 + $0x5b8] sm:$0xff]
    %v1392 = vld [vmem:[#allocation7 + $0x5c0] sm:$0xff]
    %v1393 = vld [vmem:[#allocation7 + $0x5c8] sm:$0xff]
    %v1394 = vld [vmem:[#allocation7 + $0x5d0] sm:$0xff]
    %v1395 = vld [vmem:[#allocation7 + $0x5d8] sm:$0xff]
    %v1396 = vld [vmem:[#allocation7 + $0x5e0] sm:$0xff]
    %v1397 = vld [vmem:[#allocation7 + $0x5e8] sm:$0xff]
    %v1398 = vld [vmem:[#allocation7 + $0x5f0] sm:$0xff]
    %v1399 = vld [vmem:[#allocation7 + $0x5f8] sm:$0xff]
    %v1400 = vld [vmem:[#allocation7 + $0x600] sm:$0xff]
    %v1401 = vld [vmem:[#allocation7 + $0x608] sm:$0xff]
    %v1402 = vld [vmem:[#allocation7 + $0x610] sm:$0xff]
    %v1403 = vld [vmem:[#allocation7 + $0x618] sm:$0xff]
    %v1404 = vld [vmem:[#allocation7 + $0x620] sm:$0xff]
    %v1405 = vld [vmem:[#allocation7 + $0x628] sm:$0xff]
    %v1406 = vld [vmem:[#allocation7 + $0x630] sm:$0xff]
    %v1407 = vld [vmem:[#allocation7 + $0x638] sm:$0xff]
    %v1408 = vld [vmem:[#allocation7 + $0x640] sm:$0xff]
    %v1409 = vld [vmem:[#allocation7 + $0x648] sm:$0xff]
    %v1410 = vld [vmem:[#allocation7 + $0x650] sm:$0xff]
    %v1411 = vld [vmem:[#allocation7 + $0x658] sm:$0xff]
    %v1412 = vld [vmem:[#allocation7 + $0x660] sm:$0xff]
    %v1413 = vld [vmem:[#allocation7 + $0x668] sm:$0xff]
    %v1414 = vld [vmem:[#allocation7 + $0x670] sm:$0xff]
    %v1415 = vld [vmem:[#allocation7 + $0x678] sm:$0xff]
    %v1416 = vld [vmem:[#allocation7 + $0x680] sm:$0xff]
    %v1417 = vld [vmem:[#allocation7 + $0x688] sm:$0xff]
    %v1418 = vld [vmem:[#allocation7 + $0x690] sm:$0xff]
    %v1419 = vld [vmem:[#allocation7 + $0x698] sm:$0xff]
    %v1420 = vld [vmem:[#allocation7 + $0x6a0] sm:$0xff]
    %v1421 = vld [vmem:[#allocation7 + $0x6a8] sm:$0xff]
    %v1422 = vld [vmem:[#allocation7 + $0x6b0] sm:$0xff]
    %v1423 = vld [vmem:[#allocation7 + $0x6b8] sm:$0xff]
    %v1424 = vld [vmem:[#allocation7 + $0x6c0] sm:$0xff]
    %v1425 = vld [vmem:[#allocation7 + $0x6c8] sm:$0xff]
    %v1426 = vld [vmem:[#allocation7 + $0x6d0] sm:$0xff]
    %v1427 = vld [vmem:[#allocation7 + $0x6d8] sm:$0xff]
    %v1428 = vld [vmem:[#allocation7 + $0x6e0] sm:$0xff]
    %v1429 = vld [vmem:[#allocation7 + $0x6e8] sm:$0xff]
    %v1430 = vld [vmem:[#allocation7 + $0x6f0] sm:$0xff]
    %v1431 = vld [vmem:[#allocation7 + $0x6f8] sm:$0xff]
    %v1432 = vld [vmem:[#allocation7 + $0x700] sm:$0xff]
    %v1433 = vld [vmem:[#allocation7 + $0x708] sm:$0xff]
    %v1434 = vld [vmem:[#allocation7 + $0x710] sm:$0xff]
    %v1435 = vld [vmem:[#allocation7 + $0x718] sm:$0xff]
    %v1436 = vld [vmem:[#allocation7 + $0x720] sm:$0xff]
    %v1437 = vld [vmem:[#allocation7 + $0x728] sm:$0xff]
    %v1438 = vld [vmem:[#allocation7 + $0x730] sm:$0xff]
    %v1439 = vld [vmem:[#allocation7 + $0x738] sm:$0xff]
    %v1440 = vld [vmem:[#allocation7 + $0x740] sm:$0xff]
    %v1441 = vld [vmem:[#allocation7 + $0x748] sm:$0xff]
    %v1442 = vld [vmem:[#allocation7 + $0x750] sm:$0xff]
    %v1443 = vld [vmem:[#allocation7 + $0x758] sm:$0xff]
    %v1444 = vld [vmem:[#allocation7 + $0x760] sm:$0xff]
    %v1445 = vld [vmem:[#allocation7 + $0x768] sm:$0xff]
    %v1446 = vld [vmem:[#allocation7 + $0x770] sm:$0xff]
    %v1447 = vld [vmem:[#allocation7 + $0x778] sm:$0xff]
    %v1448 = vld [vmem:[#allocation7 + $0x780] sm:$0xff]
    %v1449 = vld [vmem:[#allocation7 + $0x788] sm:$0xff]
    %v1450 = vld [vmem:[#allocation7 + $0x790] sm:$0xff]
    %v1451 = vld [vmem:[#allocation7 + $0x798] sm:$0xff]
    %v1452 = vld [vmem:[#allocation7 + $0x7a0] sm:$0xff]
    %v1453 = vld [vmem:[#allocation7 + $0x7a8] sm:$0xff]
    %v1454 = vld [vmem:[#allocation7 + $0x7b0] sm:$0xff]
    %v1455 = vld [vmem:[#allocation7 + $0x7b8] sm:$0xff]
    %v1456 = vld [vmem:[#allocation7 + $0x7c0] sm:$0xff]
    %v1457 = vld [vmem:[#allocation7 + $0x7c8] sm:$0xff]
    %v1458 = vld [vmem:[#allocation7 + $0x7d0] sm:$0xff]
    %v1459 = vld [vmem:[#allocation7 + $0x7d8] sm:$0xff]
    %v1460 = vld [vmem:[#allocation7 + $0x7e0] sm:$0xff]
    %v1461 = vld [vmem:[#allocation7 + $0x7e8] sm:$0xff]
    %v1462 = vld [vmem:[#allocation7 + $0x7f0] sm:$0xff]
    %v1463 = vld [vmem:[#allocation7 + $0x7f8] sm:$0xff]
    %v1720 = vunpack.c.l.b16 %v1208
    %v1721 = vunpack.c.h.b16 %v1208
    %v1722 = vunpack.c.l.b16 %v1209
    %v1723 = vunpack.c.h.b16 %v1209
    %v1724 = vunpack.c.l.b16 %v1210
    %v1725 = vunpack.c.h.b16 %v1210
    %v1726 = vunpack.c.l.b16 %v1211
    %v1727 = vunpack.c.h.b16 %v1211
    %v1728 = vunpack.c.l.b16 %v1212
    %v1729 = vunpack.c.h.b16 %v1212
    %v1730 = vunpack.c.l.b16 %v1213
    %v1731 = vunpack.c.h.b16 %v1213
    %v1732 = vunpack.c.l.b16 %v1214
    %v1733 = vunpack.c.h.b16 %v1214
    %v1734 = vunpack.c.l.b16 %v1215
    %v1735 = vunpack.c.h.b16 %v1215
    %v1736 = vunpack.c.l.b16 %v1216
    %v1737 = vunpack.c.h.b16 %v1216
    %v1738 = vunpack.c.l.b16 %v1217
    %v1739 = vunpack.c.h.b16 %v1217
    %v1740 = vunpack.c.l.b16 %v1218
    %v1741 = vunpack.c.h.b16 %v1218
    %v1742 = vunpack.c.l.b16 %v1219
    %v1743 = vunpack.c.h.b16 %v1219
    %v1744 = vunpack.c.l.b16 %v1220
    %v1745 = vunpack.c.h.b16 %v1220
    %v1746 = vunpack.c.l.b16 %v1221
    %v1747 = vunpack.c.h.b16 %v1221
    %v1748 = vunpack.c.l.b16 %v1222
    %v1749 = vunpack.c.h.b16 %v1222
    %v1750 = vunpack.c.l.b16 %v1223
    %v1751 = vunpack.c.h.b16 %v1223
    %v1752 = vunpack.c.l.b16 %v1224
    %v1753 = vunpack.c.h.b16 %v1224
    %v1754 = vunpack.c.l.b16 %v1225
    %v1755 = vunpack.c.h.b16 %v1225
    %v1756 = vunpack.c.l.b16 %v1226
    %v1757 = vunpack.c.h.b16 %v1226
    %v1758 = vunpack.c.l.b16 %v1227
    %v1759 = vunpack.c.h.b16 %v1227
    %v1760 = vunpack.c.l.b16 %v1228
    %v1761 = vunpack.c.h.b16 %v1228
    %v1762 = vunpack.c.l.b16 %v1229
    %v1763 = vunpack.c.h.b16 %v1229
    %v1764 = vunpack.c.l.b16 %v1230
    %v1765 = vunpack.c.h.b16 %v1230
    %v1766 = vunpack.c.l.b16 %v1231
    %v1767 = vunpack.c.h.b16 %v1231
    %v1768 = vunpack.c.l.b16 %v1232
    %v1769 = vunpack.c.h.b16 %v1232
    %v1770 = vunpack.c.l.b16 %v1233
    %v1771 = vunpack.c.h.b16 %v1233
    %v1772 = vunpack.c.l.b16 %v1234
    %v1773 = vunpack.c.h.b16 %v1234
    %v1774 = vunpack.c.l.b16 %v1235
    %v1775 = vunpack.c.h.b16 %v1235
    %v1776 = vunpack.c.l.b16 %v1236
    %v1777 = vunpack.c.h.b16 %v1236
    %v1778 = vunpack.c.l.b16 %v1237
    %v1779 = vunpack.c.h.b16 %v1237
    %v1780 = vunpack.c.l.b16 %v1238
    %v1781 = vunpack.c.h.b16 %v1238
    %v1782 = vunpack.c.l.b16 %v1239
    %v1783 = vunpack.c.h.b16 %v1239
    %v1784 = vunpack.c.l.b16 %v1240
    %v1785 = vunpack.c.h.b16 %v1240
    %v1786 = vunpack.c.l.b16 %v1241
    %v1787 = vunpack.c.h.b16 %v1241
    %v1788 = vunpack.c.l.b16 %v1242
    %v1789 = vunpack.c.h.b16 %v1242
    %v1790 = vunpack.c.l.b16 %v1243
    %v1791 = vunpack.c.h.b16 %v1243
    %v1792 = vunpack.c.l.b16 %v1244
    %v1793 = vunpack.c.h.b16 %v1244
    %v1794 = vunpack.c.l.b16 %v1245
    %v1795 = vunpack.c.h.b16 %v1245
    %v1796 = vunpack.c.l.b16 %v1246
    %v1797 = vunpack.c.h.b16 %v1246
    %v1798 = vunpack.c.l.b16 %v1247
    %v1799 = vunpack.c.h.b16 %v1247
    %v1800 = vunpack.c.l.b16 %v1248
    %v1801 = vunpack.c.h.b16 %v1248
    %v1802 = vunpack.c.l.b16 %v1249
    %v1803 = vunpack.c.h.b16 %v1249
    %v1804 = vunpack.c.l.b16 %v1250
    %v1805 = vunpack.c.h.b16 %v1250
    %v1806 = vunpack.c.l.b16 %v1251
    %v1807 = vunpack.c.h.b16 %v1251
    %v1808 = vunpack.c.l.b16 %v1252
    %v1809 = vunpack.c.h.b16 %v1252
    %v1810 = vunpack.c.l.b16 %v1253
    %v1811 = vunpack.c.h.b16 %v1253
    %v1812 = vunpack.c.l.b16 %v1254
    %v1813 = vunpack.c.h.b16 %v1254
    %v1814 = vunpack.c.l.b16 %v1255
    %v1815 = vunpack.c.h.b16 %v1255
    %v1816 = vunpack.c.l.b16 %v1256
    %v1817 = vunpack.c.h.b16 %v1256
    %v1818 = vunpack.c.l.b16 %v1257
    %v1819 = vunpack.c.h.b16 %v1257
    %v1820 = vunpack.c.l.b16 %v1258
    %v1821 = vunpack.c.h.b16 %v1258
    %v1822 = vunpack.c.l.b16 %v1259
    %v1823 = vunpack.c.h.b16 %v1259
    %v1824 = vunpack.c.l.b16 %v1260
    %v1825 = vunpack.c.h.b16 %v1260
    %v1826 = vunpack.c.l.b16 %v1261
    %v1827 = vunpack.c.h.b16 %v1261
    %v1828 = vunpack.c.l.b16 %v1262
    %v1829 = vunpack.c.h.b16 %v1262
    %v1830 = vunpack.c.l.b16 %v1263
    %v1831 = vunpack.c.h.b16 %v1263
    %v1832 = vunpack.c.l.b16 %v1264
    %v1833 = vunpack.c.h.b16 %v1264
    %v1834 = vunpack.c.l.b16 %v1265
    %v1835 = vunpack.c.h.b16 %v1265
    %v1836 = vunpack.c.l.b16 %v1266
    %v1837 = vunpack.c.h.b16 %v1266
    %v1838 = vunpack.c.l.b16 %v1267
    %v1839 = vunpack.c.h.b16 %v1267
    %v1840 = vunpack.c.l.b16 %v1268
    %v1841 = vunpack.c.h.b16 %v1268
    %v1842 = vunpack.c.l.b16 %v1269
    %v1843 = vunpack.c.h.b16 %v1269
    %v1844 = vunpack.c.l.b16 %v1270
    %v1845 = vunpack.c.h.b16 %v1270
    %v1846 = vunpack.c.l.b16 %v1271
    %v1847 = vunpack.c.h.b16 %v1271
    %v1848 = vunpack.c.l.b16 %v1272
    %v1849 = vunpack.c.h.b16 %v1272
    %v1850 = vunpack.c.l.b16 %v1273
    %v1851 = vunpack.c.h.b16 %v1273
    %v1852 = vunpack.c.l.b16 %v1274
    %v1853 = vunpack.c.h.b16 %v1274
    %v1854 = vunpack.c.l.b16 %v1275
    %v1855 = vunpack.c.h.b16 %v1275
    %v1856 = vunpack.c.l.b16 %v1276
    %v1857 = vunpack.c.h.b16 %v1276
    %v1858 = vunpack.c.l.b16 %v1277
    %v1859 = vunpack.c.h.b16 %v1277
    %v1860 = vunpack.c.l.b16 %v1278
    %v1861 = vunpack.c.h.b16 %v1278
    %v1862 = vunpack.c.l.b16 %v1279
    %v1863 = vunpack.c.h.b16 %v1279
    %v1864 = vunpack.c.l.b16 %v1280
    %v1865 = vunpack.c.h.b16 %v1280
    %v1866 = vunpack.c.l.b16 %v1281
    %v1867 = vunpack.c.h.b16 %v1281
    %v1868 = vunpack.c.l.b16 %v1282
    %v1869 = vunpack.c.h.b16 %v1282
    %v1870 = vunpack.c.l.b16 %v1283
    %v1871 = vunpack.c.h.b16 %v1283
    %v1872 = vunpack.c.l.b16 %v1284
    %v1873 = vunpack.c.h.b16 %v1284
    %v1874 = vunpack.c.l.b16 %v1285
    %v1875 = vunpack.c.h.b16 %v1285
    %v1876 = vunpack.c.l.b16 %v1286
    %v1877 = vunpack.c.h.b16 %v1286
    %v1878 = vunpack.c.l.b16 %v1287
    %v1879 = vunpack.c.h.b16 %v1287
    %v1880 = vunpack.c.l.b16 %v1288
    %v1881 = vunpack.c.h.b16 %v1288
    %v1882 = vunpack.c.l.b16 %v1289
    %v1883 = vunpack.c.h.b16 %v1289
    %v1884 = vunpack.c.l.b16 %v1290
    %v1885 = vunpack.c.h.b16 %v1290
    %v1886 = vunpack.c.l.b16 %v1291
    %v1887 = vunpack.c.h.b16 %v1291
    %v1888 = vunpack.c.l.b16 %v1292
    %v1889 = vunpack.c.h.b16 %v1292
    %v1890 = vunpack.c.l.b16 %v1293
    %v1891 = vunpack.c.h.b16 %v1293
    %v1892 = vunpack.c.l.b16 %v1294
    %v1893 = vunpack.c.h.b16 %v1294
    %v1894 = vunpack.c.l.b16 %v1295
    %v1895 = vunpack.c.h.b16 %v1295
    %v1896 = vunpack.c.l.b16 %v1296
    %v1897 = vunpack.c.h.b16 %v1296
    %v1898 = vunpack.c.l.b16 %v1297
    %v1899 = vunpack.c.h.b16 %v1297
    %v1900 = vunpack.c.l.b16 %v1298
    %v1901 = vunpack.c.h.b16 %v1298
    %v1902 = vunpack.c.l.b16 %v1299
    %v1903 = vunpack.c.h.b16 %v1299
    %v1904 = vunpack.c.l.b16 %v1300
    %v1905 = vunpack.c.h.b16 %v1300
    %v1906 = vunpack.c.l.b16 %v1301
    %v1907 = vunpack.c.h.b16 %v1301
    %v1908 = vunpack.c.l.b16 %v1302
    %v1909 = vunpack.c.h.b16 %v1302
    %v1910 = vunpack.c.l.b16 %v1303
    %v1911 = vunpack.c.h.b16 %v1303
    %v1912 = vunpack.c.l.b16 %v1304
    %v1913 = vunpack.c.h.b16 %v1304
    %v1914 = vunpack.c.l.b16 %v1305
    %v1915 = vunpack.c.h.b16 %v1305
    %v1916 = vunpack.c.l.b16 %v1306
    %v1917 = vunpack.c.h.b16 %v1306
    %v1918 = vunpack.c.l.b16 %v1307
    %v1919 = vunpack.c.h.b16 %v1307
    %v1920 = vunpack.c.l.b16 %v1308
    %v1921 = vunpack.c.h.b16 %v1308
    %v1922 = vunpack.c.l.b16 %v1309
    %v1923 = vunpack.c.h.b16 %v1309
    %v1924 = vunpack.c.l.b16 %v1310
    %v1925 = vunpack.c.h.b16 %v1310
    %v1926 = vunpack.c.l.b16 %v1311
    %v1927 = vunpack.c.h.b16 %v1311
    %v1928 = vunpack.c.l.b16 %v1312
    %v1929 = vunpack.c.h.b16 %v1312
    %v1930 = vunpack.c.l.b16 %v1313
    %v1931 = vunpack.c.h.b16 %v1313
    %v1932 = vunpack.c.l.b16 %v1314
    %v1933 = vunpack.c.h.b16 %v1314
    %v1934 = vunpack.c.l.b16 %v1315
    %v1935 = vunpack.c.h.b16 %v1315
    %v1936 = vunpack.c.l.b16 %v1316
    %v1937 = vunpack.c.h.b16 %v1316
    %v1938 = vunpack.c.l.b16 %v1317
    %v1939 = vunpack.c.h.b16 %v1317
    %v1940 = vunpack.c.l.b16 %v1318
    %v1941 = vunpack.c.h.b16 %v1318
    %v1942 = vunpack.c.l.b16 %v1319
    %v1943 = vunpack.c.h.b16 %v1319
    %v1944 = vunpack.c.l.b16 %v1320
    %v1945 = vunpack.c.h.b16 %v1320
    %v1946 = vunpack.c.l.b16 %v1321
    %v1947 = vunpack.c.h.b16 %v1321
    %v1948 = vunpack.c.l.b16 %v1322
    %v1949 = vunpack.c.h.b16 %v1322
    %v1950 = vunpack.c.l.b16 %v1323
    %v1951 = vunpack.c.h.b16 %v1323
    %v1952 = vunpack.c.l.b16 %v1324
    %v1953 = vunpack.c.h.b16 %v1324
    %v1954 = vunpack.c.l.b16 %v1325
    %v1955 = vunpack.c.h.b16 %v1325
    %v1956 = vunpack.c.l.b16 %v1326
    %v1957 = vunpack.c.h.b16 %v1326
    %v1958 = vunpack.c.l.b16 %v1327
    %v1959 = vunpack.c.h.b16 %v1327
    %v1960 = vunpack.c.l.b16 %v1328
    %v1961 = vunpack.c.h.b16 %v1328
    %v1962 = vunpack.c.l.b16 %v1329
    %v1963 = vunpack.c.h.b16 %v1329
    %v1964 = vunpack.c.l.b16 %v1330
    %v1965 = vunpack.c.h.b16 %v1330
    %v1966 = vunpack.c.l.b16 %v1331
    %v1967 = vunpack.c.h.b16 %v1331
    %v1968 = vunpack.c.l.b16 %v1332
    %v1969 = vunpack.c.h.b16 %v1332
    %v1970 = vunpack.c.l.b16 %v1333
    %v1971 = vunpack.c.h.b16 %v1333
    %v1972 = vunpack.c.l.b16 %v1334
    %v1973 = vunpack.c.h.b16 %v1334
    %v1974 = vunpack.c.l.b16 %v1335
    %v1975 = vunpack.c.h.b16 %v1335
    %v1976 = vunpack.c.l.b16 %v1336
    %v1977 = vunpack.c.h.b16 %v1336
    %v1978 = vunpack.c.l.b16 %v1337
    %v1979 = vunpack.c.h.b16 %v1337
    %v1980 = vunpack.c.l.b16 %v1338
    %v1981 = vunpack.c.h.b16 %v1338
    %v1982 = vunpack.c.l.b16 %v1339
    %v1983 = vunpack.c.h.b16 %v1339
    %v1984 = vunpack.c.l.b16 %v1340
    %v1985 = vunpack.c.h.b16 %v1340
    %v1986 = vunpack.c.l.b16 %v1341
    %v1987 = vunpack.c.h.b16 %v1341
    %v1988 = vunpack.c.l.b16 %v1342
    %v1989 = vunpack.c.h.b16 %v1342
    %v1990 = vunpack.c.l.b16 %v1343
    %v1991 = vunpack.c.h.b16 %v1343
    %v1992 = vunpack.c.l.b16 %v1344
    %v1993 = vunpack.c.h.b16 %v1344
    %v1994 = vunpack.c.l.b16 %v1345
    %v1995 = vunpack.c.h.b16 %v1345
    %v1996 = vunpack.c.l.b16 %v1346
    %v1997 = vunpack.c.h.b16 %v1346
    %v1998 = vunpack.c.l.b16 %v1347
    %v1999 = vunpack.c.h.b16 %v1347
    %v2000 = vunpack.c.l.b16 %v1348
    %v2001 = vunpack.c.h.b16 %v1348
    %v2002 = vunpack.c.l.b16 %v1349
    %v2003 = vunpack.c.h.b16 %v1349
    %v2004 = vunpack.c.l.b16 %v1350
    %v2005 = vunpack.c.h.b16 %v1350
    %v2006 = vunpack.c.l.b16 %v1351
    %v2007 = vunpack.c.h.b16 %v1351
    %v2008 = vunpack.c.l.b16 %v1352
    %v2009 = vunpack.c.h.b16 %v1352
    %v2010 = vunpack.c.l.b16 %v1353
    %v2011 = vunpack.c.h.b16 %v1353
    %v2012 = vunpack.c.l.b16 %v1354
    %v2013 = vunpack.c.h.b16 %v1354
    %v2014 = vunpack.c.l.b16 %v1355
    %v2015 = vunpack.c.h.b16 %v1355
    %v2016 = vunpack.c.l.b16 %v1356
    %v2017 = vunpack.c.h.b16 %v1356
    %v2018 = vunpack.c.l.b16 %v1357
    %v2019 = vunpack.c.h.b16 %v1357
    %v2020 = vunpack.c.l.b16 %v1358
    %v2021 = vunpack.c.h.b16 %v1358
    %v2022 = vunpack.c.l.b16 %v1359
    %v2023 = vunpack.c.h.b16 %v1359
    %v2024 = vunpack.c.l.b16 %v1360
    %v2025 = vunpack.c.h.b16 %v1360
    %v2026 = vunpack.c.l.b16 %v1361
    %v2027 = vunpack.c.h.b16 %v1361
    %v2028 = vunpack.c.l.b16 %v1362
    %v2029 = vunpack.c.h.b16 %v1362
    %v2030 = vunpack.c.l.b16 %v1363
    %v2031 = vunpack.c.h.b16 %v1363
    %v2032 = vunpack.c.l.b16 %v1364
    %v2033 = vunpack.c.h.b16 %v1364
    %v2034 = vunpack.c.l.b16 %v1365
    %v2035 = vunpack.c.h.b16 %v1365
    %v2036 = vunpack.c.l.b16 %v1366
    %v2037 = vunpack.c.h.b16 %v1366
    %v2038 = vunpack.c.l.b16 %v1367
    %v2039 = vunpack.c.h.b16 %v1367
    %v2040 = vunpack.c.l.b16 %v1368
    %v2041 = vunpack.c.h.b16 %v1368
    %v2042 = vunpack.c.l.b16 %v1369
    %v2043 = vunpack.c.h.b16 %v1369
    %v2044 = vunpack.c.l.b16 %v1370
    %v2045 = vunpack.c.h.b16 %v1370
    %v2046 = vunpack.c.l.b16 %v1371
    %v2047 = vunpack.c.h.b16 %v1371
    %v2048 = vunpack.c.l.b16 %v1372
    %v2049 = vunpack.c.h.b16 %v1372
    %v2050 = vunpack.c.l.b16 %v1373
    %v2051 = vunpack.c.h.b16 %v1373
    %v2052 = vunpack.c.l.b16 %v1374
    %v2053 = vunpack.c.h.b16 %v1374
    %v2054 = vunpack.c.l.b16 %v1375
    %v2055 = vunpack.c.h.b16 %v1375
    %v2056 = vunpack.c.l.b16 %v1376
    %v2057 = vunpack.c.h.b16 %v1376
    %v2058 = vunpack.c.l.b16 %v1377
    %v2059 = vunpack.c.h.b16 %v1377
    %v2060 = vunpack.c.l.b16 %v1378
    %v2061 = vunpack.c.h.b16 %v1378
    %v2062 = vunpack.c.l.b16 %v1379
    %v2063 = vunpack.c.h.b16 %v1379
    %v2064 = vunpack.c.l.b16 %v1380
    %v2065 = vunpack.c.h.b16 %v1380
    %v2066 = vunpack.c.l.b16 %v1381
    %v2067 = vunpack.c.h.b16 %v1381
    %v2068 = vunpack.c.l.b16 %v1382
    %v2069 = vunpack.c.h.b16 %v1382
    %v2070 = vunpack.c.l.b16 %v1383
    %v2071 = vunpack.c.h.b16 %v1383
    %v2072 = vunpack.c.l.b16 %v1384
    %v2073 = vunpack.c.h.b16 %v1384
    %v2074 = vunpack.c.l.b16 %v1385
    %v2075 = vunpack.c.h.b16 %v1385
    %v2076 = vunpack.c.l.b16 %v1386
    %v2077 = vunpack.c.h.b16 %v1386
    %v2078 = vunpack.c.l.b16 %v1387
    %v2079 = vunpack.c.h.b16 %v1387
    %v2080 = vunpack.c.l.b16 %v1388
    %v2081 = vunpack.c.h.b16 %v1388
    %v2082 = vunpack.c.l.b16 %v1389
    %v2083 = vunpack.c.h.b16 %v1389
    %v2084 = vunpack.c.l.b16 %v1390
    %v2085 = vunpack.c.h.b16 %v1390
    %v2086 = vunpack.c.l.b16 %v1391
    %v2087 = vunpack.c.h.b16 %v1391
    %v2088 = vunpack.c.l.b16 %v1392
    %v2089 = vunpack.c.h.b16 %v1392
    %v2090 = vunpack.c.l.b16 %v1393
    %v2091 = vunpack.c.h.b16 %v1393
    %v2092 = vunpack.c.l.b16 %v1394
    %v2093 = vunpack.c.h.b16 %v1394
    %v2094 = vunpack.c.l.b16 %v1395
    %v2095 = vunpack.c.h.b16 %v1395
    %v2096 = vunpack.c.l.b16 %v1396
    %v2097 = vunpack.c.h.b16 %v1396
    %v2098 = vunpack.c.l.b16 %v1397
    %v2099 = vunpack.c.h.b16 %v1397
    %v2100 = vunpack.c.l.b16 %v1398
    %v2101 = vunpack.c.h.b16 %v1398
    %v2102 = vunpack.c.l.b16 %v1399
    %v2103 = vunpack.c.h.b16 %v1399
    %v2104 = vunpack.c.l.b16 %v1400
    %v2105 = vunpack.c.h.b16 %v1400
    %v2106 = vunpack.c.l.b16 %v1401
    %v2107 = vunpack.c.h.b16 %v1401
    %v2108 = vunpack.c.l.b16 %v1402
    %v2109 = vunpack.c.h.b16 %v1402
    %v2110 = vunpack.c.l.b16 %v1403
    %v2111 = vunpack.c.h.b16 %v1403
    %v2112 = vunpack.c.l.b16 %v1404
    %v2113 = vunpack.c.h.b16 %v1404
    %v2114 = vunpack.c.l.b16 %v1405
    %v2115 = vunpack.c.h.b16 %v1405
    %v2116 = vunpack.c.l.b16 %v1406
    %v2117 = vunpack.c.h.b16 %v1406
    %v2118 = vunpack.c.l.b16 %v1407
    %v2119 = vunpack.c.h.b16 %v1407
    %v2120 = vunpack.c.l.b16 %v1408
    %v2121 = vunpack.c.h.b16 %v1408
    %v2122 = vunpack.c.l.b16 %v1409
    %v2123 = vunpack.c.h.b16 %v1409
    %v2124 = vunpack.c.l.b16 %v1410
    %v2125 = vunpack.c.h.b16 %v1410
    %v2126 = vunpack.c.l.b16 %v1411
    %v2127 = vunpack.c.h.b16 %v1411
    %v2128 = vunpack.c.l.b16 %v1412
    %v2129 = vunpack.c.h.b16 %v1412
    %v2130 = vunpack.c.l.b16 %v1413
    %v2131 = vunpack.c.h.b16 %v1413
    %v2132 = vunpack.c.l.b16 %v1414
    %v2133 = vunpack.c.h.b16 %v1414
    %v2134 = vunpack.c.l.b16 %v1415
    %v2135 = vunpack.c.h.b16 %v1415
    %v2136 = vunpack.c.l.b16 %v1416
    %v2137 = vunpack.c.h.b16 %v1416
    %v2138 = vunpack.c.l.b16 %v1417
    %v2139 = vunpack.c.h.b16 %v1417
    %v2140 = vunpack.c.l.b16 %v1418
    %v2141 = vunpack.c.h.b16 %v1418
    %v2142 = vunpack.c.l.b16 %v1419
    %v2143 = vunpack.c.h.b16 %v1419
    %v2144 = vunpack.c.l.b16 %v1420
    %v2145 = vunpack.c.h.b16 %v1420
    %v2146 = vunpack.c.l.b16 %v1421
    %v2147 = vunpack.c.h.b16 %v1421
    %v2148 = vunpack.c.l.b16 %v1422
    %v2149 = vunpack.c.h.b16 %v1422
    %v2150 = vunpack.c.l.b16 %v1423
    %v2151 = vunpack.c.h.b16 %v1423
    %v2152 = vunpack.c.l.b16 %v1424
    %v2153 = vunpack.c.h.b16 %v1424
    %v2154 = vunpack.c.l.b16 %v1425
    %v2155 = vunpack.c.h.b16 %v1425
    %v2156 = vunpack.c.l.b16 %v1426
    %v2157 = vunpack.c.h.b16 %v1426
    %v2158 = vunpack.c.l.b16 %v1427
    %v2159 = vunpack.c.h.b16 %v1427
    %v2160 = vunpack.c.l.b16 %v1428
    %v2161 = vunpack.c.h.b16 %v1428
    %v2162 = vunpack.c.l.b16 %v1429
    %v2163 = vunpack.c.h.b16 %v1429
    %v2164 = vunpack.c.l.b16 %v1430
    %v2165 = vunpack.c.h.b16 %v1430
    %v2166 = vunpack.c.l.b16 %v1431
    %v2167 = vunpack.c.h.b16 %v1431
    %v2168 = vunpack.c.l.b16 %v1432
    %v2169 = vunpack.c.h.b16 %v1432
    %v2170 = vunpack.c.l.b16 %v1433
    %v2171 = vunpack.c.h.b16 %v1433
    %v2172 = vunpack.c.l.b16 %v1434
    %v2173 = vunpack.c.h.b16 %v1434
    %v2174 = vunpack.c.l.b16 %v1435
    %v2175 = vunpack.c.h.b16 %v1435
    %v2176 = vunpack.c.l.b16 %v1436
    %v2177 = vunpack.c.h.b16 %v1436
    %v2178 = vunpack.c.l.b16 %v1437
    %v2179 = vunpack.c.h.b16 %v1437
    %v2180 = vunpack.c.l.b16 %v1438
    %v2181 = vunpack.c.h.b16 %v1438
    %v2182 = vunpack.c.l.b16 %v1439
    %v2183 = vunpack.c.h.b16 %v1439
    %v2184 = vunpack.c.l.b16 %v1440
    %v2185 = vunpack.c.h.b16 %v1440
    %v2186 = vunpack.c.l.b16 %v1441
    %v2187 = vunpack.c.h.b16 %v1441
    %v2188 = vunpack.c.l.b16 %v1442
    %v2189 = vunpack.c.h.b16 %v1442
    %v2190 = vunpack.c.l.b16 %v1443
    %v2191 = vunpack.c.h.b16 %v1443
    %v2192 = vunpack.c.l.b16 %v1444
    %v2193 = vunpack.c.h.b16 %v1444
    %v2194 = vunpack.c.l.b16 %v1445
    %v2195 = vunpack.c.h.b16 %v1445
    %v2196 = vunpack.c.l.b16 %v1446
    %v2197 = vunpack.c.h.b16 %v1446
    %v2198 = vunpack.c.l.b16 %v1447
    %v2199 = vunpack.c.h.b16 %v1447
    %v2200 = vunpack.c.l.b16 %v1448
    %v2201 = vunpack.c.h.b16 %v1448
    %v2202 = vunpack.c.l.b16 %v1449
    %v2203 = vunpack.c.h.b16 %v1449
    %v2204 = vunpack.c.l.b16 %v1450
    %v2205 = vunpack.c.h.b16 %v1450
    %v2206 = vunpack.c.l.b16 %v1451
    %v2207 = vunpack.c.h.b16 %v1451
    %v2208 = vunpack.c.l.b16 %v1452
    %v2209 = vunpack.c.h.b16 %v1452
    %v2210 = vunpack.c.l.b16 %v1453
    %v2211 = vunpack.c.h.b16 %v1453
    %v2212 = vunpack.c.l.b16 %v1454
    %v2213 = vunpack.c.h.b16 %v1454
    %v2214 = vunpack.c.l.b16 %v1455
    %v2215 = vunpack.c.h.b16 %v1455
    %v2216 = vunpack.c.l.b16 %v1456
    %v2217 = vunpack.c.h.b16 %v1456
    %v2218 = vunpack.c.l.b16 %v1457
    %v2219 = vunpack.c.h.b16 %v1457
    %v2220 = vunpack.c.l.b16 %v1458
    %v2221 = vunpack.c.h.b16 %v1458
    %v2222 = vunpack.c.l.b16 %v1459
    %v2223 = vunpack.c.h.b16 %v1459
    %v2224 = vunpack.c.l.b16 %v1460
    %v2225 = vunpack.c.h.b16 %v1460
    %v2226 = vunpack.c.l.b16 %v1461
    %v2227 = vunpack.c.h.b16 %v1461
    %v2228 = vunpack.c.l.b16 %v1462
    %v2229 = vunpack.c.h.b16 %v1462
    %v2230 = vunpack.c.l.b16 %v1463
    %v2231 = vunpack.c.h.b16 %v1463
    %v2232 = vpack.c.b16 %v1728, %v1720
    %v2233 = vpack.c.b16 %v1729, %v1721
    %v2234 = vpack.c.b16 %v1730, %v1722
    %v2235 = vpack.c.b16 %v1731, %v1723
    %v2236 = vpack.c.b16 %v1732, %v1724
    %v2237 = vpack.c.b16 %v1733, %v1725
    %v2238 = vpack.c.b16 %v1734, %v1726
    %v2239 = vpack.c.b16 %v1735, %v1727
    %v2240 = vpack.c.b16 %v1744, %v1736
    %v2241 = vpack.c.b16 %v1745, %v1737
    %v2242 = vpack.c.b16 %v1746, %v1738
    %v2243 = vpack.c.b16 %v1747, %v1739
    %v2244 = vpack.c.b16 %v1748, %v1740
    %v2245 = vpack.c.b16 %v1749, %v1741
    %v2246 = vpack.c.b16 %v1750, %v1742
    %v2247 = vpack.c.b16 %v1751, %v1743
    %v2248 = vpack.c.b16 %v1760, %v1752
    %v2249 = vpack.c.b16 %v1761, %v1753
    %v2250 = vpack.c.b16 %v1762, %v1754
    %v2251 = vpack.c.b16 %v1763, %v1755
    %v2252 = vpack.c.b16 %v1764, %v1756
    %v2253 = vpack.c.b16 %v1765, %v1757
    %v2254 = vpack.c.b16 %v1766, %v1758
    %v2255 = vpack.c.b16 %v1767, %v1759
    %v2256 = vpack.c.b16 %v1776, %v1768
    %v2257 = vpack.c.b16 %v1777, %v1769
    %v2258 = vpack.c.b16 %v1778, %v1770
    %v2259 = vpack.c.b16 %v1779, %v1771
    %v2260 = vpack.c.b16 %v1780, %v1772
    %v2261 = vpack.c.b16 %v1781, %v1773
    %v2262 = vpack.c.b16 %v1782, %v1774
    %v2263 = vpack.c.b16 %v1783, %v1775
    %v2264 = vpack.c.b16 %v1792, %v1784
    %v2265 = vpack.c.b16 %v1793, %v1785
    %v2266 = vpack.c.b16 %v1794, %v1786
    %v2267 = vpack.c.b16 %v1795, %v1787
    %v2268 = vpack.c.b16 %v1796, %v1788
    %v2269 = vpack.c.b16 %v1797, %v1789
    %v2270 = vpack.c.b16 %v1798, %v1790
    %v2271 = vpack.c.b16 %v1799, %v1791
    %v2272 = vpack.c.b16 %v1808, %v1800
    %v2273 = vpack.c.b16 %v1809, %v1801
    %v2274 = vpack.c.b16 %v1810, %v1802
    %v2275 = vpack.c.b16 %v1811, %v1803
    %v2276 = vpack.c.b16 %v1812, %v1804
    %v2277 = vpack.c.b16 %v1813, %v1805
    %v2278 = vpack.c.b16 %v1814, %v1806
    %v2279 = vpack.c.b16 %v1815, %v1807
    %v2280 = vpack.c.b16 %v1824, %v1816
    %v2281 = vpack.c.b16 %v1825, %v1817
    %v2282 = vpack.c.b16 %v1826, %v1818
    %v2283 = vpack.c.b16 %v1827, %v1819
    %v2284 = vpack.c.b16 %v1828, %v1820
    %v2285 = vpack.c.b16 %v1829, %v1821
    %v2286 = vpack.c.b16 %v1830, %v1822
    %v2287 = vpack.c.b16 %v1831, %v1823
    %v2288 = vpack.c.b16 %v1840, %v1832
    %v2289 = vpack.c.b16 %v1841, %v1833
    %v2290 = vpack.c.b16 %v1842, %v1834
    %v2291 = vpack.c.b16 %v1843, %v1835
    %v2292 = vpack.c.b16 %v1844, %v1836
    %v2293 = vpack.c.b16 %v1845, %v1837
    %v2294 = vpack.c.b16 %v1846, %v1838
    %v2295 = vpack.c.b16 %v1847, %v1839
    %v2296 = vpack.c.b16 %v1856, %v1848
    %v2297 = vpack.c.b16 %v1857, %v1849
    %v2298 = vpack.c.b16 %v1858, %v1850
    %v2299 = vpack.c.b16 %v1859, %v1851
    %v2300 = vpack.c.b16 %v1860, %v1852
    %v2301 = vpack.c.b16 %v1861, %v1853
    %v2302 = vpack.c.b16 %v1862, %v1854
    %v2303 = vpack.c.b16 %v1863, %v1855
    %v2304 = vpack.c.b16 %v1872, %v1864
    %v2305 = vpack.c.b16 %v1873, %v1865
    %v2306 = vpack.c.b16 %v1874, %v1866
    %v2307 = vpack.c.b16 %v1875, %v1867
    %v2308 = vpack.c.b16 %v1876, %v1868
    %v2309 = vpack.c.b16 %v1877, %v1869
    %v2310 = vpack.c.b16 %v1878, %v1870
    %v2311 = vpack.c.b16 %v1879, %v1871
    %v2312 = vpack.c.b16 %v1888, %v1880
    %v2313 = vpack.c.b16 %v1889, %v1881
    %v2314 = vpack.c.b16 %v1890, %v1882
    %v2315 = vpack.c.b16 %v1891, %v1883
    %v2316 = vpack.c.b16 %v1892, %v1884
    %v2317 = vpack.c.b16 %v1893, %v1885
    %v2318 = vpack.c.b16 %v1894, %v1886
    %v2319 = vpack.c.b16 %v1895, %v1887
    %v2320 = vpack.c.b16 %v1904, %v1896
    %v2321 = vpack.c.b16 %v1905, %v1897
    %v2322 = vpack.c.b16 %v1906, %v1898
    %v2323 = vpack.c.b16 %v1907, %v1899
    %v2324 = vpack.c.b16 %v1908, %v1900
    %v2325 = vpack.c.b16 %v1909, %v1901
    %v2326 = vpack.c.b16 %v1910, %v1902
    %v2327 = vpack.c.b16 %v1911, %v1903
    %v2328 = vpack.c.b16 %v1920, %v1912
    %v2329 = vpack.c.b16 %v1921, %v1913
    %v2330 = vpack.c.b16 %v1922, %v1914
    %v2331 = vpack.c.b16 %v1923, %v1915
    %v2332 = vpack.c.b16 %v1924, %v1916
    %v2333 = vpack.c.b16 %v1925, %v1917
    %v2334 = vpack.c.b16 %v1926, %v1918
    %v2335 = vpack.c.b16 %v1927, %v1919
    %v2336 = vpack.c.b16 %v1936, %v1928
    %v2337 = vpack.c.b16 %v1937, %v1929
    %v2338 = vpack.c.b16 %v1938, %v1930
    %v2339 = vpack.c.b16 %v1939, %v1931
    %v2340 = vpack.c.b16 %v1940, %v1932
    %v2341 = vpack.c.b16 %v1941, %v1933
    %v2342 = vpack.c.b16 %v1942, %v1934
    %v2343 = vpack.c.b16 %v1943, %v1935
    %v2344 = vpack.c.b16 %v1952, %v1944
    %v2345 = vpack.c.b16 %v1953, %v1945
    %v2346 = vpack.c.b16 %v1954, %v1946
    %v2347 = vpack.c.b16 %v1955, %v1947
    %v2348 = vpack.c.b16 %v1956, %v1948
    %v2349 = vpack.c.b16 %v1957, %v1949
    %v2350 = vpack.c.b16 %v1958, %v1950
    %v2351 = vpack.c.b16 %v1959, %v1951
    %v2352 = vpack.c.b16 %v1968, %v1960
    %v2353 = vpack.c.b16 %v1969, %v1961
    %v2354 = vpack.c.b16 %v1970, %v1962
    %v2355 = vpack.c.b16 %v1971, %v1963
    %v2356 = vpack.c.b16 %v1972, %v1964
    %v2357 = vpack.c.b16 %v1973, %v1965
    %v2358 = vpack.c.b16 %v1974, %v1966
    %v2359 = vpack.c.b16 %v1975, %v1967
    %v2360 = vpack.c.b16 %v1984, %v1976
    %v2361 = vpack.c.b16 %v1985, %v1977
    %v2362 = vpack.c.b16 %v1986, %v1978
    %v2363 = vpack.c.b16 %v1987, %v1979
    %v2364 = vpack.c.b16 %v1988, %v1980
    %v2365 = vpack.c.b16 %v1989, %v1981
    %v2366 = vpack.c.b16 %v1990, %v1982
    %v2367 = vpack.c.b16 %v1991, %v1983
    %v2368 = vpack.c.b16 %v2000, %v1992
    %v2369 = vpack.c.b16 %v2001, %v1993
    %v2370 = vpack.c.b16 %v2002, %v1994
    %v2371 = vpack.c.b16 %v2003, %v1995
    %v2372 = vpack.c.b16 %v2004, %v1996
    %v2373 = vpack.c.b16 %v2005, %v1997
    %v2374 = vpack.c.b16 %v2006, %v1998
    %v2375 = vpack.c.b16 %v2007, %v1999
    %v2376 = vpack.c.b16 %v2016, %v2008
    %v2377 = vpack.c.b16 %v2017, %v2009
    %v2378 = vpack.c.b16 %v2018, %v2010
    %v2379 = vpack.c.b16 %v2019, %v2011
    %v2380 = vpack.c.b16 %v2020, %v2012
    %v2381 = vpack.c.b16 %v2021, %v2013
    %v2382 = vpack.c.b16 %v2022, %v2014
    %v2383 = vpack.c.b16 %v2023, %v2015
    %v2384 = vpack.c.b16 %v2032, %v2024
    %v2385 = vpack.c.b16 %v2033, %v2025
    %v2386 = vpack.c.b16 %v2034, %v2026
    %v2387 = vpack.c.b16 %v2035, %v2027
    %v2388 = vpack.c.b16 %v2036, %v2028
    %v2389 = vpack.c.b16 %v2037, %v2029
    %v2390 = vpack.c.b16 %v2038, %v2030
    %v2391 = vpack.c.b16 %v2039, %v2031
    %v2392 = vpack.c.b16 %v2048, %v2040
    %v2393 = vpack.c.b16 %v2049, %v2041
    %v2394 = vpack.c.b16 %v2050, %v2042
    %v2395 = vpack.c.b16 %v2051, %v2043
    %v2396 = vpack.c.b16 %v2052, %v2044
    %v2397 = vpack.c.b16 %v2053, %v2045
    %v2398 = vpack.c.b16 %v2054, %v2046
    %v2399 = vpack.c.b16 %v2055, %v2047
    %v2400 = vpack.c.b16 %v2064, %v2056
    %v2401 = vpack.c.b16 %v2065, %v2057
    %v2402 = vpack.c.b16 %v2066, %v2058
    %v2403 = vpack.c.b16 %v2067, %v2059
    %v2404 = vpack.c.b16 %v2068, %v2060
    %v2405 = vpack.c.b16 %v2069, %v2061
    %v2406 = vpack.c.b16 %v2070, %v2062
    %v2407 = vpack.c.b16 %v2071, %v2063
    %v2408 = vpack.c.b16 %v2080, %v2072
    %v2409 = vpack.c.b16 %v2081, %v2073
    %v2410 = vpack.c.b16 %v2082, %v2074
    %v2411 = vpack.c.b16 %v2083, %v2075
    %v2412 = vpack.c.b16 %v2084, %v2076
    %v2413 = vpack.c.b16 %v2085, %v2077
    %v2414 = vpack.c.b16 %v2086, %v2078
    %v2415 = vpack.c.b16 %v2087, %v2079
    %v2416 = vpack.c.b16 %v2096, %v2088
    %v2417 = vpack.c.b16 %v2097, %v2089
    %v2418 = vpack.c.b16 %v2098, %v2090
    %v2419 = vpack.c.b16 %v2099, %v2091
    %v2420 = vpack.c.b16 %v2100, %v2092
    %v2421 = vpack.c.b16 %v2101, %v2093
    %v2422 = vpack.c.b16 %v2102, %v2094
    %v2423 = vpack.c.b16 %v2103, %v2095
    %v2424 = vpack.c.b16 %v2112, %v2104
    %v2425 = vpack.c.b16 %v2113, %v2105
    %v2426 = vpack.c.b16 %v2114, %v2106
    %v2427 = vpack.c.b16 %v2115, %v2107
    %v2428 = vpack.c.b16 %v2116, %v2108
    %v2429 = vpack.c.b16 %v2117, %v2109
    %v2430 = vpack.c.b16 %v2118, %v2110
    %v2431 = vpack.c.b16 %v2119, %v2111
    %v2432 = vpack.c.b16 %v2128, %v2120
    %v2433 = vpack.c.b16 %v2129, %v2121
    %v2434 = vpack.c.b16 %v2130, %v2122
    %v2435 = vpack.c.b16 %v2131, %v2123
    %v2436 = vpack.c.b16 %v2132, %v2124
    %v2437 = vpack.c.b16 %v2133, %v2125
    %v2438 = vpack.c.b16 %v2134, %v2126
    %v2439 = vpack.c.b16 %v2135, %v2127
    %v2440 = vpack.c.b16 %v2144, %v2136
    %v2441 = vpack.c.b16 %v2145, %v2137
    %v2442 = vpack.c.b16 %v2146, %v2138
    %v2443 = vpack.c.b16 %v2147, %v2139
    %v2444 = vpack.c.b16 %v2148, %v2140
    %v2445 = vpack.c.b16 %v2149, %v2141
    %v2446 = vpack.c.b16 %v2150, %v2142
    %v2447 = vpack.c.b16 %v2151, %v2143
    %v2448 = vpack.c.b16 %v2160, %v2152
    %v2449 = vpack.c.b16 %v2161, %v2153
    %v2450 = vpack.c.b16 %v2162, %v2154
    %v2451 = vpack.c.b16 %v2163, %v2155
    %v2452 = vpack.c.b16 %v2164, %v2156
    %v2453 = vpack.c.b16 %v2165, %v2157
    %v2454 = vpack.c.b16 %v2166, %v2158
    %v2455 = vpack.c.b16 %v2167, %v2159
    %v2456 = vpack.c.b16 %v2176, %v2168
    %v2457 = vpack.c.b16 %v2177, %v2169
    %v2458 = vpack.c.b16 %v2178, %v2170
    %v2459 = vpack.c.b16 %v2179, %v2171
    %v2460 = vpack.c.b16 %v2180, %v2172
    %v2461 = vpack.c.b16 %v2181, %v2173
    %v2462 = vpack.c.b16 %v2182, %v2174
    %v2463 = vpack.c.b16 %v2183, %v2175
    %v2464 = vpack.c.b16 %v2192, %v2184
    %v2465 = vpack.c.b16 %v2193, %v2185
    %v2466 = vpack.c.b16 %v2194, %v2186
    %v2467 = vpack.c.b16 %v2195, %v2187
    %v2468 = vpack.c.b16 %v2196, %v2188
    %v2469 = vpack.c.b16 %v2197, %v2189
    %v2470 = vpack.c.b16 %v2198, %v2190
    %v2471 = vpack.c.b16 %v2199, %v2191
    %v2472 = vpack.c.b16 %v2208, %v2200
    %v2473 = vpack.c.b16 %v2209, %v2201
    %v2474 = vpack.c.b16 %v2210, %v2202
    %v2475 = vpack.c.b16 %v2211, %v2203
    %v2476 = vpack.c.b16 %v2212, %v2204
    %v2477 = vpack.c.b16 %v2213, %v2205
    %v2478 = vpack.c.b16 %v2214, %v2206
    %v2479 = vpack.c.b16 %v2215, %v2207
    %v2480 = vpack.c.b16 %v2224, %v2216
    %v2481 = vpack.c.b16 %v2225, %v2217
    %v2482 = vpack.c.b16 %v2226, %v2218
    %v2483 = vpack.c.b16 %v2227, %v2219
    %v2484 = vpack.c.b16 %v2228, %v2220
    %v2485 = vpack.c.b16 %v2229, %v2221
    %v2486 = vpack.c.b16 %v2230, %v2222
    %v2487 = vpack.c.b16 %v2231, %v2223
    %2744 = vmatprep.subr.bf16.mxu0 %v2233
    %2745 = vmatpush1.bf16.msra.mxu0 %v2232
    %2746 = vmatprep.subr.bf16.mxu0 %v2241
    %2747 = vmatpush1.bf16.msra.mxu0 %v2240
    %2748 = vmatprep.subr.bf16.mxu0 %v2249
    %2749 = vmatpush1.bf16.msra.mxu0 %v2248
    %2750 = vmatprep.subr.bf16.mxu0 %v2257
    %2751 = vmatpush1.bf16.msra.mxu0 %v2256
    %2752 = vmatprep.subr.bf16.mxu0 %v2265
    %2753 = vmatpush1.bf16.msra.mxu0 %v2264
    %2754 = vmatprep.subr.bf16.mxu0 %v2273
    %2755 = vmatpush1.bf16.msra.mxu0 %v2272
    %2756 = vmatprep.subr.bf16.mxu0 %v2281
    %2757 = vmatpush1.bf16.msra.mxu0 %v2280
    %2758 = vmatprep.subr.bf16.mxu0 %v2289
    %2759 = vmatpush1.bf16.msra.mxu0 %v2288
    %2760 = vmatprep.subr.bf16.mxu0 %v2297
    %2761 = vmatpush1.bf16.msra.mxu0 %v2296
    %2762 = vmatprep.subr.bf16.mxu0 %v2305
    %2763 = vmatpush1.bf16.msra.mxu0 %v2304
    %2764 = vmatprep.subr.bf16.mxu0 %v2313
    %2765 = vmatpush1.bf16.msra.mxu0 %v2312
    %2766 = vmatprep.subr.bf16.mxu0 %v2321
    %2767 = vmatpush1.bf16.msra.mxu0 %v2320
    %2768 = vmatprep.subr.bf16.mxu0 %v2329
    %2769 = vmatpush1.bf16.msra.mxu0 %v2328
    %2770 = vmatprep.subr.bf16.mxu0 %v2337
    %2771 = vmatpush1.bf16.msra.mxu0 %v2336
    %2772 = vmatprep.subr.bf16.mxu0 %v2345
    %2773 = vmatpush1.bf16.msra.mxu0 %v2344
    %2774 = vmatprep.subr.bf16.mxu0 %v2353
    %2775 = vmatpush1.bf16.msra.mxu0 %v2352
    %2776 = vmatprep.mubr.bf16.mxu0 %v1177
    %2777 = vmatmul.mubr.bf16.gmra.mrb[0].mxu0 %v1176
    %v2778 = vpop.f32.mrb[0].mxu0
    %v2779 = vadd.f32 0.0, %v2778
    %v2780 = vpop.f32.mrb[0].mxu0
    %v2781 = vadd.f32 0.0, %v2780
    %v2782 = vpop.f32.mrb[0].mxu0
    %v2783 = vadd.f32 0.0, %v2782
    %v2784 = vpop.f32.mrb[0].mxu0
    %v2785 = vadd.f32 0.0, %v2784
    %2786 = vmatprep.mubr.bf16.mxu0 %v1181
    %2787 = vmatmul.mubr.bf16.gmra.mrb[0].mxu0 %v1180
    %v2788 = vpop.f32.mrb[0].mxu0
    %v2789 = vadd.f32 0.0, %v2788
    %v2790 = vpop.f32.mrb[0].mxu0
    %v2791 = vadd.f32 0.0, %v2790
    %v2792 = vpop.f32.mrb[0].mxu0
    %v2793 = vadd.f32 0.0, %v2792
    %v2794 = vpop.f32.mrb[0].mxu0
    %v2795 = vadd.f32 0.0, %v2794
    %2796 = vmatprep.mubr.bf16.mxu0 %v1185
    %2797 = vmatmul.mubr.bf16.gmra.mrb[0].mxu0 %v1184
    %v2798 = vpop.f32.mrb[0].mxu0
    %v2799 = vadd.f32 0.0, %v2798
    %v2800 = vpop.f32.mrb[0].mxu0
    %v2801 = vadd.f32 0.0, %v2800
    %v2802 = vpop.f32.mrb[0].mxu0
    %v2803 = vadd.f32 0.0, %v2802
    %v2804 = vpop.f32.mrb[0].mxu0
    %v2805 = vadd.f32 0.0, %v2804
    %2806 = vmatprep.mubr.bf16.mxu0 %v1189
    %2807 = vmatmul.mubr.bf16.gmra.mrb[0].mxu0 %v1188
    %v2808 = vpop.f32.mrb[0].mxu0
    %v2809 = vadd.f32 0.0, %v2808
    %v2810 = vpop.f32.mrb[0].mxu0
    %v2811 = vadd.f32 0.0, %v2810
    %v2812 = vpop.f32.mrb[0].mxu0
    %v2813 = vadd.f32 0.0, %v2812
    %v2814 = vpop.f32.mrb[0].mxu0
    %v2815 = vadd.f32 0.0, %v2814
    %2816 = vmatprep.mubr.bf16.mxu0 %v1193
    %2817 = vmatmul.mubr.bf16.gmra.mrb[0].mxu0 %v1192
    %v2818 = vpop.f32.mrb[0].mxu0
    %v2819 = vadd.f32 0.0, %v2818
    %v2820 = vpop.f32.mrb[0].mxu0
    %v2821 = vadd.f32 0.0, %v2820
    %v2822 = vpop.f32.mrb[0].mxu0
    %v2823 = vadd.f32 0.0, %v2822
    %v2824 = vpop.f32.mrb[0].mxu0
    %v2825 = vadd.f32 0.0, %v2824
    %2826 = vmatprep.mubr.bf16.mxu0 %v1197
    %2827 = vmatmul.mubr.bf16.gmra.mrb[0].mxu0 %v1196
    %v2828 = vpop.f32.mrb[0].mxu0
    %v2829 = vadd.f32 0.0, %v2828
    %v2830 = vpop.f32.mrb[0].mxu0
    %v2831 = vadd.f32 0.0, %v2830
    %v2832 = vpop.f32.mrb[0].mxu0
    %v2833 = vadd.f32 0.0, %v2832
    %v2834 = vpop.f32.mrb[0].mxu0
    %v2835 = vadd.f32 0.0, %v2834
    %2836 = vmatprep.mubr.bf16.mxu0 %v1201
    %2837 = vmatmul.mubr.bf16.gmra.mrb[0].mxu0 %v1200
    %v2838 = vpop.f32.mrb[0].mxu0
    %v2839 = vadd.f32 0.0, %v2838
    %v2840 = vpop.f32.mrb[0].mxu0
    %v2841 = vadd.f32 0.0, %v2840
    %v2842 = vpop.f32.mrb[0].mxu0
    %v2843 = vadd.f32 0.0, %v2842
    %v2844 = vpop.f32.mrb[0].mxu0
    %v2845 = vadd.f32 0.0, %v2844
    %2846 = vmatprep.mubr.bf16.mxu0 %v1205
    %2847 = vmatmul.mubr.bf16.gmra.mrb[0].mxu0 %v1204
    %v2848 = vpop.f32.mrb[0].mxu0
    %v2849 = vadd.f32 0.0, %v2848
    %v2850 = vpop.f32.mrb[0].mxu0
    %v2851 = vadd.f32 0.0, %v2850
    %v2852 = vpop.f32.mrb[0].mxu0
    %v2853 = vadd.f32 0.0, %v2852
    %v2854 = vpop.f32.mrb[0].mxu0
    %v2855 = vadd.f32 0.0, %v2854
    %2856 = vdwg.mxu0
    %2857 = vmatprep.subr.bf16.mxu0 %v2361
    %2858 = vmatpush1.bf16.msra.mxu0 %v2360
    %2859 = vmatprep.subr.bf16.mxu0 %v2369
    %2860 = vmatpush1.bf16.msra.mxu0 %v2368
    %2861 = vmatprep.subr.bf16.mxu0 %v2377
    %2862 = vmatpush1.bf16.msra.mxu0 %v2376
    %2863 = vmatprep.subr.bf16.mxu0 %v2385
    %2864 = vmatpush1.bf16.msra.mxu0 %v2384
    %2865 = vmatprep.subr.bf16.mxu0 %v2393
    %2866 = vmatpush1.bf16.msra.mxu0 %v2392
    %2867 = vmatprep.subr.bf16.mxu0 %v2401
    %2868 = vmatpush1.bf16.msra.mxu0 %v2400
    %2869 = vmatprep.subr.bf16.mxu0 %v2409
    %2870 = vmatpush1.bf16.msra.mxu0 %v2408
    %2871 = vmatprep.subr.bf16.mxu0 %v2417
    %2872 = vmatpush1.bf16.msra.mxu0 %v2416
    %2873 = vmatprep.subr.bf16.mxu0 %v2425
    %2874 = vmatpush1.bf16.msra.mxu0 %v2424
    %2875 = vmatprep.subr.bf16.mxu0 %v2433
    %2876 = vmatpush1.bf16.msra.mxu0 %v2432
    %2877 = vmatprep.subr.bf16.mxu0 %v2441
    %2878 = vmatpush1.bf16.msra.mxu0 %v2440
    %2879 = vmatprep.subr.bf16.mxu0 %v2449
    %2880 = vmatpush1.bf16.msra.mxu0 %v2448
    %2881 = vmatprep.subr.bf16.mxu0 %v2457
    %2882 = vmatpush1.bf16.msra.mxu0 %v2456
    %2883 = vmatprep.subr.bf16.mxu0 %v2465
    %2884 = vmatpush1.bf16.msra.mxu0 %v2464
    %2885 = vmatprep.subr.bf16.mxu0 %v2473
    %2886 = vmatpush1.bf16.msra.mxu0 %v2472
    %2887 = vmatprep.subr.bf16.mxu0 %v2481
    %2888 = vmatpush1.bf16.msra.mxu0 %v2480
    %2889 = vmatprep.mubr.bf16.mxu0 %v1179
    %2890 = vmatmul.mubr.bf16.gmra.mrb[0].mxu0 %v1178
    %v2891 = vpop.f32.mrb[0].mxu0
    %v2892 = vadd.f32 %v2779, %v2891
    %v2893 = vpop.f32.mrb[0].mxu0
    %v2894 = vadd.f32 %v2781, %v2893
    %v2895 = vpop.f32.mrb[0].mxu0
    %v2896 = vadd.f32 %v2783, %v2895
    %v2897 = vpop.f32.mrb[0].mxu0
    %v2898 = vadd.f32 %v2785, %v2897
    %2899 = vmatprep.mubr.bf16.mxu0 %v1183
    %2900 = vmatmul.mubr.bf16.gmra.mrb[0].mxu0 %v1182
    %v2901 = vpop.f32.mrb[0].mxu0
    %v2902 = vadd.f32 %v2789, %v2901
    %v2903 = vpop.f32.mrb[0].mxu0
    %v2904 = vadd.f32 %v2791, %v2903
    %v2905 = vpop.f32.mrb[0].mxu0
    %v2906 = vadd.f32 %v2793, %v2905
    %v2907 = vpop.f32.mrb[0].mxu0
    %v2908 = vadd.f32 %v2795, %v2907
    %2909 = vmatprep.mubr.bf16.mxu0 %v1187
    %2910 = vmatmul.mubr.bf16.gmra.mrb[0].mxu0 %v1186
    %v2911 = vpop.f32.mrb[0].mxu0
    %v2912 = vadd.f32 %v2799, %v2911
    %v2913 = vpop.f32.mrb[0].mxu0
    %v2914 = vadd.f32 %v2801, %v2913
    %v2915 = vpop.f32.mrb[0].mxu0
    %v2916 = vadd.f32 %v2803, %v2915
    %v2917 = vpop.f32.mrb[0].mxu0
    %v2918 = vadd.f32 %v2805, %v2917
    %2919 = vmatprep.mubr.bf16.mxu0 %v1191
    %2920 = vmatmul.mubr.bf16.gmra.mrb[0].mxu0 %v1190
    %v2921 = vpop.f32.mrb[0].mxu0
    %v2922 = vadd.f32 %v2809, %v2921
    %v2923 = vpop.f32.mrb[0].mxu0
    %v2924 = vadd.f32 %v2811, %v2923
    %v2925 = vpop.f32.mrb[0].mxu0
    %v2926 = vadd.f32 %v2813, %v2925
    %v2927 = vpop.f32.mrb[0].mxu0
    %v2928 = vadd.f32 %v2815, %v2927
    %2929 = vmatprep.mubr.bf16.mxu0 %v1195
    %2930 = vmatmul.mubr.bf16.gmra.mrb[0].mxu0 %v1194
    %v2931 = vpop.f32.mrb[0].mxu0
    %v2932 = vadd.f32 %v2819, %v2931
    %v2933 = vpop.f32.mrb[0].mxu0
    %v2934 = vadd.f32 %v2821, %v2933
    %v2935 = vpop.f32.mrb[0].mxu0
    %v2936 = vadd.f32 %v2823, %v2935
    %v2937 = vpop.f32.mrb[0].mxu0
    %v2938 = vadd.f32 %v2825, %v2937
    %2939 = vmatprep.mubr.bf16.mxu0 %v1199
    %2940 = vmatmul.mubr.bf16.gmra.mrb[0].mxu0 %v1198
    %v2941 = vpop.f32.mrb[0].mxu0
    %v2942 = vadd.f32 %v2829, %v2941
    %v2943 = vpop.f32.mrb[0].mxu0
    %v2944 = vadd.f32 %v2831, %v2943
    %v2945 = vpop.f32.mrb[0].mxu0
    %v2946 = vadd.f32 %v2833, %v2945
    %v2947 = vpop.f32.mrb[0].mxu0
    %v2948 = vadd.f32 %v2835, %v2947
    %2949 = vmatprep.mubr.bf16.mxu0 %v1203
    %2950 = vmatmul.mubr.bf16.gmra.mrb[0].mxu0 %v1202
    %v2951 = vpop.f32.mrb[0].mxu0
    %v2952 = vadd.f32 %v2839, %v2951
    %v2953 = vpop.f32.mrb[0].mxu0
    %v2954 = vadd.f32 %v2841, %v2953
    %v2955 = vpop.f32.mrb[0].mxu0
    %v2956 = vadd.f32 %v2843, %v2955
    %v2957 = vpop.f32.mrb[0].mxu0
    %v2958 = vadd.f32 %v2845, %v2957
    %2959 = vmatprep.mubr.bf16.mxu0 %v1207
    %2960 = vmatmul.mubr.bf16.gmra.mrb[0].mxu0 %v1206
    %v2961 = vpop.f32.mrb[0].mxu0
    %v2962 = vadd.f32 %v2849, %v2961
    %v2963 = vpop.f32.mrb[0].mxu0
    %v2964 = vadd.f32 %v2851, %v2963
    %v2965 = vpop.f32.mrb[0].mxu0
    %v2966 = vadd.f32 %v2853, %v2965
    %v2967 = vpop.f32.mrb[0].mxu0
    %v2968 = vadd.f32 %v2855, %v2967
    %2969 = vdwg.mxu0
    %2970 = vmatprep.subr.bf16.mxu0 %v2235
    %2971 = vmatpush1.bf16.msra.mxu0 %v2234
    %2972 = vmatprep.subr.bf16.mxu0 %v2243
    %2973 = vmatpush1.bf16.msra.mxu0 %v2242
    %2974 = vmatprep.subr.bf16.mxu0 %v2251
    %2975 = vmatpush1.bf16.msra.mxu0 %v2250
    %2976 = vmatprep.subr.bf16.mxu0 %v2259
    %2977 = vmatpush1.bf16.msra.mxu0 %v2258
    %2978 = vmatprep.subr.bf16.mxu0 %v2267
    %2979 = vmatpush1.bf16.msra.mxu0 %v2266
    %2980 = vmatprep.subr.bf16.mxu0 %v2275
    %2981 = vmatpush1.bf16.msra.mxu0 %v2274
    %2982 = vmatprep.subr.bf16.mxu0 %v2283
    %2983 = vmatpush1.bf16.msra.mxu0 %v2282
    %2984 = vmatprep.subr.bf16.mxu0 %v2291
    %2985 = vmatpush1.bf16.msra.mxu0 %v2290
    %2986 = vmatprep.subr.bf16.mxu0 %v2299
    %2987 = vmatpush1.bf16.msra.mxu0 %v2298
    %2988 = vmatprep.subr.bf16.mxu0 %v2307
    %2989 = vmatpush1.bf16.msra.mxu0 %v2306
    %2990 = vmatprep.subr.bf16.mxu0 %v2315
    %2991 = vmatpush1.bf16.msra.mxu0 %v2314
    %2992 = vmatprep.subr.bf16.mxu0 %v2323
    %2993 = vmatpush1.bf16.msra.mxu0 %v2322
    %2994 = vmatprep.subr.bf16.mxu0 %v2331
    %2995 = vmatpush1.bf16.msra.mxu0 %v2330
    %2996 = vmatprep.subr.bf16.mxu0 %v2339
    %2997 = vmatpush1.bf16.msra.mxu0 %v2338
    %2998 = vmatprep.subr.bf16.mxu0 %v2347
    %2999 = vmatpush1.bf16.msra.mxu0 %v2346
    %3000 = vmatprep.subr.bf16.mxu0 %v2355
    %3001 = vmatpush1.bf16.msra.mxu0 %v2354
    %3002 = vmatprep.mubr.bf16.mxu0 %v1177
    %3003 = vmatmul.mubr.bf16.gmra.mrb[0].mxu0 %v1176
    %v3004 = vpop.f32.mrb[0].mxu0
    %v3005 = vadd.f32 0.0, %v3004
    %v3006 = vpop.f32.mrb[0].mxu0
    %v3007 = vadd.f32 0.0, %v3006
    %v3008 = vpop.f32.mrb[0].mxu0
    %v3009 = vadd.f32 0.0, %v3008
    %v3010 = vpop.f32.mrb[0].mxu0
    %v3011 = vadd.f32 0.0, %v3010
    %3012 = vmatprep.mubr.bf16.mxu0 %v1181
    %3013 = vmatmul.mubr.bf16.gmra.mrb[0].mxu0 %v1180
    %v3014 = vpop.f32.mrb[0].mxu0
    %v3015 = vadd.f32 0.0, %v3014
    %v3016 = vpop.f32.mrb[0].mxu0
    %v3017 = vadd.f32 0.0, %v3016
    %v3018 = vpop.f32.mrb[0].mxu0
    %v3019 = vadd.f32 0.0, %v3018
    %v3020 = vpop.f32.mrb[0].mxu0
    %v3021 = vadd.f32 0.0, %v3020
    %3022 = vmatprep.mubr.bf16.mxu0 %v1185
    %3023 = vmatmul.mubr.bf16.gmra.mrb[0].mxu0 %v1184
    %v3024 = vpop.f32.mrb[0].mxu0
    %v3025 = vadd.f32 0.0, %v3024
    %v3026 = vpop.f32.mrb[0].mxu0
    %v3027 = vadd.f32 0.0, %v3026
    %v3028 = vpop.f32.mrb[0].mxu0
    %v3029 = vadd.f32 0.0, %v3028
    %v3030 = vpop.f32.mrb[0].mxu0
    %v3031 = vadd.f32 0.0, %v3030
    %3032 = vmatprep.mubr.bf16.mxu0 %v1189
    %3033 = vmatmul.mubr.bf16.gmra.mrb[0].mxu0 %v1188
    %v3034 = vpop.f32.mrb[0].mxu0
    %v3035 = vadd.f32 0.0, %v3034
    %v3036 = vpop.f32.mrb[0].mxu0
    %v3037 = vadd.f32 0.0, %v3036
    %v3038 = vpop.f32.mrb[0].mxu0
    %v3039 = vadd.f32 0.0, %v3038
    %v3040 = vpop.f32.mrb[0].mxu0
    %v3041 = vadd.f32 0.0, %v3040
    %3042 = vmatprep.mubr.bf16.mxu0 %v1193
    %3043 = vmatmul.mubr.bf16.gmra.mrb[0].mxu0 %v1192
    %v3044 = vpop.f32.mrb[0].mxu0
    %v3045 = vadd.f32 0.0, %v3044
    %v3046 = vpop.f32.mrb[0].mxu0
    %v3047 = vadd.f32 0.0, %v3046
    %v3048 = vpop.f32.mrb[0].mxu0
    %v3049 = vadd.f32 0.0, %v3048
    %v3050 = vpop.f32.mrb[0].mxu0
    %v3051 = vadd.f32 0.0, %v3050
    %3052 = vmatprep.mubr.bf16.mxu0 %v1197
    %3053 = vmatmul.mubr.bf16.gmra.mrb[0].mxu0 %v1196
    %v3054 = vpop.f32.mrb[0].mxu0
    %v3055 = vadd.f32 0.0, %v3054
    %v3056 = vpop.f32.mrb[0].mxu0
    %v3057 = vadd.f32 0.0, %v3056
    %v3058 = vpop.f32.mrb[0].mxu0
    %v3059 = vadd.f32 0.0, %v3058
    %v3060 = vpop.f32.mrb[0].mxu0
    %v3061 = vadd.f32 0.0, %v3060
    %3062 = vmatprep.mubr.bf16.mxu0 %v1201
    %3063 = vmatmul.mubr.bf16.gmra.mrb[0].mxu0 %v1200
    %v3064 = vpop.f32.mrb[0].mxu0
    %v3065 = vadd.f32 0.0, %v3064
    %v3066 = vpop.f32.mrb[0].mxu0
    %v3067 = vadd.f32 0.0, %v3066
    %v3068 = vpop.f32.mrb[0].mxu0
    %v3069 = vadd.f32 0.0, %v3068
    %v3070 = vpop.f32.mrb[0].mxu0
    %v3071 = vadd.f32 0.0, %v3070
    %3072 = vmatprep.mubr.bf16.mxu0 %v1205
    %3073 = vmatmul.mubr.bf16.gmra.mrb[0].mxu0 %v1204
    %v3074 = vpop.f32.mrb[0].mxu0
    %v3075 = vadd.f32 0.0, %v3074
    %v3076 = vpop.f32.mrb[0].mxu0
    %v3077 = vadd.f32 0.0, %v3076
    %v3078 = vpop.f32.mrb[0].mxu0
    %v3079 = vadd.f32 0.0, %v3078
    %v3080 = vpop.f32.mrb[0].mxu0
    %v3081 = vadd.f32 0.0, %v3080
    %3082 = vdwg.mxu0
    %3083 = vmatprep.subr.bf16.mxu0 %v2363
    %3084 = vmatpush1.bf16.msra.mxu0 %v2362
    %3085 = vmatprep.subr.bf16.mxu0 %v2371
    %3086 = vmatpush1.bf16.msra.mxu0 %v2370
    %3087 = vmatprep.subr.bf16.mxu0 %v2379
    %3088 = vmatpush1.bf16.msra.mxu0 %v2378
    %3089 = vmatprep.subr.bf16.mxu0 %v2387
    %3090 = vmatpush1.bf16.msra.mxu0 %v2386
    %3091 = vmatprep.subr.bf16.mxu0 %v2395
    %3092 = vmatpush1.bf16.msra.mxu0 %v2394
    %3093 = vmatprep.subr.bf16.mxu0 %v2403
    %3094 = vmatpush1.bf16.msra.mxu0 %v2402
    %3095 = vmatprep.subr.bf16.mxu0 %v2411
    %3096 = vmatpush1.bf16.msra.mxu0 %v2410
    %3097 = vmatprep.subr.bf16.mxu0 %v2419
    %3098 = vmatpush1.bf16.msra.mxu0 %v2418
    %3099 = vmatprep.subr.bf16.mxu0 %v2427
    %3100 = vmatpush1.bf16.msra.mxu0 %v2426
    %3101 = vmatprep.subr.bf16.mxu0 %v2435
    %3102 = vmatpush1.bf16.msra.mxu0 %v2434
    %3103 = vmatprep.subr.bf16.mxu0 %v2443
    %3104 = vmatpush1.bf16.msra.mxu0 %v2442
    %3105 = vmatprep.subr.bf16.mxu0 %v2451
    %3106 = vmatpush1.bf16.msra.mxu0 %v2450
    %3107 = vmatprep.subr.bf16.mxu0 %v2459
    %3108 = vmatpush1.bf16.msra.mxu0 %v2458
    %3109 = vmatprep.subr.bf16.mxu0 %v2467
    %3110 = vmatpush1.bf16.msra.mxu0 %v2466
    %3111 = vmatprep.subr.bf16.mxu0 %v2475
    %3112 = vmatpush1.bf16.msra.mxu0 %v2474
    %3113 = vmatprep.subr.bf16.mxu0 %v2483
    %3114 = vmatpush1.bf16.msra.mxu0 %v2482
    %3115 = vmatprep.mubr.bf16.mxu0 %v1179
    %3116 = vmatmul.mubr.bf16.gmra.mrb[0].mxu0 %v1178
    %v3117 = vpop.f32.mrb[0].mxu0
    %v3118 = vadd.f32 %v3005, %v3117
    %v3119 = vpop.f32.mrb[0].mxu0
    %v3120 = vadd.f32 %v3007, %v3119
    %v3121 = vpop.f32.mrb[0].mxu0
    %v3122 = vadd.f32 %v3009, %v3121
    %v3123 = vpop.f32.mrb[0].mxu0
    %v3124 = vadd.f32 %v3011, %v3123
    %3125 = vmatprep.mubr.bf16.mxu0 %v1183
    %3126 = vmatmul.mubr.bf16.gmra.mrb[0].mxu0 %v1182
    %v3127 = vpop.f32.mrb[0].mxu0
    %v3128 = vadd.f32 %v3015, %v3127
    %v3129 = vpop.f32.mrb[0].mxu0
    %v3130 = vadd.f32 %v3017, %v3129
    %v3131 = vpop.f32.mrb[0].mxu0
    %v3132 = vadd.f32 %v3019, %v3131
    %v3133 = vpop.f32.mrb[0].mxu0
    %v3134 = vadd.f32 %v3021, %v3133
    %3135 = vmatprep.mubr.bf16.mxu0 %v1187
    %3136 = vmatmul.mubr.bf16.gmra.mrb[0].mxu0 %v1186
    %v3137 = vpop.f32.mrb[0].mxu0
    %v3138 = vadd.f32 %v3025, %v3137
    %v3139 = vpop.f32.mrb[0].mxu0
    %v3140 = vadd.f32 %v3027, %v3139
    %v3141 = vpop.f32.mrb[0].mxu0
    %v3142 = vadd.f32 %v3029, %v3141
    %v3143 = vpop.f32.mrb[0].mxu0
    %v3144 = vadd.f32 %v3031, %v3143
    %3145 = vmatprep.mubr.bf16.mxu0 %v1191
    %3146 = vmatmul.mubr.bf16.gmra.mrb[0].mxu0 %v1190
    %v3147 = vpop.f32.mrb[0].mxu0
    %v3148 = vadd.f32 %v3035, %v3147
    %v3149 = vpop.f32.mrb[0].mxu0
    %v3150 = vadd.f32 %v3037, %v3149
    %v3151 = vpop.f32.mrb[0].mxu0
    %v3152 = vadd.f32 %v3039, %v3151
    %v3153 = vpop.f32.mrb[0].mxu0
    %v3154 = vadd.f32 %v3041, %v3153
    %3155 = vmatprep.mubr.bf16.mxu0 %v1195
    %3156 = vmatmul.mubr.bf16.gmra.mrb[0].mxu0 %v1194
    %v3157 = vpop.f32.mrb[0].mxu0
    %v3158 = vadd.f32 %v3045, %v3157
    %v3159 = vpop.f32.mrb[0].mxu0
    %v3160 = vadd.f32 %v3047, %v3159
    %v3161 = vpop.f32.mrb[0].mxu0
    %v3162 = vadd.f32 %v3049, %v3161
    %v3163 = vpop.f32.mrb[0].mxu0
    %v3164 = vadd.f32 %v3051, %v3163
    %3165 = vmatprep.mubr.bf16.mxu0 %v1199
    %3166 = vmatmul.mubr.bf16.gmra.mrb[0].mxu0 %v1198
    %v3167 = vpop.f32.mrb[0].mxu0
    %v3168 = vadd.f32 %v3055, %v3167
    %v3169 = vpop.f32.mrb[0].mxu0
    %v3170 = vadd.f32 %v3057, %v3169
    %v3171 = vpop.f32.mrb[0].mxu0
    %v3172 = vadd.f32 %v3059, %v3171
    %v3173 = vpop.f32.mrb[0].mxu0
    %v3174 = vadd.f32 %v3061, %v3173
    %3175 = vmatprep.mubr.bf16.mxu0 %v1203
    %3176 = vmatmul.mubr.bf16.gmra.mrb[0].mxu0 %v1202
    %v3177 = vpop.f32.mrb[0].mxu0
    %v3178 = vadd.f32 %v3065, %v3177
    %v3179 = vpop.f32.mrb[0].mxu0
    %v3180 = vadd.f32 %v3067, %v3179
    %v3181 = vpop.f32.mrb[0].mxu0
    %v3182 = vadd.f32 %v3069, %v3181
    %v3183 = vpop.f32.mrb[0].mxu0
    %v3184 = vadd.f32 %v3071, %v3183
    %3185 = vmatprep.mubr.bf16.mxu0 %v1207
    %3186 = vmatmul.mubr.bf16.gmra.mrb[0].mxu0 %v1206
    %v3187 = vpop.f32.mrb[0].mxu0
    %v3188 = vadd.f32 %v3075, %v3187
    %v3189 = vpop.f32.mrb[0].mxu0
    %v3190 = vadd.f32 %v3077, %v3189
    %v3191 = vpop.f32.mrb[0].mxu0
    %v3192 = vadd.f32 %v3079, %v3191
    %v3193 = vpop.f32.mrb[0].mxu0
    %v3194 = vadd.f32 %v3081, %v3193
    %3195 = vdwg.mxu0
    %3196 = vmatprep.subr.bf16.mxu0 %v2237
    %3197 = vmatpush1.bf16.msra.mxu0 %v2236
    %3198 = vmatprep.subr.bf16.mxu0 %v2245
    %3199 = vmatpush1.bf16.msra.mxu0 %v2244
    %3200 = vmatprep.subr.bf16.mxu0 %v2253
    %3201 = vmatpush1.bf16.msra.mxu0 %v2252
    %3202 = vmatprep.subr.bf16.mxu0 %v2261
    %3203 = vmatpush1.bf16.msra.mxu0 %v2260
    %3204 = vmatprep.subr.bf16.mxu0 %v2269
    %3205 = vmatpush1.bf16.msra.mxu0 %v2268
    %3206 = vmatprep.subr.bf16.mxu0 %v2277
    %3207 = vmatpush1.bf16.msra.mxu0 %v2276
    %3208 = vmatprep.subr.bf16.mxu0 %v2285
    %3209 = vmatpush1.bf16.msra.mxu0 %v2284
    %3210 = vmatprep.subr.bf16.mxu0 %v2293
    %3211 = vmatpush1.bf16.msra.mxu0 %v2292
    %3212 = vmatprep.subr.bf16.mxu0 %v2301
    %3213 = vmatpush1.bf16.msra.mxu0 %v2300
    %3214 = vmatprep.subr.bf16.mxu0 %v2309
    %3215 = vmatpush1.bf16.msra.mxu0 %v2308
    %3216 = vmatprep.subr.bf16.mxu0 %v2317
    %3217 = vmatpush1.bf16.msra.mxu0 %v2316
    %3218 = vmatprep.subr.bf16.mxu0 %v2325
    %3219 = vmatpush1.bf16.msra.mxu0 %v2324
    %3220 = vmatprep.subr.bf16.mxu0 %v2333
    %3221 = vmatpush1.bf16.msra.mxu0 %v2332
    %3222 = vmatprep.subr.bf16.mxu0 %v2341
    %3223 = vmatpush1.bf16.msra.mxu0 %v2340
    %3224 = vmatprep.subr.bf16.mxu0 %v2349
    %3225 = vmatpush1.bf16.msra.mxu0 %v2348
    %3226 = vmatprep.subr.bf16.mxu0 %v2357
    %3227 = vmatpush1.bf16.msra.mxu0 %v2356
    %3228 = vmatprep.mubr.bf16.mxu0 %v1177
    %3229 = vmatmul.mubr.bf16.gmra.mrb[0].mxu0 %v1176
    %v3230 = vpop.f32.mrb[0].mxu0
    %v3231 = vadd.f32 0.0, %v3230
    %v3232 = vpop.f32.mrb[0].mxu0
    %v3233 = vadd.f32 0.0, %v3232
    %v3234 = vpop.f32.mrb[0].mxu0
    %v3235 = vadd.f32 0.0, %v3234
    %v3236 = vpop.f32.mrb[0].mxu0
    %v3237 = vadd.f32 0.0, %v3236
    %3238 = vmatprep.mubr.bf16.mxu0 %v1181
    %3239 = vmatmul.mubr.bf16.gmra.mrb[0].mxu0 %v1180
    %v3240 = vpop.f32.mrb[0].mxu0
    %v3241 = vadd.f32 0.0, %v3240
    %v3242 = vpop.f32.mrb[0].mxu0
    %v3243 = vadd.f32 0.0, %v3242
    %v3244 = vpop.f32.mrb[0].mxu0
    %v3245 = vadd.f32 0.0, %v3244
    %v3246 = vpop.f32.mrb[0].mxu0
    %v3247 = vadd.f32 0.0, %v3246
    %3248 = vmatprep.mubr.bf16.mxu0 %v1185
    %3249 = vmatmul.mubr.bf16.gmra.mrb[0].mxu0 %v1184
    %v3250 = vpop.f32.mrb[0].mxu0
    %v3251 = vadd.f32 0.0, %v3250
    %v3252 = vpop.f32.mrb[0].mxu0
    %v3253 = vadd.f32 0.0, %v3252
    %v3254 = vpop.f32.mrb[0].mxu0
    %v3255 = vadd.f32 0.0, %v3254
    %v3256 = vpop.f32.mrb[0].mxu0
    %v3257 = vadd.f32 0.0, %v3256
    %3258 = vmatprep.mubr.bf16.mxu0 %v1189
    %3259 = vmatmul.mubr.bf16.gmra.mrb[0].mxu0 %v1188
    %v3260 = vpop.f32.mrb[0].mxu0
    %v3261 = vadd.f32 0.0, %v3260
    %v3262 = vpop.f32.mrb[0].mxu0
    %v3263 = vadd.f32 0.0, %v3262
    %v3264 = vpop.f32.mrb[0].mxu0
    %v3265 = vadd.f32 0.0, %v3264
    %v3266 = vpop.f32.mrb[0].mxu0
    %v3267 = vadd.f32 0.0, %v3266
    %3268 = vmatprep.mubr.bf16.mxu0 %v1193
    %3269 = vmatmul.mubr.bf16.gmra.mrb[0].mxu0 %v1192
    %v3270 = vpop.f32.mrb[0].mxu0
    %v3271 = vadd.f32 0.0, %v3270
    %v3272 = vpop.f32.mrb[0].mxu0
    %v3273 = vadd.f32 0.0, %v3272
    %v3274 = vpop.f32.mrb[0].mxu0
    %v3275 = vadd.f32 0.0, %v3274
    %v3276 = vpop.f32.mrb[0].mxu0
    %v3277 = vadd.f32 0.0, %v3276
    %3278 = vmatprep.mubr.bf16.mxu0 %v1197
    %3279 = vmatmul.mubr.bf16.gmra.mrb[0].mxu0 %v1196
    %v3280 = vpop.f32.mrb[0].mxu0
    %v3281 = vadd.f32 0.0, %v3280
    %v3282 = vpop.f32.mrb[0].mxu0
    %v3283 = vadd.f32 0.0, %v3282
    %v3284 = vpop.f32.mrb[0].mxu0
    %v3285 = vadd.f32 0.0, %v3284
    %v3286 = vpop.f32.mrb[0].mxu0
    %v3287 = vadd.f32 0.0, %v3286
    %3288 = vmatprep.mubr.bf16.mxu0 %v1201
    %3289 = vmatmul.mubr.bf16.gmra.mrb[0].mxu0 %v1200
    %v3290 = vpop.f32.mrb[0].mxu0
    %v3291 = vadd.f32 0.0, %v3290
    %v3292 = vpop.f32.mrb[0].mxu0
    %v3293 = vadd.f32 0.0, %v3292
    %v3294 = vpop.f32.mrb[0].mxu0
    %v3295 = vadd.f32 0.0, %v3294
    %v3296 = vpop.f32.mrb[0].mxu0
    %v3297 = vadd.f32 0.0, %v3296
    %3298 = vmatprep.mubr.bf16.mxu0 %v1205
    %3299 = vmatmul.mubr.bf16.gmra.mrb[0].mxu0 %v1204
    %v3300 = vpop.f32.mrb[0].mxu0
    %v3301 = vadd.f32 0.0, %v3300
    %v3302 = vpop.f32.mrb[0].mxu0
    %v3303 = vadd.f32 0.0, %v3302
    %v3304 = vpop.f32.mrb[0].mxu0
    %v3305 = vadd.f32 0.0, %v3304
    %v3306 = vpop.f32.mrb[0].mxu0
    %v3307 = vadd.f32 0.0, %v3306
    %3308 = vdwg.mxu0
    %3309 = vmatprep.subr.bf16.mxu0 %v2365
    %3310 = vmatpush1.bf16.msra.mxu0 %v2364
    %3311 = vmatprep.subr.bf16.mxu0 %v2373
    %3312 = vmatpush1.bf16.msra.mxu0 %v2372
    %3313 = vmatprep.subr.bf16.mxu0 %v2381
    %3314 = vmatpush1.bf16.msra.mxu0 %v2380
    %3315 = vmatprep.subr.bf16.mxu0 %v2389
    %3316 = vmatpush1.bf16.msra.mxu0 %v2388
    %3317 = vmatprep.subr.bf16.mxu0 %v2397
    %3318 = vmatpush1.bf16.msra.mxu0 %v2396
    %3319 = vmatprep.subr.bf16.mxu0 %v2405
    %3320 = vmatpush1.bf16.msra.mxu0 %v2404
    %3321 = vmatprep.subr.bf16.mxu0 %v2413
    %3322 = vmatpush1.bf16.msra.mxu0 %v2412
    %3323 = vmatprep.subr.bf16.mxu0 %v2421
    %3324 = vmatpush1.bf16.msra.mxu0 %v2420
    %3325 = vmatprep.subr.bf16.mxu0 %v2429
    %3326 = vmatpush1.bf16.msra.mxu0 %v2428
    %3327 = vmatprep.subr.bf16.mxu0 %v2437
    %3328 = vmatpush1.bf16.msra.mxu0 %v2436
    %3329 = vmatprep.subr.bf16.mxu0 %v2445
    %3330 = vmatpush1.bf16.msra.mxu0 %v2444
    %3331 = vmatprep.subr.bf16.mxu0 %v2453
    %3332 = vmatpush1.bf16.msra.mxu0 %v2452
    %3333 = vmatprep.subr.bf16.mxu0 %v2461
    %3334 = vmatpush1.bf16.msra.mxu0 %v2460
    %3335 = vmatprep.subr.bf16.mxu0 %v2469
    %3336 = vmatpush1.bf16.msra.mxu0 %v2468
    %3337 = vmatprep.subr.bf16.mxu0 %v2477
    %3338 = vmatpush1.bf16.msra.mxu0 %v2476
    %3339 = vmatprep.subr.bf16.mxu0 %v2485
    %3340 = vmatpush1.bf16.msra.mxu0 %v2484
    %3341 = vmatprep.mubr.bf16.mxu0 %v1179
    %3342 = vmatmul.mubr.bf16.gmra.mrb[0].mxu0 %v1178
    %v3343 = vpop.f32.mrb[0].mxu0
    %v3344 = vadd.f32 %v3231, %v3343
    %v3345 = vpop.f32.mrb[0].mxu0
    %v3346 = vadd.f32 %v3233, %v3345
    %v3347 = vpop.f32.mrb[0].mxu0
    %v3348 = vadd.f32 %v3235, %v3347
    %v3349 = vpop.f32.mrb[0].mxu0
    %v3350 = vadd.f32 %v3237, %v3349
    %3351 = vmatprep.mubr.bf16.mxu0 %v1183
    %3352 = vmatmul.mubr.bf16.gmra.mrb[0].mxu0 %v1182
    %v3353 = vpop.f32.mrb[0].mxu0
    %v3354 = vadd.f32 %v3241, %v3353
    %v3355 = vpop.f32.mrb[0].mxu0
    %v3356 = vadd.f32 %v3243, %v3355
    %v3357 = vpop.f32.mrb[0].mxu0
    %v3358 = vadd.f32 %v3245, %v3357
    %v3359 = vpop.f32.mrb[0].mxu0
    %v3360 = vadd.f32 %v3247, %v3359
    %3361 = vmatprep.mubr.bf16.mxu0 %v1187
    %3362 = vmatmul.mubr.bf16.gmra.mrb[0].mxu0 %v1186
    %v3363 = vpop.f32.mrb[0].mxu0
    %v3364 = vadd.f32 %v3251, %v3363
    %v3365 = vpop.f32.mrb[0].mxu0
    %v3366 = vadd.f32 %v3253, %v3365
    %v3367 = vpop.f32.mrb[0].mxu0
    %v3368 = vadd.f32 %v3255, %v3367
    %v3369 = vpop.f32.mrb[0].mxu0
    %v3370 = vadd.f32 %v3257, %v3369
    %3371 = vmatprep.mubr.bf16.mxu0 %v1191
    %3372 = vmatmul.mubr.bf16.gmra.mrb[0].mxu0 %v1190
    %v3373 = vpop.f32.mrb[0].mxu0
    %v3374 = vadd.f32 %v3261, %v3373
    %v3375 = vpop.f32.mrb[0].mxu0
    %v3376 = vadd.f32 %v3263, %v3375
    %v3377 = vpop.f32.mrb[0].mxu0
    %v3378 = vadd.f32 %v3265, %v3377
    %v3379 = vpop.f32.mrb[0].mxu0
    %v3380 = vadd.f32 %v3267, %v3379
    %3381 = vmatprep.mubr.bf16.mxu0 %v1195
    %3382 = vmatmul.mubr.bf16.gmra.mrb[0].mxu0 %v1194
    %v3383 = vpop.f32.mrb[0].mxu0
    %v3384 = vadd.f32 %v3271, %v3383
    %v3385 = vpop.f32.mrb[0].mxu0
    %v3386 = vadd.f32 %v3273, %v3385
    %v3387 = vpop.f32.mrb[0].mxu0
    %v3388 = vadd.f32 %v3275, %v3387
    %v3389 = vpop.f32.mrb[0].mxu0
    %v3390 = vadd.f32 %v3277, %v3389
    %3391 = vmatprep.mubr.bf16.mxu0 %v1199
    %3392 = vmatmul.mubr.bf16.gmra.mrb[0].mxu0 %v1198
    %v3393 = vpop.f32.mrb[0].mxu0
    %v3394 = vadd.f32 %v3281, %v3393
    %v3395 = vpop.f32.mrb[0].mxu0
    %v3396 = vadd.f32 %v3283, %v3395
    %v3397 = vpop.f32.mrb[0].mxu0
    %v3398 = vadd.f32 %v3285, %v3397
    %v3399 = vpop.f32.mrb[0].mxu0
    %v3400 = vadd.f32 %v3287, %v3399
    %3401 = vmatprep.mubr.bf16.mxu0 %v1203
    %3402 = vmatmul.mubr.bf16.gmra.mrb[0].mxu0 %v1202
    %v3403 = vpop.f32.mrb[0].mxu0
    %v3404 = vadd.f32 %v3291, %v3403
    %v3405 = vpop.f32.mrb[0].mxu0
    %v3406 = vadd.f32 %v3293, %v3405
    %v3407 = vpop.f32.mrb[0].mxu0
    %v3408 = vadd.f32 %v3295, %v3407
    %v3409 = vpop.f32.mrb[0].mxu0
    %v3410 = vadd.f32 %v3297, %v3409
    %3411 = vmatprep.mubr.bf16.mxu0 %v1207
    %3412 = vmatmul.mubr.bf16.gmra.mrb[0].mxu0 %v1206
    %v3413 = vpop.f32.mrb[0].mxu0
    %v3414 = vadd.f32 %v3301, %v3413
    %v3415 = vpop.f32.mrb[0].mxu0
    %v3416 = vadd.f32 %v3303, %v3415
    %v3417 = vpop.f32.mrb[0].mxu0
    %v3418 = vadd.f32 %v3305, %v3417
    %v3419 = vpop.f32.mrb[0].mxu0
    %v3420 = vadd.f32 %v3307, %v3419
    %3421 = vdwg.mxu0
    %3422 = vmatprep.subr.bf16.mxu0 %v2239
    %3423 = vmatpush1.bf16.msra.mxu0 %v2238
    %3424 = vmatprep.subr.bf16.mxu0 %v2247
    %3425 = vmatpush1.bf16.msra.mxu0 %v2246
    %3426 = vmatprep.subr.bf16.mxu0 %v2255
    %3427 = vmatpush1.bf16.msra.mxu0 %v2254
    %3428 = vmatprep.subr.bf16.mxu0 %v2263
    %3429 = vmatpush1.bf16.msra.mxu0 %v2262
    %3430 = vmatprep.subr.bf16.mxu0 %v2271
    %3431 = vmatpush1.bf16.msra.mxu0 %v2270
    %3432 = vmatprep.subr.bf16.mxu0 %v2279
    %3433 = vmatpush1.bf16.msra.mxu0 %v2278
    %3434 = vmatprep.subr.bf16.mxu0 %v2287
    %3435 = vmatpush1.bf16.msra.mxu0 %v2286
    %3436 = vmatprep.subr.bf16.mxu0 %v2295
    %3437 = vmatpush1.bf16.msra.mxu0 %v2294
    %3438 = vmatprep.subr.bf16.mxu0 %v2303
    %3439 = vmatpush1.bf16.msra.mxu0 %v2302
    %3440 = vmatprep.subr.bf16.mxu0 %v2311
    %3441 = vmatpush1.bf16.msra.mxu0 %v2310
    %3442 = vmatprep.subr.bf16.mxu0 %v2319
    %3443 = vmatpush1.bf16.msra.mxu0 %v2318
    %3444 = vmatprep.subr.bf16.mxu0 %v2327
    %3445 = vmatpush1.bf16.msra.mxu0 %v2326
    %3446 = vmatprep.subr.bf16.mxu0 %v2335
    %3447 = vmatpush1.bf16.msra.mxu0 %v2334
    %3448 = vmatprep.subr.bf16.mxu0 %v2343
    %3449 = vmatpush1.bf16.msra.mxu0 %v2342
    %3450 = vmatprep.subr.bf16.mxu0 %v2351
    %3451 = vmatpush1.bf16.msra.mxu0 %v2350
    %3452 = vmatprep.subr.bf16.mxu0 %v2359
    %3453 = vmatpush1.bf16.msra.mxu0 %v2358
    %3454 = vmatprep.mubr.bf16.mxu0 %v1177
    %3455 = vmatmul.mubr.bf16.gmra.mrb[0].mxu0 %v1176
    %v3456 = vpop.f32.mrb[0].mxu0
    %v3457 = vadd.f32 0.0, %v3456
    %v3458 = vpop.f32.mrb[0].mxu0
    %v3459 = vadd.f32 0.0, %v3458
    %v3460 = vpop.f32.mrb[0].mxu0
    %v3461 = vadd.f32 0.0, %v3460
    %v3462 = vpop.f32.mrb[0].mxu0
    %v3463 = vadd.f32 0.0, %v3462
    %3464 = vmatprep.mubr.bf16.mxu0 %v1181
    %3465 = vmatmul.mubr.bf16.gmra.mrb[0].mxu0 %v1180
    %v3466 = vpop.f32.mrb[0].mxu0
    %v3467 = vadd.f32 0.0, %v3466
    %v3468 = vpop.f32.mrb[0].mxu0
    %v3469 = vadd.f32 0.0, %v3468
    %v3470 = vpop.f32.mrb[0].mxu0
    %v3471 = vadd.f32 0.0, %v3470
    %v3472 = vpop.f32.mrb[0].mxu0
    %v3473 = vadd.f32 0.0, %v3472
    %3474 = vmatprep.mubr.bf16.mxu0 %v1185
    %3475 = vmatmul.mubr.bf16.gmra.mrb[0].mxu0 %v1184
    %v3476 = vpop.f32.mrb[0].mxu0
    %v3477 = vadd.f32 0.0, %v3476
    %v3478 = vpop.f32.mrb[0].mxu0
    %v3479 = vadd.f32 0.0, %v3478
    %v3480 = vpop.f32.mrb[0].mxu0
    %v3481 = vadd.f32 0.0, %v3480
    %v3482 = vpop.f32.mrb[0].mxu0
    %v3483 = vadd.f32 0.0, %v3482
    %3484 = vmatprep.mubr.bf16.mxu0 %v1189
    %3485 = vmatmul.mubr.bf16.gmra.mrb[0].mxu0 %v1188
    %v3486 = vpop.f32.mrb[0].mxu0
    %v3487 = vadd.f32 0.0, %v3486
    %v3488 = vpop.f32.mrb[0].mxu0
    %v3489 = vadd.f32 0.0, %v3488
    %v3490 = vpop.f32.mrb[0].mxu0
    %v3491 = vadd.f32 0.0, %v3490
    %v3492 = vpop.f32.mrb[0].mxu0
    %v3493 = vadd.f32 0.0, %v3492
    %3494 = vmatprep.mubr.bf16.mxu0 %v1193
    %3495 = vmatmul.mubr.bf16.gmra.mrb[0].mxu0 %v1192
    %v3496 = vpop.f32.mrb[0].mxu0
    %v3497 = vadd.f32 0.0, %v3496
    %v3498 = vpop.f32.mrb[0].mxu0
    %v3499 = vadd.f32 0.0, %v3498
    %v3500 = vpop.f32.mrb[0].mxu0
    %v3501 = vadd.f32 0.0, %v3500
    %v3502 = vpop.f32.mrb[0].mxu0
    %v3503 = vadd.f32 0.0, %v3502
    %3504 = vmatprep.mubr.bf16.mxu0 %v1197
    %3505 = vmatmul.mubr.bf16.gmra.mrb[0].mxu0 %v1196
    %v3506 = vpop.f32.mrb[0].mxu0
    %v3507 = vadd.f32 0.0, %v3506
    %v3508 = vpop.f32.mrb[0].mxu0
    %v3509 = vadd.f32 0.0, %v3508
    %v3510 = vpop.f32.mrb[0].mxu0
    %v3511 = vadd.f32 0.0, %v3510
    %v3512 = vpop.f32.mrb[0].mxu0
    %v3513 = vadd.f32 0.0, %v3512
    %3514 = vmatprep.mubr.bf16.mxu0 %v1201
    %3515 = vmatmul.mubr.bf16.gmra.mrb[0].mxu0 %v1200
    %v3516 = vpop.f32.mrb[0].mxu0
    %v3517 = vadd.f32 0.0, %v3516
    %v3518 = vpop.f32.mrb[0].mxu0
    %v3519 = vadd.f32 0.0, %v3518
    %v3520 = vpop.f32.mrb[0].mxu0
    %v3521 = vadd.f32 0.0, %v3520
    %v3522 = vpop.f32.mrb[0].mxu0
    %v3523 = vadd.f32 0.0, %v3522
    %3524 = vmatprep.mubr.bf16.mxu0 %v1205
    %3525 = vmatmul.mubr.bf16.gmra.mrb[0].mxu0 %v1204
    %v3526 = vpop.f32.mrb[0].mxu0
    %v3527 = vadd.f32 0.0, %v3526
    %v3528 = vpop.f32.mrb[0].mxu0
    %v3529 = vadd.f32 0.0, %v3528
    %v3530 = vpop.f32.mrb[0].mxu0
    %v3531 = vadd.f32 0.0, %v3530
    %v3532 = vpop.f32.mrb[0].mxu0
    %v3533 = vadd.f32 0.0, %v3532
    %3534 = vdwg.mxu0
    %3535 = vmatprep.subr.bf16.mxu0 %v2367
    %3536 = vmatpush1.bf16.msra.mxu0 %v2366
    %3537 = vmatprep.subr.bf16.mxu0 %v2375
    %3538 = vmatpush1.bf16.msra.mxu0 %v2374
    %3539 = vmatprep.subr.bf16.mxu0 %v2383
    %3540 = vmatpush1.bf16.msra.mxu0 %v2382
    %3541 = vmatprep.subr.bf16.mxu0 %v2391
    %3542 = vmatpush1.bf16.msra.mxu0 %v2390
    %3543 = vmatprep.subr.bf16.mxu0 %v2399
    %3544 = vmatpush1.bf16.msra.mxu0 %v2398
    %3545 = vmatprep.subr.bf16.mxu0 %v2407
    %3546 = vmatpush1.bf16.msra.mxu0 %v2406
    %3547 = vmatprep.subr.bf16.mxu0 %v2415
    %3548 = vmatpush1.bf16.msra.mxu0 %v2414
    %3549 = vmatprep.subr.bf16.mxu0 %v2423
    %3550 = vmatpush1.bf16.msra.mxu0 %v2422
    %3551 = vmatprep.subr.bf16.mxu0 %v2431
    %3552 = vmatpush1.bf16.msra.mxu0 %v2430
    %3553 = vmatprep.subr.bf16.mxu0 %v2439
    %3554 = vmatpush1.bf16.msra.mxu0 %v2438
    %3555 = vmatprep.subr.bf16.mxu0 %v2447
    %3556 = vmatpush1.bf16.msra.mxu0 %v2446
    %3557 = vmatprep.subr.bf16.mxu0 %v2455
    %3558 = vmatpush1.bf16.msra.mxu0 %v2454
    %3559 = vmatprep.subr.bf16.mxu0 %v2463
    %3560 = vmatpush1.bf16.msra.mxu0 %v2462
    %3561 = vmatprep.subr.bf16.mxu0 %v2471
    %3562 = vmatpush1.bf16.msra.mxu0 %v2470
    %3563 = vmatprep.subr.bf16.mxu0 %v2479
    %3564 = vmatpush1.bf16.msra.mxu0 %v2478
    %3565 = vmatprep.subr.bf16.mxu0 %v2487
    %3566 = vmatpush1.bf16.msra.mxu0 %v2486
    %3567 = vmatprep.mubr.bf16.mxu0 %v1179
    %3568 = vmatmul.mubr.bf16.gmra.mrb[0].mxu0 %v1178
    %v3569 = vpop.f32.mrb[0].mxu0
    %v3570 = vadd.f32 %v3457, %v3569
    %v3571 = vpop.f32.mrb[0].mxu0
    %v3572 = vadd.f32 %v3459, %v3571
    %v3573 = vpop.f32.mrb[0].mxu0
    %v3574 = vadd.f32 %v3461, %v3573
    %v3575 = vpop.f32.mrb[0].mxu0
    %v3576 = vadd.f32 %v3463, %v3575
    %3577 = vmatprep.mubr.bf16.mxu0 %v1183
    %3578 = vmatmul.mubr.bf16.gmra.mrb[0].mxu0 %v1182
    %v3579 = vpop.f32.mrb[0].mxu0
    %v3580 = vadd.f32 %v3467, %v3579
    %v3581 = vpop.f32.mrb[0].mxu0
    %v3582 = vadd.f32 %v3469, %v3581
    %v3583 = vpop.f32.mrb[0].mxu0
    %v3584 = vadd.f32 %v3471, %v3583
    %v3585 = vpop.f32.mrb[0].mxu0
    %v3586 = vadd.f32 %v3473, %v3585
    %3587 = vmatprep.mubr.bf16.mxu0 %v1187
    %3588 = vmatmul.mubr.bf16.gmra.mrb[0].mxu0 %v1186
    %v3589 = vpop.f32.mrb[0].mxu0
    %v3590 = vadd.f32 %v3477, %v3589
    %v3591 = vpop.f32.mrb[0].mxu0
    %v3592 = vadd.f32 %v3479, %v3591
    %v3593 = vpop.f32.mrb[0].mxu0
    %v3594 = vadd.f32 %v3481, %v3593
    %v3595 = vpop.f32.mrb[0].mxu0
    %v3596 = vadd.f32 %v3483, %v3595
    %3597 = vmatprep.mubr.bf16.mxu0 %v1191
    %3598 = vmatmul.mubr.bf16.gmra.mrb[0].mxu0 %v1190
    %v3599 = vpop.f32.mrb[0].mxu0
    %v3600 = vadd.f32 %v3487, %v3599
    %v3601 = vpop.f32.mrb[0].mxu0
    %v3602 = vadd.f32 %v3489, %v3601
    %v3603 = vpop.f32.mrb[0].mxu0
    %v3604 = vadd.f32 %v3491, %v3603
    %v3605 = vpop.f32.mrb[0].mxu0
    %v3606 = vadd.f32 %v3493, %v3605
    %3607 = vmatprep.mubr.bf16.mxu0 %v1195
    %3608 = vmatmul.mubr.bf16.gmra.mrb[0].mxu0 %v1194
    %v3609 = vpop.f32.mrb[0].mxu0
    %v3610 = vadd.f32 %v3497, %v3609
    %v3611 = vpop.f32.mrb[0].mxu0
    %v3612 = vadd.f32 %v3499, %v3611
    %v3613 = vpop.f32.mrb[0].mxu0
    %v3614 = vadd.f32 %v3501, %v3613
    %v3615 = vpop.f32.mrb[0].mxu0
    %v3616 = vadd.f32 %v3503, %v3615
    %3617 = vmatprep.mubr.bf16.mxu0 %v1199
    %3618 = vmatmul.mubr.bf16.gmra.mrb[0].mxu0 %v1198
    %v3619 = vpop.f32.mrb[0].mxu0
    %v3620 = vadd.f32 %v3507, %v3619
    %v3621 = vpop.f32.mrb[0].mxu0
    %v3622 = vadd.f32 %v3509, %v3621
    %v3623 = vpop.f32.mrb[0].mxu0
    %v3624 = vadd.f32 %v3511, %v3623
    %v3625 = vpop.f32.mrb[0].mxu0
    %v3626 = vadd.f32 %v3513, %v3625
    %3627 = vmatprep.mubr.bf16.mxu0 %v1203
    %3628 = vmatmul.mubr.bf16.gmra.mrb[0].mxu0 %v1202
    %v3629 = vpop.f32.mrb[0].mxu0
    %v3630 = vadd.f32 %v3517, %v3629
    %v3631 = vpop.f32.mrb[0].mxu0
    %v3632 = vadd.f32 %v3519, %v3631
    %v3633 = vpop.f32.mrb[0].mxu0
    %v3634 = vadd.f32 %v3521, %v3633
    %v3635 = vpop.f32.mrb[0].mxu0
    %v3636 = vadd.f32 %v3523, %v3635
    %3637 = vmatprep.mubr.bf16.mxu0 %v1207
    %3638 = vmatmul.mubr.bf16.gmra.mrb[0].mxu0 %v1206
    %v3639 = vpop.f32.mrb[0].mxu0
    %v3640 = vadd.f32 %v3527, %v3639
    %v3641 = vpop.f32.mrb[0].mxu0
    %v3642 = vadd.f32 %v3529, %v3641
    %v3643 = vpop.f32.mrb[0].mxu0
    %v3644 = vadd.f32 %v3531, %v3643
    %v3645 = vpop.f32.mrb[0].mxu0
    %v3646 = vadd.f32 %v3533, %v3645
    %3647 = vdwg.mxu0
    %v3648 = vmax.f32 %v2892, %v3344
    %v3649 = vmax.f32 %v2894, %v3346
    %v3650 = vmax.f32 %v3118, %v3570
    %v3651 = vmax.f32 %v3120, %v3572
    %v3652 = vmax.f32 %v2896, %v3348
    %v3653 = vmax.f32 %v2898, %v3350
    %v3654 = vmax.f32 %v3122, %v3574
    %v3655 = vmax.f32 %v3124, %v3576
    %v3656 = vmax.f32 %v2902, %v3354
    %v3657 = vmax.f32 %v2904, %v3356
    %v3658 = vmax.f32 %v3128, %v3580
    %v3659 = vmax.f32 %v3130, %v3582
    %v3660 = vmax.f32 %v2906, %v3358
    %v3661 = vmax.f32 %v2908, %v3360
    %v3662 = vmax.f32 %v3132, %v3584
    %v3663 = vmax.f32 %v3134, %v3586
    %v3664 = vmax.f32 %v2912, %v3364
    %v3665 = vmax.f32 %v2914, %v3366
    %v3666 = vmax.f32 %v3138, %v3590
    %v3667 = vmax.f32 %v3140, %v3592
    %v3668 = vmax.f32 %v2916, %v3368
    %v3669 = vmax.f32 %v2918, %v3370
    %v3670 = vmax.f32 %v3142, %v3594
    %v3671 = vmax.f32 %v3144, %v3596
    %v3672 = vmax.f32 %v2922, %v3374
    %v3673 = vmax.f32 %v2924, %v3376
    %v3674 = vmax.f32 %v3148, %v3600
    %v3675 = vmax.f32 %v3150, %v3602
    %v3676 = vmax.f32 %v2926, %v3378
    %v3677 = vmax.f32 %v2928, %v3380
    %v3678 = vmax.f32 %v3152, %v3604
    %v3679 = vmax.f32 %v3154, %v3606
    %v3680 = vmax.f32 %v2932, %v3384
    %v3681 = vmax.f32 %v2934, %v3386
    %v3682 = vmax.f32 %v3158, %v3610
    %v3683 = vmax.f32 %v3160, %v3612
    %v3684 = vmax.f32 %v2936, %v3388
    %v3685 = vmax.f32 %v2938, %v3390
    %v3686 = vmax.f32 %v3162, %v3614
    %v3687 = vmax.f32 %v3164, %v3616
    %v3688 = vmax.f32 %v2942, %v3394
    %v3689 = vmax.f32 %v2944, %v3396
    %v3690 = vmax.f32 %v3168, %v3620
    %v3691 = vmax.f32 %v3170, %v3622
    %v3692 = vmax.f32 %v2946, %v3398
    %v3693 = vmax.f32 %v2948, %v3400
    %v3694 = vmax.f32 %v3172, %v3624
    %v3695 = vmax.f32 %v3174, %v3626
    %v3696 = vmax.f32 %v2952, %v3404
    %v3697 = vmax.f32 %v2954, %v3406
    %v3698 = vmax.f32 %v3178, %v3630
    %v3699 = vmax.f32 %v3180, %v3632
    %v3700 = vmax.f32 %v2956, %v3408
    %v3701 = vmax.f32 %v2958, %v3410
    %v3702 = vmax.f32 %v3182, %v3634
    %v3703 = vmax.f32 %v3184, %v3636
    %v3704 = vmax.f32 %v2962, %v3414
    %v3705 = vmax.f32 %v2964, %v3416
    %v3706 = vmax.f32 %v3188, %v3640
    %v3707 = vmax.f32 %v3190, %v3642
    %v3708 = vmax.f32 %v2966, %v3418
    %v3709 = vmax.f32 %v2968, %v3420
    %v3710 = vmax.f32 %v3192, %v3644
    %v3711 = vmax.f32 %v3194, %v3646
    %v3712 = vld [vmem:[%s4] sm:$0xf]
    %v3714 = vlaneseq
    %v3715 = vshrl.u32 %v3714, 7
    %v3716 = vsub.s32 0, %v3715
    %v3717 = vrot.slane %v3712, %v3716
    %v3718 = vlaneseq
    %v3719 = vshrl.u32 %v3718, 7
    %v3720 = vsub.s32 1, %v3719
    %v3721 = vrot.slane %v3712, %v3720
    %v3722 = vlaneseq
    %v3723 = vshrl.u32 %v3722, 7
    %v3724 = vsub.s32 2, %v3723
    %v3725 = vrot.slane %v3712, %v3724
    %v3726 = vlaneseq
    %v3727 = vshrl.u32 %v3726, 7
    %v3728 = vsub.s32 3, %v3727
    %v3729 = vrot.slane %v3712, %v3728
    %v3734 = vadd.f32 %v3648, %v3717
    %v3735 = vadd.f32 %v3649, %v3721
    %v3736 = vadd.f32 %v3650, %v3725
    %v3737 = vadd.f32 %v3651, %v3729
    %v3738 = vadd.f32 %v3652, %v3717
    %v3739 = vadd.f32 %v3653, %v3721
    %v3740 = vadd.f32 %v3654, %v3725
    %v3741 = vadd.f32 %v3655, %v3729
    %v3742 = vadd.f32 %v3656, %v3717
    %v3743 = vadd.f32 %v3657, %v3721
    %v3744 = vadd.f32 %v3658, %v3725
    %v3745 = vadd.f32 %v3659, %v3729
    %v3746 = vadd.f32 %v3660, %v3717
    %v3747 = vadd.f32 %v3661, %v3721
    %v3748 = vadd.f32 %v3662, %v3725
    %v3749 = vadd.f32 %v3663, %v3729
    %v3750 = vadd.f32 %v3664, %v3717
    %v3751 = vadd.f32 %v3665, %v3721
    %v3752 = vadd.f32 %v3666, %v3725
    %v3753 = vadd.f32 %v3667, %v3729
    %v3754 = vadd.f32 %v3668, %v3717
    %v3755 = vadd.f32 %v3669, %v3721
    %v3756 = vadd.f32 %v3670, %v3725
    %v3757 = vadd.f32 %v3671, %v3729
    %v3758 = vadd.f32 %v3672, %v3717
    %v3759 = vadd.f32 %v3673, %v3721
    %v3760 = vadd.f32 %v3674, %v3725
    %v3761 = vadd.f32 %v3675, %v3729
    %v3762 = vadd.f32 %v3676, %v3717
    %v3763 = vadd.f32 %v3677, %v3721
    %v3764 = vadd.f32 %v3678, %v3725
    %v3765 = vadd.f32 %v3679, %v3729
    %v3766 = vadd.f32 %v3680, %v3717
    %v3767 = vadd.f32 %v3681, %v3721
    %v3768 = vadd.f32 %v3682, %v3725
    %v3769 = vadd.f32 %v3683, %v3729
    %v3770 = vadd.f32 %v3684, %v3717
    %v3771 = vadd.f32 %v3685, %v3721
    %v3772 = vadd.f32 %v3686, %v3725
    %v3773 = vadd.f32 %v3687, %v3729
    %v3774 = vadd.f32 %v3688, %v3717
    %v3775 = vadd.f32 %v3689, %v3721
    %v3776 = vadd.f32 %v3690, %v3725
    %v3777 = vadd.f32 %v3691, %v3729
    %v3778 = vadd.f32 %v3692, %v3717
    %v3779 = vadd.f32 %v3693, %v3721
    %v3780 = vadd.f32 %v3694, %v3725
    %v3781 = vadd.f32 %v3695, %v3729
    %v3782 = vadd.f32 %v3696, %v3717
    %v3783 = vadd.f32 %v3697, %v3721
    %v3784 = vadd.f32 %v3698, %v3725
    %v3785 = vadd.f32 %v3699, %v3729
    %v3786 = vadd.f32 %v3700, %v3717
    %v3787 = vadd.f32 %v3701, %v3721
    %v3788 = vadd.f32 %v3702, %v3725
    %v3789 = vadd.f32 %v3703, %v3729
    %v3790 = vadd.f32 %v3704, %v3717
    %v3791 = vadd.f32 %v3705, %v3721
    %v3792 = vadd.f32 %v3706, %v3725
    %v3793 = vadd.f32 %v3707, %v3729
    %v3794 = vadd.f32 %v3708, %v3717
    %v3795 = vadd.f32 %v3709, %v3721
    %v3796 = vadd.f32 %v3710, %v3725
    %v3797 = vadd.f32 %v3711, %v3729
    %v3798 = vmax.f32 %v3734, 0.0
    %v3799 = vmax.f32 %v3735, 0.0
    %v3800 = vmax.f32 %v3736, 0.0
    %v3801 = vmax.f32 %v3737, 0.0
    %v3802 = vmax.f32 %v3738, 0.0
    %v3803 = vmax.f32 %v3739, 0.0
    %v3804 = vmax.f32 %v3740, 0.0
    %v3805 = vmax.f32 %v3741, 0.0
    %v3806 = vmax.f32 %v3742, 0.0
    %v3807 = vmax.f32 %v3743, 0.0
    %v3808 = vmax.f32 %v3744, 0.0
    %v3809 = vmax.f32 %v3745, 0.0
    %v3810 = vmax.f32 %v3746, 0.0
    %v3811 = vmax.f32 %v3747, 0.0
    %v3812 = vmax.f32 %v3748, 0.0
    %v3813 = vmax.f32 %v3749, 0.0
    %v3814 = vmax.f32 %v3750, 0.0
    %v3815 = vmax.f32 %v3751, 0.0
    %v3816 = vmax.f32 %v3752, 0.0
    %v3817 = vmax.f32 %v3753, 0.0
    %v3818 = vmax.f32 %v3754, 0.0
    %v3819 = vmax.f32 %v3755, 0.0
    %v3820 = vmax.f32 %v3756, 0.0
    %v3821 = vmax.f32 %v3757, 0.0
    %v3822 = vmax.f32 %v3758, 0.0
    %v3823 = vmax.f32 %v3759, 0.0
    %v3824 = vmax.f32 %v3760, 0.0
    %v3825 = vmax.f32 %v3761, 0.0
    %v3826 = vmax.f32 %v3762, 0.0
    %v3827 = vmax.f32 %v3763, 0.0
    %v3828 = vmax.f32 %v3764, 0.0
    %v3829 = vmax.f32 %v3765, 0.0
    %v3830 = vmax.f32 %v3766, 0.0
    %v3831 = vmax.f32 %v3767, 0.0
    %v3832 = vmax.f32 %v3768, 0.0
    %v3833 = vmax.f32 %v3769, 0.0
    %v3834 = vmax.f32 %v3770, 0.0
    %v3835 = vmax.f32 %v3771, 0.0
    %v3836 = vmax.f32 %v3772, 0.0
    %v3837 = vmax.f32 %v3773, 0.0
    %v3838 = vmax.f32 %v3774, 0.0
    %v3839 = vmax.f32 %v3775, 0.0
    %v3840 = vmax.f32 %v3776, 0.0
    %v3841 = vmax.f32 %v3777, 0.0
    %v3842 = vmax.f32 %v3778, 0.0
    %v3843 = vmax.f32 %v3779, 0.0
    %v3844 = vmax.f32 %v3780, 0.0
    %v3845 = vmax.f32 %v3781, 0.0
    %v3846 = vmax.f32 %v3782, 0.0
    %v3847 = vmax.f32 %v3783, 0.0
    %v3848 = vmax.f32 %v3784, 0.0
    %v3849 = vmax.f32 %v3785, 0.0
    %v3850 = vmax.f32 %v3786, 0.0
    %v3851 = vmax.f32 %v3787, 0.0
    %v3852 = vmax.f32 %v3788, 0.0
    %v3853 = vmax.f32 %v3789, 0.0
    %v3854 = vmax.f32 %v3790, 0.0
    %v3855 = vmax.f32 %v3791, 0.0
    %v3856 = vmax.f32 %v3792, 0.0
    %v3857 = vmax.f32 %v3793, 0.0
    %v3858 = vmax.f32 %v3794, 0.0
    %v3859 = vmax.f32 %v3795, 0.0
    %v3860 = vmax.f32 %v3796, 0.0
    %v3861 = vmax.f32 %v3797, 0.0
    %v3862 = vpack.c.bf16 %v3802, %v3798
    %v3863 = vpack.c.bf16 %v3803, %v3799
    %v3864 = vpack.c.bf16 %v3804, %v3800
    %v3865 = vpack.c.bf16 %v3805, %v3801
    %v3866 = vpack.c.bf16 %v3810, %v3806
    %v3867 = vpack.c.bf16 %v3811, %v3807
    %v3868 = vpack.c.bf16 %v3812, %v3808
    %v3869 = vpack.c.bf16 %v3813, %v3809
    %v3870 = vpack.c.bf16 %v3818, %v3814
    %v3871 = vpack.c.bf16 %v3819, %v3815
    %v3872 = vpack.c.bf16 %v3820, %v3816
    %v3873 = vpack.c.bf16 %v3821, %v3817
    %v3874 = vpack.c.bf16 %v3826, %v3822
    %v3875 = vpack.c.bf16 %v3827, %v3823
    %v3876 = vpack.c.bf16 %v3828, %v3824
    %v3877 = vpack.c.bf16 %v3829, %v3825
    %v3878 = vpack.c.bf16 %v3834, %v3830
    %v3879 = vpack.c.bf16 %v3835, %v3831
    %v3880 = vpack.c.bf16 %v3836, %v3832
    %v3881 = vpack.c.bf16 %v3837, %v3833
    %v3882 = vpack.c.bf16 %v3842, %v3838
    %v3883 = vpack.c.bf16 %v3843, %v3839
    %v3884 = vpack.c.bf16 %v3844, %v3840
    %v3885 = vpack.c.bf16 %v3845, %v3841
    %v3886 = vpack.c.bf16 %v3850, %v3846
    %v3887 = vpack.c.bf16 %v3851, %v3847
    %v3888 = vpack.c.bf16 %v3852, %v3848
    %v3889 = vpack.c.bf16 %v3853, %v3849
    %v3890 = vpack.c.bf16 %v3858, %v3854
    %v3891 = vpack.c.bf16 %v3859, %v3855
    %v3892 = vpack.c.bf16 %v3860, %v3856
    %v3893 = vpack.c.bf16 %v3861, %v3857
    %v3894 = vld [vmem:[#allocation8] sm:$0xf]
    %v3895 = vld [vmem:[#allocation8 + $0x4] sm:$0xf]
    %v3896 = vld [vmem:[#allocation8 + $0x8] sm:$0xf]
    %v3897 = vld [vmem:[#allocation8 + $0xc] sm:$0xf]
    %v3898 = vld [vmem:[#allocation8 + $0x10] sm:$0xf]
    %v3899 = vld [vmem:[#allocation8 + $0x14] sm:$0xf]
    %v3900 = vld [vmem:[#allocation8 + $0x18] sm:$0xf]
    %v3901 = vld [vmem:[#allocation8 + $0x1c] sm:$0xf]
    %v3902 = vld [vmem:[#allocation8 + $0x20] sm:$0xf]
    %v3903 = vld [vmem:[#allocation8 + $0x24] sm:$0xf]
    %v3904 = vld [vmem:[#allocation8 + $0x28] sm:$0xf]
    %v3905 = vld [vmem:[#allocation8 + $0x2c] sm:$0xf]
    %v3906 = vld [vmem:[#allocation8 + $0x30] sm:$0xf]
    %v3907 = vld [vmem:[#allocation8 + $0x34] sm:$0xf]
    %v3908 = vld [vmem:[#allocation8 + $0x38] sm:$0xf]
    %v3909 = vld [vmem:[#allocation8 + $0x3c] sm:$0xf]
    %v3910 = vld [vmem:[#allocation8 + $0x40] sm:$0xf]
    %v3911 = vld [vmem:[#allocation8 + $0x44] sm:$0xf]
    %v3912 = vld [vmem:[#allocation8 + $0x48] sm:$0xf]
    %v3913 = vld [vmem:[#allocation8 + $0x4c] sm:$0xf]
    %v3914 = vld [vmem:[#allocation8 + $0x50] sm:$0xf]
    %v3915 = vld [vmem:[#allocation8 + $0x54] sm:$0xf]
    %v3916 = vld [vmem:[#allocation8 + $0x58] sm:$0xf]
    %v3917 = vld [vmem:[#allocation8 + $0x5c] sm:$0xf]
    %v3918 = vld [vmem:[#allocation8 + $0x60] sm:$0xf]
    %v3919 = vld [vmem:[#allocation8 + $0x64] sm:$0xf]
    %v3920 = vld [vmem:[#allocation8 + $0x68] sm:$0xf]
    %v3921 = vld [vmem:[#allocation8 + $0x6c] sm:$0xf]
    %v3922 = vld [vmem:[#allocation8 + $0x70] sm:$0xf]
    %v3923 = vld [vmem:[#allocation8 + $0x74] sm:$0xf]
    %v3924 = vld [vmem:[#allocation8 + $0x78] sm:$0xf]
    %v3925 = vld [vmem:[#allocation8 + $0x7c] sm:$0xf]
    %v3926 = vld [vmem:[#allocation8 + $0x80] sm:$0xf]
    %v3927 = vld [vmem:[#allocation8 + $0x84] sm:$0xf]
    %v3928 = vld [vmem:[#allocation8 + $0x88] sm:$0xf]
    %v3929 = vld [vmem:[#allocation8 + $0x8c] sm:$0xf]
    %v3930 = vld [vmem:[#allocation8 + $0x90] sm:$0xf]
    %v3931 = vld [vmem:[#allocation8 + $0x94] sm:$0xf]
    %v3932 = vld [vmem:[#allocation8 + $0x98] sm:$0xf]
    %v3933 = vld [vmem:[#allocation8 + $0x9c] sm:$0xf]
    %v3934 = vld [vmem:[#allocation8 + $0xa0] sm:$0xf]
    %v3935 = vld [vmem:[#allocation8 + $0xa4] sm:$0xf]
    %v3936 = vld [vmem:[#allocation8 + $0xa8] sm:$0xf]
    %v3937 = vld [vmem:[#allocation8 + $0xac] sm:$0xf]
    %v3938 = vld [vmem:[#allocation8 + $0xb0] sm:$0xf]
    %v3939 = vld [vmem:[#allocation8 + $0xb4] sm:$0xf]
    %v3940 = vld [vmem:[#allocation8 + $0xb8] sm:$0xf]
    %v3941 = vld [vmem:[#allocation8 + $0xbc] sm:$0xf]
    %v3942 = vld [vmem:[#allocation8 + $0xc0] sm:$0xf]
    %v3943 = vld [vmem:[#allocation8 + $0xc4] sm:$0xf]
    %v3944 = vld [vmem:[#allocation8 + $0xc8] sm:$0xf]
    %v3945 = vld [vmem:[#allocation8 + $0xcc] sm:$0xf]
    %v3946 = vld [vmem:[#allocation8 + $0xd0] sm:$0xf]
    %v3947 = vld [vmem:[#allocation8 + $0xd4] sm:$0xf]
    %v3948 = vld [vmem:[#allocation8 + $0xd8] sm:$0xf]
    %v3949 = vld [vmem:[#allocation8 + $0xdc] sm:$0xf]
    %v3950 = vld [vmem:[#allocation8 + $0xe0] sm:$0xf]
    %v3951 = vld [vmem:[#allocation8 + $0xe4] sm:$0xf]
    %v3952 = vld [vmem:[#allocation8 + $0xe8] sm:$0xf]
    %v3953 = vld [vmem:[#allocation8 + $0xec] sm:$0xf]
    %v3954 = vld [vmem:[#allocation8 + $0xf0] sm:$0xf]
    %v3955 = vld [vmem:[#allocation8 + $0xf4] sm:$0xf]
    %v3956 = vld [vmem:[#allocation8 + $0xf8] sm:$0xf]
    %v3957 = vld [vmem:[#allocation8 + $0xfc] sm:$0xf]
    %v3958 = vld [vmem:[%s6] sm:$0x1]
    %v3960 = vlaneseq
    %v3961 = vshrl.u32 %v3960, 7
    %v3962 = vsub.s32 0, %v3961
    %v3963 = vrot.slane %v3958, %v3962
    %v4029 = vunpack.c.l.b16 %v3894
    %v4030 = vunpack.c.l.b16 %v3895
    %v4031 = vunpack.c.l.b16 %v3896
    %v4032 = vunpack.c.l.b16 %v3897
    %v4033 = vunpack.c.l.b16 %v3898
    %v4034 = vunpack.c.l.b16 %v3899
    %v4035 = vunpack.c.l.b16 %v3900
    %v4036 = vunpack.c.l.b16 %v3901
    %v4037 = vunpack.c.l.b16 %v3902
    %v4038 = vunpack.c.l.b16 %v3903
    %v4039 = vunpack.c.l.b16 %v3904
    %v4040 = vunpack.c.l.b16 %v3905
    %v4041 = vunpack.c.l.b16 %v3906
    %v4042 = vunpack.c.l.b16 %v3907
    %v4043 = vunpack.c.l.b16 %v3908
    %v4044 = vunpack.c.l.b16 %v3909
    %v4045 = vunpack.c.l.b16 %v3910
    %v4046 = vunpack.c.l.b16 %v3911
    %v4047 = vunpack.c.l.b16 %v3912
    %v4048 = vunpack.c.l.b16 %v3913
    %v4049 = vunpack.c.l.b16 %v3914
    %v4050 = vunpack.c.l.b16 %v3915
    %v4051 = vunpack.c.l.b16 %v3916
    %v4052 = vunpack.c.l.b16 %v3917
    %v4053 = vunpack.c.l.b16 %v3918
    %v4054 = vunpack.c.l.b16 %v3919
    %v4055 = vunpack.c.l.b16 %v3920
    %v4056 = vunpack.c.l.b16 %v3921
    %v4057 = vunpack.c.l.b16 %v3922
    %v4058 = vunpack.c.l.b16 %v3923
    %v4059 = vunpack.c.l.b16 %v3924
    %v4060 = vunpack.c.l.b16 %v3925
    %v4061 = vunpack.c.l.b16 %v3926
    %v4062 = vunpack.c.l.b16 %v3927
    %v4063 = vunpack.c.l.b16 %v3928
    %v4064 = vunpack.c.l.b16 %v3929
    %v4065 = vunpack.c.l.b16 %v3930
    %v4066 = vunpack.c.l.b16 %v3931
    %v4067 = vunpack.c.l.b16 %v3932
    %v4068 = vunpack.c.l.b16 %v3933
    %v4069 = vunpack.c.l.b16 %v3934
    %v4070 = vunpack.c.l.b16 %v3935
    %v4071 = vunpack.c.l.b16 %v3936
    %v4072 = vunpack.c.l.b16 %v3937
    %v4073 = vunpack.c.l.b16 %v3938
    %v4074 = vunpack.c.l.b16 %v3939
    %v4075 = vunpack.c.l.b16 %v3940
    %v4076 = vunpack.c.l.b16 %v3941
    %v4077 = vunpack.c.l.b16 %v3942
    %v4078 = vunpack.c.l.b16 %v3943
    %v4079 = vunpack.c.l.b16 %v3944
    %v4080 = vunpack.c.l.b16 %v3945
    %v4081 = vunpack.c.l.b16 %v3946
    %v4082 = vunpack.c.l.b16 %v3947
    %v4083 = vunpack.c.l.b16 %v3948
    %v4084 = vunpack.c.l.b16 %v3949
    %v4085 = vunpack.c.l.b16 %v3950
    %v4086 = vunpack.c.l.b16 %v3951
    %v4087 = vunpack.c.l.b16 %v3952
    %v4088 = vunpack.c.l.b16 %v3953
    %v4089 = vunpack.c.l.b16 %v3954
    %v4090 = vunpack.c.l.b16 %v3955
    %v4091 = vunpack.c.l.b16 %v3956
    %v4092 = vunpack.c.l.b16 %v3957
    %v4093 = vpack.c.b16 %v4030, %v4029
    %v4094 = vpack.c.b16 %v4032, %v4031
    %v4095 = vpack.c.b16 %v4034, %v4033
    %v4096 = vpack.c.b16 %v4036, %v4035
    %v4097 = vpack.c.b16 %v4038, %v4037
    %v4098 = vpack.c.b16 %v4040, %v4039
    %v4099 = vpack.c.b16 %v4042, %v4041
    %v4100 = vpack.c.b16 %v4044, %v4043
    %v4101 = vpack.c.b16 %v4046, %v4045
    %v4102 = vpack.c.b16 %v4048, %v4047
    %v4103 = vpack.c.b16 %v4050, %v4049
    %v4104 = vpack.c.b16 %v4052, %v4051
    %v4105 = vpack.c.b16 %v4054, %v4053
    %v4106 = vpack.c.b16 %v4056, %v4055
    %v4107 = vpack.c.b16 %v4058, %v4057
    %v4108 = vpack.c.b16 %v4060, %v4059
    %v4109 = vpack.c.b16 %v4062, %v4061
    %v4110 = vpack.c.b16 %v4064, %v4063
    %v4111 = vpack.c.b16 %v4066, %v4065
    %v4112 = vpack.c.b16 %v4068, %v4067
    %v4113 = vpack.c.b16 %v4070, %v4069
    %v4114 = vpack.c.b16 %v4072, %v4071
    %v4115 = vpack.c.b16 %v4074, %v4073
    %v4116 = vpack.c.b16 %v4076, %v4075
    %v4117 = vpack.c.b16 %v4078, %v4077
    %v4118 = vpack.c.b16 %v4080, %v4079
    %v4119 = vpack.c.b16 %v4082, %v4081
    %v4120 = vpack.c.b16 %v4084, %v4083
    %v4121 = vpack.c.b16 %v4086, %v4085
    %v4122 = vpack.c.b16 %v4088, %v4087
    %v4123 = vpack.c.b16 %v4090, %v4089
    %v4124 = vpack.c.b16 %v4092, %v4091
    %4157 = vmatprep.subr.bf16.mxu0 0
    %4158 = vmatpush1.bf16.msra.mxu0 %v4093
    %4159 = vmatprep.subr.bf16.mxu0 0
    %4160 = vmatpush1.bf16.msra.mxu0 %v4094
    %4161 = vmatprep.subr.bf16.mxu0 0
    %4162 = vmatpush1.bf16.msra.mxu0 %v4095
    %4163 = vmatprep.subr.bf16.mxu0 0
    %4164 = vmatpush1.bf16.msra.mxu0 %v4096
    %4165 = vmatprep.subr.bf16.mxu0 0
    %4166 = vmatpush1.bf16.msra.mxu0 %v4097
    %4167 = vmatprep.subr.bf16.mxu0 0
    %4168 = vmatpush1.bf16.msra.mxu0 %v4098
    %4169 = vmatprep.subr.bf16.mxu0 0
    %4170 = vmatpush1.bf16.msra.mxu0 %v4099
    %4171 = vmatprep.subr.bf16.mxu0 0
    %4172 = vmatpush1.bf16.msra.mxu0 %v4100
    %4173 = vmatprep.subr.bf16.mxu0 0
    %4174 = vmatpush1.bf16.msra.mxu0 %v4101
    %4175 = vmatprep.subr.bf16.mxu0 0
    %4176 = vmatpush1.bf16.msra.mxu0 %v4102
    %4177 = vmatprep.subr.bf16.mxu0 0
    %4178 = vmatpush1.bf16.msra.mxu0 %v4103
    %4179 = vmatprep.subr.bf16.mxu0 0
    %4180 = vmatpush1.bf16.msra.mxu0 %v4104
    %4181 = vmatprep.subr.bf16.mxu0 0
    %4182 = vmatpush1.bf16.msra.mxu0 %v4105
    %4183 = vmatprep.subr.bf16.mxu0 0
    %4184 = vmatpush1.bf16.msra.mxu0 %v4106
    %4185 = vmatprep.subr.bf16.mxu0 0
    %4186 = vmatpush1.bf16.msra.mxu0 %v4107
    %4187 = vmatprep.subr.bf16.mxu0 0
    %4188 = vmatpush1.bf16.msra.mxu0 %v4108
    %4189 = vmatprep.mubr.bf16.mxu0 %v3863
    %4190 = vmatmul.mubr.bf16.gmra.mrb[0].mxu0 %v3862
    %v4191 = vpop.f32.mrb[0].mxu0
    %v4192 = vadd.f32 %v3963, %v4191
    %v4193 = vpop.f32.mrb[0].mxu0
    %v4194 = vpop.f32.mrb[0].mxu0
    %v4195 = vadd.f32 %v3963, %v4194
    %v4196 = vpop.f32.mrb[0].mxu0
    %4197 = vmatprep.mubr.bf16.mxu0 %v3867
    %4198 = vmatmul.mubr.bf16.gmra.mrb[0].mxu0 %v3866
    %v4199 = vpop.f32.mrb[0].mxu0
    %v4200 = vadd.f32 %v3963, %v4199
    %v4201 = vpop.f32.mrb[0].mxu0
    %v4202 = vpop.f32.mrb[0].mxu0
    %v4203 = vadd.f32 %v3963, %v4202
    %v4204 = vpop.f32.mrb[0].mxu0
    %4205 = vmatprep.mubr.bf16.mxu0 %v3871
    %4206 = vmatmul.mubr.bf16.gmra.mrb[0].mxu0 %v3870
    %v4207 = vpop.f32.mrb[0].mxu0
    %v4208 = vadd.f32 %v3963, %v4207
    %v4209 = vpop.f32.mrb[0].mxu0
    %v4210 = vpop.f32.mrb[0].mxu0
    %v4211 = vadd.f32 %v3963, %v4210
    %v4212 = vpop.f32.mrb[0].mxu0
    %4213 = vmatprep.mubr.bf16.mxu0 %v3875
    %4214 = vmatmul.mubr.bf16.gmra.mrb[0].mxu0 %v3874
    %v4215 = vpop.f32.mrb[0].mxu0
    %v4216 = vadd.f32 %v3963, %v4215
    %v4217 = vpop.f32.mrb[0].mxu0
    %v4218 = vpop.f32.mrb[0].mxu0
    %v4219 = vadd.f32 %v3963, %v4218
    %v4220 = vpop.f32.mrb[0].mxu0
    %4221 = vmatprep.mubr.bf16.mxu0 %v3879
    %4222 = vmatmul.mubr.bf16.gmra.mrb[0].mxu0 %v3878
    %v4223 = vpop.f32.mrb[0].mxu0
    %v4224 = vadd.f32 %v3963, %v4223
    %v4225 = vpop.f32.mrb[0].mxu0
    %v4226 = vpop.f32.mrb[0].mxu0
    %v4227 = vadd.f32 %v3963, %v4226
    %v4228 = vpop.f32.mrb[0].mxu0
    %4229 = vmatprep.mubr.bf16.mxu0 %v3883
    %4230 = vmatmul.mubr.bf16.gmra.mrb[0].mxu0 %v3882
    %v4231 = vpop.f32.mrb[0].mxu0
    %v4232 = vadd.f32 %v3963, %v4231
    %v4233 = vpop.f32.mrb[0].mxu0
    %v4234 = vpop.f32.mrb[0].mxu0
    %v4235 = vadd.f32 %v3963, %v4234
    %v4236 = vpop.f32.mrb[0].mxu0
    %4237 = vmatprep.mubr.bf16.mxu0 %v3887
    %4238 = vmatmul.mubr.bf16.gmra.mrb[0].mxu0 %v3886
    %v4239 = vpop.f32.mrb[0].mxu0
    %v4240 = vadd.f32 %v3963, %v4239
    %v4241 = vpop.f32.mrb[0].mxu0
    %v4242 = vpop.f32.mrb[0].mxu0
    %v4243 = vadd.f32 %v3963, %v4242
    %v4244 = vpop.f32.mrb[0].mxu0
    %4245 = vmatprep.mubr.bf16.mxu0 %v3891
    %4246 = vmatmul.mubr.bf16.gmra.mrb[0].mxu0 %v3890
    %v4247 = vpop.f32.mrb[0].mxu0
    %v4248 = vadd.f32 %v3963, %v4247
    %v4249 = vpop.f32.mrb[0].mxu0
    %v4250 = vpop.f32.mrb[0].mxu0
    %v4251 = vadd.f32 %v3963, %v4250
    %v4252 = vpop.f32.mrb[0].mxu0
    %4253 = vdwg.mxu0
    %4254 = vmatprep.subr.bf16.mxu0 0
    %4255 = vmatpush1.bf16.msra.mxu0 %v4109
    %4256 = vmatprep.subr.bf16.mxu0 0
    %4257 = vmatpush1.bf16.msra.mxu0 %v4110
    %4258 = vmatprep.subr.bf16.mxu0 0
    %4259 = vmatpush1.bf16.msra.mxu0 %v4111
    %4260 = vmatprep.subr.bf16.mxu0 0
    %4261 = vmatpush1.bf16.msra.mxu0 %v4112
    %4262 = vmatprep.subr.bf16.mxu0 0
    %4263 = vmatpush1.bf16.msra.mxu0 %v4113
    %4264 = vmatprep.subr.bf16.mxu0 0
    %4265 = vmatpush1.bf16.msra.mxu0 %v4114
    %4266 = vmatprep.subr.bf16.mxu0 0
    %4267 = vmatpush1.bf16.msra.mxu0 %v4115
    %4268 = vmatprep.subr.bf16.mxu0 0
    %4269 = vmatpush1.bf16.msra.mxu0 %v4116
    %4270 = vmatprep.subr.bf16.mxu0 0
    %4271 = vmatpush1.bf16.msra.mxu0 %v4117
    %4272 = vmatprep.subr.bf16.mxu0 0
    %4273 = vmatpush1.bf16.msra.mxu0 %v4118
    %4274 = vmatprep.subr.bf16.mxu0 0
    %4275 = vmatpush1.bf16.msra.mxu0 %v4119
    %4276 = vmatprep.subr.bf16.mxu0 0
    %4277 = vmatpush1.bf16.msra.mxu0 %v4120
    %4278 = vmatprep.subr.bf16.mxu0 0
    %4279 = vmatpush1.bf16.msra.mxu0 %v4121
    %4280 = vmatprep.subr.bf16.mxu0 0
    %4281 = vmatpush1.bf16.msra.mxu0 %v4122
    %4282 = vmatprep.subr.bf16.mxu0 0
    %4283 = vmatpush1.bf16.msra.mxu0 %v4123
    %4284 = vmatprep.subr.bf16.mxu0 0
    %4285 = vmatpush1.bf16.msra.mxu0 %v4124
    %4286 = vmatprep.mubr.bf16.mxu0 %v3865
    %4287 = vmatmul.mubr.bf16.gmra.mrb[0].mxu0 %v3864
    %v4288 = vpop.f32.mrb[0].mxu0
    %v4289 = vadd.f32 %v4192, %v4288
    %v4290 = vpop.f32.mrb[0].mxu0
    %v4291 = vpop.f32.mrb[0].mxu0
    %v4292 = vadd.f32 %v4195, %v4291
    %v4293 = vpop.f32.mrb[0].mxu0
    %4294 = vmatprep.mubr.bf16.mxu0 %v3869
    %4295 = vmatmul.mubr.bf16.gmra.mrb[0].mxu0 %v3868
    %v4296 = vpop.f32.mrb[0].mxu0
    %v4297 = vadd.f32 %v4200, %v4296
    %v4298 = vpop.f32.mrb[0].mxu0
    %v4299 = vpop.f32.mrb[0].mxu0
    %v4300 = vadd.f32 %v4203, %v4299
    %v4301 = vpop.f32.mrb[0].mxu0
    %4302 = vmatprep.mubr.bf16.mxu0 %v3873
    %4303 = vmatmul.mubr.bf16.gmra.mrb[0].mxu0 %v3872
    %v4304 = vpop.f32.mrb[0].mxu0
    %v4305 = vadd.f32 %v4208, %v4304
    %v4306 = vpop.f32.mrb[0].mxu0
    %v4307 = vpop.f32.mrb[0].mxu0
    %v4308 = vadd.f32 %v4211, %v4307
    %v4309 = vpop.f32.mrb[0].mxu0
    %4310 = vmatprep.mubr.bf16.mxu0 %v3877
    %4311 = vmatmul.mubr.bf16.gmra.mrb[0].mxu0 %v3876
    %v4312 = vpop.f32.mrb[0].mxu0
    %v4313 = vadd.f32 %v4216, %v4312
    %v4314 = vpop.f32.mrb[0].mxu0
    %v4315 = vpop.f32.mrb[0].mxu0
    %v4316 = vadd.f32 %v4219, %v4315
    %v4317 = vpop.f32.mrb[0].mxu0
    %4318 = vmatprep.mubr.bf16.mxu0 %v3881
    %4319 = vmatmul.mubr.bf16.gmra.mrb[0].mxu0 %v3880
    %v4320 = vpop.f32.mrb[0].mxu0
    %v4321 = vadd.f32 %v4224, %v4320
    %v4322 = vpop.f32.mrb[0].mxu0
    %v4323 = vpop.f32.mrb[0].mxu0
    %v4324 = vadd.f32 %v4227, %v4323
    %v4325 = vpop.f32.mrb[0].mxu0
    %4326 = vmatprep.mubr.bf16.mxu0 %v3885
    %4327 = vmatmul.mubr.bf16.gmra.mrb[0].mxu0 %v3884
    %v4328 = vpop.f32.mrb[0].mxu0
    %v4329 = vadd.f32 %v4232, %v4328
    %v4330 = vpop.f32.mrb[0].mxu0
    %v4331 = vpop.f32.mrb[0].mxu0
    %v4332 = vadd.f32 %v4235, %v4331
    %v4333 = vpop.f32.mrb[0].mxu0
    %4334 = vmatprep.mubr.bf16.mxu0 %v3889
    %4335 = vmatmul.mubr.bf16.gmra.mrb[0].mxu0 %v3888
    %v4336 = vpop.f32.mrb[0].mxu0
    %v4337 = vadd.f32 %v4240, %v4336
    %v4338 = vpop.f32.mrb[0].mxu0
    %v4339 = vpop.f32.mrb[0].mxu0
    %v4340 = vadd.f32 %v4243, %v4339
    %v4341 = vpop.f32.mrb[0].mxu0
    %4342 = vmatprep.mubr.bf16.mxu0 %v3893
    %4343 = vmatmul.mubr.bf16.gmra.mrb[0].mxu0 %v3892
    %v4344 = vpop.f32.mrb[0].mxu0
    %v4345 = vadd.f32 %v4248, %v4344
    %v4346 = vpop.f32.mrb[0].mxu0
    %v4347 = vpop.f32.mrb[0].mxu0
    %v4348 = vadd.f32 %v4251, %v4347
    %v4349 = vpop.f32.mrb[0].mxu0
    %4350 = vdwg.mxu0
    %v4351 = vmax.f32 %v4289, 0.0
    %v4352 = vmax.f32 %v4292, 0.0
    %v4353 = vmax.f32 %v4297, 0.0
    %v4354 = vmax.f32 %v4300, 0.0
    %v4355 = vmax.f32 %v4305, 0.0
    %v4356 = vmax.f32 %v4308, 0.0
    %v4357 = vmax.f32 %v4313, 0.0
    %v4358 = vmax.f32 %v4316, 0.0
    %v4359 = vmax.f32 %v4321, 0.0
    %v4360 = vmax.f32 %v4324, 0.0
    %v4361 = vmax.f32 %v4329, 0.0
    %v4362 = vmax.f32 %v4332, 0.0
    %v4363 = vmax.f32 %v4337, 0.0
    %v4364 = vmax.f32 %v4340, 0.0
    %v4365 = vmax.f32 %v4345, 0.0
    %v4366 = vmax.f32 %v4348, 0.0
    %v4367 = vpack.c.bf16 %v4352, %v4351
    %v4368 = vpack.c.bf16 %v4354, %v4353
    %v4369 = vpack.c.bf16 %v4356, %v4355
    %v4370 = vpack.c.bf16 %v4358, %v4357
    %v4371 = vpack.c.bf16 %v4360, %v4359
    %v4372 = vpack.c.bf16 %v4362, %v4361
    %v4373 = vpack.c.bf16 %v4364, %v4363
    %v4374 = vpack.c.bf16 %v4366, %v4365
    %v4375 = vld [vmem:[#allocation10] sm:$0xf]
    %v4376 = vld [vmem:[#allocation10 + $0x4] sm:$0xf]
    %v4377 = vld [vmem:[#allocation10 + $0x8] sm:$0xf]
    %v4378 = vld [vmem:[#allocation10 + $0xc] sm:$0xf]
    %v4379 = vld [vmem:[#allocation10 + $0x10] sm:$0xf]
    %v4380 = vld [vmem:[#allocation10 + $0x14] sm:$0xf]
    %v4381 = vld [vmem:[#allocation10 + $0x18] sm:$0xf]
    %v4382 = vld [vmem:[#allocation10 + $0x1c] sm:$0xf]
    %v4383 = vld [vmem:[#allocation10 + $0x20] sm:$0xf]
    %v4384 = vld [vmem:[#allocation10 + $0x24] sm:$0xf]
    %v4385 = vld [vmem:[#allocation10 + $0x28] sm:$0xf]
    %v4386 = vld [vmem:[#allocation10 + $0x2c] sm:$0xf]
    %v4387 = vld [vmem:[#allocation10 + $0x30] sm:$0xf]
    %v4388 = vld [vmem:[#allocation10 + $0x34] sm:$0xf]
    %v4389 = vld [vmem:[#allocation10 + $0x38] sm:$0xf]
    %v4390 = vld [vmem:[#allocation10 + $0x3c] sm:$0xf]
    %v4391 = vld [vmem:[%s8] sm:$0x1]
    %v4393 = vlaneseq
    %v4394 = vshrl.u32 %v4393, 7
    %v4395 = vsub.s32 0, %v4394
    %v4396 = vrot.slane %v4391, %v4395
    %v4414 = vunpack.c.l.b16 %v4375
    %v4415 = vunpack.c.l.b16 %v4376
    %v4416 = vunpack.c.l.b16 %v4377
    %v4417 = vunpack.c.l.b16 %v4378
    %v4418 = vunpack.c.l.b16 %v4379
    %v4419 = vunpack.c.l.b16 %v4380
    %v4420 = vunpack.c.l.b16 %v4381
    %v4421 = vunpack.c.l.b16 %v4382
    %v4422 = vunpack.c.l.b16 %v4383
    %v4423 = vunpack.c.l.b16 %v4384
    %v4424 = vunpack.c.l.b16 %v4385
    %v4425 = vunpack.c.l.b16 %v4386
    %v4426 = vunpack.c.l.b16 %v4387
    %v4427 = vunpack.c.l.b16 %v4388
    %v4428 = vunpack.c.l.b16 %v4389
    %v4429 = vunpack.c.l.b16 %v4390
    %v4430 = vpack.c.b16 %v4415, %v4414
    %v4431 = vpack.c.b16 %v4417, %v4416
    %v4432 = vpack.c.b16 %v4419, %v4418
    %v4433 = vpack.c.b16 %v4421, %v4420
    %v4434 = vpack.c.b16 %v4423, %v4422
    %v4435 = vpack.c.b16 %v4425, %v4424
    %v4436 = vpack.c.b16 %v4427, %v4426
    %v4437 = vpack.c.b16 %v4429, %v4428
    %4446 = vmatprep.subr.bf16.mxu0 0
    %4447 = vmatpush1.bf16.msra.mxu0 %v4430
    %4448 = vmatprep.subr.bf16.mxu0 0
    %4449 = vmatpush1.bf16.msra.mxu0 %v4431
    %4450 = vmatprep.subr.bf16.mxu0 0
    %4451 = vmatpush1.bf16.msra.mxu0 %v4432
    %4452 = vmatprep.subr.bf16.mxu0 0
    %4453 = vmatpush1.bf16.msra.mxu0 %v4433
    %4454 = vmatprep.subr.bf16.mxu0 0
    %4455 = vmatpush1.bf16.msra.mxu0 %v4434
    %4456 = vmatprep.subr.bf16.mxu0 0
    %4457 = vmatpush1.bf16.msra.mxu0 %v4435
    %4458 = vmatprep.subr.bf16.mxu0 0
    %4459 = vmatpush1.bf16.msra.mxu0 %v4436
    %4460 = vmatprep.subr.bf16.mxu0 0
    %4461 = vmatpush1.bf16.msra.mxu0 %v4437
    %4462 = vmatprep.subr.bf16.mxu0 0
    %4463 = vmatpush1.bf16.msra.mxu0 0
    %4464 = vmatprep.subr.bf16.mxu0 0
    %4465 = vmatpush1.bf16.msra.mxu0 0
    %4466 = vmatprep.subr.bf16.mxu0 0
    %4467 = vmatpush1.bf16.msra.mxu0 0
    %4468 = vmatprep.subr.bf16.mxu0 0
    %4469 = vmatpush1.bf16.msra.mxu0 0
    %4470 = vmatprep.subr.bf16.mxu0 0
    %4471 = vmatpush1.bf16.msra.mxu0 0
    %4472 = vmatprep.subr.bf16.mxu0 0
    %4473 = vmatpush1.bf16.msra.mxu0 0
    %4474 = vmatprep.subr.bf16.mxu0 0
    %4475 = vmatpush1.bf16.msra.mxu0 0
    %4476 = vmatprep.subr.bf16.mxu0 0
    %4477 = vmatpush1.bf16.msra.mxu0 0
    %4478 = vmatprep.mubr.bf16.mxu0 0
    %4479 = vmatmul.mubr.bf16.gmra.mrb[0].mxu0 %v4367
    %v4480 = vpop.f32.mrb[0].mxu0
    %v4481 = vadd.f32 %v4396, %v4480
    %v4482 = vpop.f32.mrb[0].mxu0
    %v4483 = vpop.f32.mrb[0].mxu0
    %v4484 = vadd.f32 %v4396, %v4483
    %v4485 = vpop.f32.mrb[0].mxu0
    %4486 = vmatprep.mubr.bf16.mxu0 0
    %4487 = vmatmul.mubr.bf16.gmra.mrb[0].mxu0 %v4368
    %v4488 = vpop.f32.mrb[0].mxu0
    %v4489 = vadd.f32 %v4396, %v4488
    %v4490 = vpop.f32.mrb[0].mxu0
    %v4491 = vpop.f32.mrb[0].mxu0
    %v4492 = vadd.f32 %v4396, %v4491
    %v4493 = vpop.f32.mrb[0].mxu0
    %4494 = vmatprep.mubr.bf16.mxu0 0
    %4495 = vmatmul.mubr.bf16.gmra.mrb[0].mxu0 %v4369
    %v4496 = vpop.f32.mrb[0].mxu0
    %v4497 = vadd.f32 %v4396, %v4496
    %v4498 = vpop.f32.mrb[0].mxu0
    %v4499 = vpop.f32.mrb[0].mxu0
    %v4500 = vadd.f32 %v4396, %v4499
    %v4501 = vpop.f32.mrb[0].mxu0
    %4502 = vmatprep.mubr.bf16.mxu0 0
    %4503 = vmatmul.mubr.bf16.gmra.mrb[0].mxu0 %v4370
    %v4504 = vpop.f32.mrb[0].mxu0
    %v4505 = vadd.f32 %v4396, %v4504
    %v4506 = vpop.f32.mrb[0].mxu0
    %v4507 = vpop.f32.mrb[0].mxu0
    %v4508 = vadd.f32 %v4396, %v4507
    %v4509 = vpop.f32.mrb[0].mxu0
    %4510 = vmatprep.mubr.bf16.mxu0 0
    %4511 = vmatmul.mubr.bf16.gmra.mrb[0].mxu0 %v4371
    %v4512 = vpop.f32.mrb[0].mxu0
    %v4513 = vadd.f32 %v4396, %v4512
    %v4514 = vpop.f32.mrb[0].mxu0
    %v4515 = vpop.f32.mrb[0].mxu0
    %v4516 = vadd.f32 %v4396, %v4515
    %v4517 = vpop.f32.mrb[0].mxu0
    %4518 = vmatprep.mubr.bf16.mxu0 0
    %4519 = vmatmul.mubr.bf16.gmra.mrb[0].mxu0 %v4372
    %v4520 = vpop.f32.mrb[0].mxu0
    %v4521 = vadd.f32 %v4396, %v4520
    %v4522 = vpop.f32.mrb[0].mxu0
    %v4523 = vpop.f32.mrb[0].mxu0
    %v4524 = vadd.f32 %v4396, %v4523
    %v4525 = vpop.f32.mrb[0].mxu0
    %4526 = vmatprep.mubr.bf16.mxu0 0
    %4527 = vmatmul.mubr.bf16.gmra.mrb[0].mxu0 %v4373
    %v4528 = vpop.f32.mrb[0].mxu0
    %v4529 = vadd.f32 %v4396, %v4528
    %v4530 = vpop.f32.mrb[0].mxu0
    %v4531 = vpop.f32.mrb[0].mxu0
    %v4532 = vadd.f32 %v4396, %v4531
    %v4533 = vpop.f32.mrb[0].mxu0
    %4534 = vmatprep.mubr.bf16.mxu0 0
    %4535 = vmatmul.mubr.bf16.gmra.mrb[0].mxu0 %v4374
    %v4536 = vpop.f32.mrb[0].mxu0
    %v4537 = vadd.f32 %v4396, %v4536
    %v4538 = vpop.f32.mrb[0].mxu0
    %v4539 = vpop.f32.mrb[0].mxu0
    %v4540 = vadd.f32 %v4396, %v4539
    %v4541 = vpop.f32.mrb[0].mxu0
    %4542 = vdwg.mxu0
    %4543 = vst [vmem:[#allocation11] sm:$0xff] %v4481
    %4544 = vst [vmem:[#allocation11 + $0x8] sm:$0xff] %v4484
    %4545 = vst [vmem:[#allocation11 + $0x10] sm:$0xff] %v4489
    %4546 = vst [vmem:[#allocation11 + $0x18] sm:$0xff] %v4492
    %4547 = vst [vmem:[#allocation11 + $0x20] sm:$0xff] %v4497
    %4548 = vst [vmem:[#allocation11 + $0x28] sm:$0xff] %v4500
    %4549 = vst [vmem:[#allocation11 + $0x30] sm:$0xff] %v4505
    %4550 = vst [vmem:[#allocation11 + $0x38] sm:$0xff] %v4508
    %4551 = vst [vmem:[#allocation11 + $0x40] sm:$0xff] %v4513
    %4552 = vst [vmem:[#allocation11 + $0x48] sm:$0xff] %v4516
    %4553 = vst [vmem:[#allocation11 + $0x50] sm:$0xff] %v4521
    %4554 = vst [vmem:[#allocation11 + $0x58] sm:$0xff] %v4524
    %4555 = vst [vmem:[#allocation11 + $0x60] sm:$0xff] %v4529
    %4556 = vst [vmem:[#allocation11 + $0x68] sm:$0xff] %v4532
    %4557 = vst [vmem:[#allocation11 + $0x70] sm:$0xff] %v4537
    %4558 = vst [vmem:[#allocation11 + $0x78] sm:$0xff] %v4540
    // Predicated region
    $region58: #{tpu_custom_call.1} parent=1 // pred_check
      _
    $region59: #{tpu_custom_call.1} parent=1 // pred_check_branch
      %4560 = sbr.rel (0) target = $region61
    $region60: #{tpu_custom_call.1} parent=1 // pred_region
      %s4562 = ssub.s32 2048, 2048
      %4563 = vsyncadd [#allocation4], %s4562
      %s4564 = sshll.u32 [#allocation11], 4
      %s4565 = int_to_ptr.vmem [resolvable:$true] %s4564
      %4570 = dma.vmem_to_hbm [thread:$0]  %s4565, 2048, %s9, [#allocation4], 128, 128, 8
    $region61: #{tpu_custom_call.1} parent=1 // pred_fallthru
      _
    // Predicated region
    $region62: #{tpu_custom_call.1} parent=1 // pred_check
      _
    $region63: #{tpu_custom_call.1} parent=1 // pred_check_branch
      %4572 = sbr.rel (0) target = $region65
    $region64: #{tpu_custom_call.1} parent=1 // pred_region
      %4573 = dma.done [#allocation4], 2048
    $region65: #{tpu_custom_call.1} parent=1 // pred_fallthru
      _
    %4574 = vsyncpa [#allocation3], 1
    %4575 = vsyncpa [#allocation6], 1
    %4576 = vsyncpa [#allocation9], 1
    %4577 = vsyncpa [#allocation4], 1

</llo_original>
